<compile_context>
chip_gen: v7x
topology: tpu7x:2x2x1
jax: 0.10.0
libtpu: 0.0.40
codegen_flags: <defaults>
</compile_context>

<pallas_src>
import functools
import math

import jax
import jax.numpy as jnp
from jax import lax
from jax.experimental import pallas as pl
from jax.experimental.pallas import tpu as pltpu


def _round_up(x, m):
    return ((x + m - 1) // m) * m


def _nonlocal_flash_kernel(xq_ref, xk_ref, w_theta_ref, w_phig_ref, w_out_ref,
                           o_ref,
                           theta_sc, m_sc, l_sc, acc_sc,
                           *, mode, chp, n_true, tk, masked):
    # xq_ref : (1, T, Cp)   query-token tile (also the residual input)
    # xk_ref : (1, T, Cp)   key/value-token tile
    # w_theta_ref : (Cp, Chp)      theta weight^T with the pairwise scale folded in
    # w_phig_ref  : (Cp, 2*Chp)    [phi weight^T | g weight^T] fused
    # w_out_ref   : (Chp, Cp)      output-conv weight^T
    ki = pl.program_id(2)
    nk = pl.num_programs(2)

    @pl.when(ki == 0)
    def _init():
        # Query-tile projection (theta). Scale is pre-folded into the weight.
        theta = jnp.dot(xq_ref[0].astype(jnp.bfloat16), w_theta_ref[...],
                        preferred_element_type=jnp.float32)
        theta_sc[...] = theta.astype(jnp.bfloat16)
        acc_sc[...] = jnp.zeros(acc_sc.shape, jnp.float32)
        if mode == "embedded_gaussian":
            m_sc[...] = jnp.full(m_sc.shape, -jnp.inf, jnp.float32)
            l_sc[...] = jnp.zeros(l_sc.shape, jnp.float32)

    # Fused phi / g projection for the current kv tile (one MXU matmul).
    phig = jnp.dot(xk_ref[0].astype(jnp.bfloat16), w_phig_ref[...],
                   preferred_element_type=jnp.float32)          # (T, 2*Chp)
    phi = phig[:, :chp].astype(jnp.bfloat16)                     # (T, Chp)
    g = phig[:, chp:].astype(jnp.bfloat16)                       # (T, Chp)

    # scores = theta @ phi^T without materializing a transpose (contract dim 1).
    s = lax.dot_general(theta_sc[...], phi, (((1,), (1,)), ((), ())),
                        preferred_element_type=jnp.float32)      # (T, T) f32

    if mode == "embedded_gaussian":
        if masked:
            # Mask kv positions beyond the true N so padding never enters the
            # row max / sum. (Every kv tile contains >=1 valid column.)
            col = ki * tk + lax.broadcasted_iota(jnp.int32, s.shape, 1)
            s = jnp.where(col < n_true, s, -1e30)
        m_prev = m_sc[...]
        m_new = jnp.maximum(m_prev, jnp.max(s, axis=-1, keepdims=True))
        alpha = jnp.exp(m_prev - m_new)
        p = jnp.exp(s - m_new)                                   # f32 softmax math
        l_sc[...] = alpha * l_sc[...] + jnp.sum(p, axis=-1, keepdims=True)
        acc_sc[...] = alpha * acc_sc[...] + jnp.dot(
            p.astype(jnp.bfloat16), g, preferred_element_type=jnp.float32)
        m_sc[...] = m_new
    else:  # dot_product: 1/N already folded into theta; padded kv rows of x are
        # zero, so their scores and g rows are exactly zero -> no mask needed.
        acc_sc[...] = acc_sc[...] + jnp.dot(
            s.astype(jnp.bfloat16), g, preferred_element_type=jnp.float32)

    @pl.when(ki == nk - 1)
    def _finalize():
        if mode == "embedded_gaussian":
            y = acc_sc[...] * pl.reciprocal(l_sc[...], approx=True)
        else:
            y = acc_sc[...]
        out = xq_ref[0].astype(jnp.float32) + jnp.dot(
            y.astype(jnp.bfloat16), w_out_ref[...],
            preferred_element_type=jnp.float32)
        o_ref[0] = out.astype(o_ref.dtype)


def nonlocal_block_nhwc(x_nhwc, w_phi, w_theta, w_g, w_out, *,
                        mode="embedded_gaussian", block=256):
    """NonLocalBlock on NHWC input. Weights are the squeezed 1x1-conv kernels:
    w_phi/w_theta/w_g: (Ch, C), w_out: (C, Ch)."""
    assert mode in ("embedded_gaussian", "dot_product")
    b, h, w, c = x_nhwc.shape
    ch = c // 2
    n = h * w

    # ---- padded / tiled geometry -------------------------------------------
    cp = _round_up(c, 128)            # lane-dense input channels
    chp = _round_up(ch, 128)          # lane-dense hidden channels
    t = min(block, _round_up(n, 8))   # square token tile (256 fills v6e/v7x MXU)
    npad = _round_up(n, t)
    nq = npad // t
    nk = npad // t

    # token layout (B, Npad, Cp), zero padded (padding never affects results:
    # padded kv rows are masked / identically zero, padded channels are zero).
    x_tok = jnp.pad(x_nhwc.reshape(b, n, c),
                    ((0, 0), (0, npad - n), (0, cp - c)))

    # Fold the pairwise scale into the theta weight (zero in-kernel cost).
    #   embedded_gaussian: pw /= Ch**(-0.5)  ==  pw *= sqrt(Ch)   (module verbatim)
    #   dot_product:       pw /= N
    scale = (float(ch) ** 0.5) if mode == "embedded_gaussian" else (1.0 / float(n))

    f32 = jnp.float32
    w_theta_t = jnp.pad(w_theta.astype(f32).T * scale,
                        ((0, cp - c), (0, chp - ch))).astype(jnp.bfloat16)
    w_phig_t = jnp.concatenate(
        [jnp.pad(w_phi.astype(f32).T, ((0, cp - c), (0, chp - ch))),
         jnp.pad(w_g.astype(f32).T, ((0, cp - c), (0, chp - ch)))],
        axis=1).astype(jnp.bfloat16)                               # (Cp, 2*Chp)
    w_out_t = jnp.pad(w_out.astype(f32).T,
                      ((0, chp - ch), (0, cp - c))).astype(jnp.bfloat16)

    kernel = functools.partial(
        _nonlocal_flash_kernel, mode=mode, chp=chp, n_true=n, tk=t,
        masked=(npad != n))

    out_tok = pl.pallas_call(
        kernel,
        out_shape=jax.ShapeDtypeStruct((b, npad, cp), x_nhwc.dtype),
        grid_spec=pltpu.PrefetchScalarGridSpec(
            num_scalar_prefetch=0,
            grid=(b, nq, nk),
            in_specs=[
                pl.BlockSpec((1, t, cp), lambda bi, qi, ki: (bi, qi, 0)),  # x (q tile)
                pl.BlockSpec((1, t, cp), lambda bi, qi, ki: (bi, ki, 0)),  # x (kv tile)
                pl.BlockSpec((cp, chp), lambda bi, qi, ki: (0, 0)),        # theta^T * scale
                pl.BlockSpec((cp, 2 * chp), lambda bi, qi, ki: (0, 0)),    # [phi^T | g^T]
                pl.BlockSpec((chp, cp), lambda bi, qi, ki: (0, 0)),        # out^T
            ],
            out_specs=pl.BlockSpec((1, t, cp), lambda bi, qi, ki: (bi, qi, 0)),
            scratch_shapes=[
                pltpu.VMEM((t, chp), jnp.bfloat16),  # cached theta tile
                pltpu.VMEM((t, 1), jnp.float32),     # running row max
                pltpu.VMEM((t, 1), jnp.float32),     # running row denom
                pltpu.VMEM((t, chp), jnp.float32),   # running numerator
            ]),
        compiler_params=pltpu.CompilerParams(
            dimension_semantics=("parallel", "parallel", "arbitrary")),
    )(x_tok, x_tok, w_theta_t, w_phig_t, w_out_t)

    return out_tok[:, :n, :c].reshape(b, h, w, c)


def nonlocal_block(x_nchw, w_phi, w_theta, w_g, w_out, *,
                   mode="embedded_gaussian", block=256):
    # NCHW boundary for drop-in parity with the PyTorch module. Callers that
    # already hold NHWC activations should call nonlocal_block_nhwc directly
    # and skip these two layout passes over HBM.
    x_nhwc = jnp.transpose(x_nchw, (0, 2, 3, 1))
    out_nhwc = nonlocal_block_nhwc(x_nhwc, w_phi, w_theta, w_g, w_out,
                                   mode=mode, block=block)
    return jnp.transpose(out_nhwc, (0, 3, 1, 2))


def _reference(x_nchw, w_phi, w_theta, w_g, w_out, *, mode):
    """Pure-JAX f32 reference mirroring the PyTorch forward exactly."""
    b, c, h, w = x_nchw.shape
    ch = c // 2
    n = h * w
    xf = x_nchw.reshape(b, c, n)                                  # (b, C, N)
    phi = jnp.einsum("oc,bcn->bon", w_phi, xf)                    # (b, Ch, N)
    theta = jnp.transpose(jnp.einsum("oc,bcn->bon", w_theta, xf), (0, 2, 1))
    g = jnp.transpose(jnp.einsum("oc,bcn->bon", w_g, xf), (0, 2, 1))
    pw = jnp.einsum("bnc,bcm->bnm", theta, phi)                   # (b, N, N)
    if mode == "embedded_gaussian":
        pw = pw / (ch ** (-0.5))          # literal module code: *= sqrt(Ch)
        pw = jax.nn.softmax(pw, axis=-1)
    else:
        pw = pw / n
    y = jnp.einsum("bnm,bmc->bnc", pw, g)                         # (b, N, Ch)
    y = jnp.transpose(y, (0, 2, 1)).reshape(b, ch, h, w)
    return x_nchw + jnp.einsum("oc,bchw->bohw", w_out, y)


if __name__ == "__main__":
    key = jax.random.PRNGKey(0)
    B, C, H, W = 2, 4, 16, 16
    CH = C // 2

    k0, k1, k2, k3, k4, k5 = jax.random.split(key, 6)
    x = jax.random.normal(k0, (B, C, H, W), dtype=jnp.float32)
    bound = 1.0 / math.sqrt(C)
    w_phi = jax.random.uniform(k1, (CH, C), jnp.float32, -bound, bound)
    w_theta = jax.random.uniform(k2, (CH, C), jnp.float32, -bound, bound)
    w_g = jax.random.uniform(k3, (CH, C), jnp.float32, -bound, bound)
    bound_o = 1.0 / math.sqrt(CH)
    w_out = jax.random.uniform(k4, (C, CH), jnp.float32, -bound_o, bound_o)

    # Tolerance sized for bf16 MXU inputs with f32 accumulation.
    tol = dict(atol=5e-2, rtol=5e-2)

    out = jax.block_until_ready(
        nonlocal_block(x, w_phi, w_theta, w_g, w_out, mode="embedded_gaussian"))
    ref = _reference(x, w_phi, w_theta, w_g, w_out, mode="embedded_gaussian")
    assert out.shape == (B, C, H, W)
    assert jnp.allclose(out, ref, **tol), "embedded_gaussian mismatch"

    out_dp = jax.block_until_ready(
        nonlocal_block(x, w_phi, w_theta, w_g, w_out, mode="dot_product"))
    ref_dp = _reference(x, w_phi, w_theta, w_g, w_out, mode="dot_product")
    assert jnp.allclose(out_dp, ref_dp, **tol), "dot_product mismatch"

    # Non-tile-multiple spatial size: exercises N padding, kv masking and the
    # multi-step online softmax (N=400 -> two kv tiles of 256).
    x2 = jax.random.normal(k5, (B, C, 20, 20), dtype=jnp.float32)
    out2 = jax.block_until_ready(
        nonlocal_block(x2, w_phi, w_theta, w_g, w_out, mode="embedded_gaussian"))
    ref2 = _reference(x2, w_phi, w_theta, w_g, w_out, mode="embedded_gaussian")
    assert jnp.allclose(out2, ref2, **tol), "padded multi-tile mismatch"

    print("KERNEL_OK")
</pallas_src>

<mosaic_0001>
module attributes {stable_mosaic.version = 11 : i64} {
  func.func @_nonlocal_flash_kernel(%arg0: i32, %arg1: i32, %arg2: i32, %arg3: memref<1x256x128xf32, #tpu.memory_space<vmem>>, %arg4: memref<1x256x128xf32, #tpu.memory_space<vmem>>, %arg5: memref<128x128xbf16, #tpu.memory_space<vmem>>, %arg6: memref<128x256xbf16, #tpu.memory_space<vmem>>, %arg7: memref<128x128xbf16, #tpu.memory_space<vmem>>, %arg8: memref<1x256x128xf32, #tpu.memory_space<vmem>>, %arg9: memref<256x128xbf16, #tpu.memory_space<vmem>>, %arg10: memref<256x1xf32, #tpu.memory_space<vmem>>, %arg11: memref<256x1xf32, #tpu.memory_space<vmem>>, %arg12: memref<256x128xf32, #tpu.memory_space<vmem>>) attributes {dimension_semantics = [#tpu.dimension_semantics<parallel>, #tpu.dimension_semantics<parallel>, #tpu.dimension_semantics<arbitrary>], iteration_bounds = array<i64: 2, 1, 1>, scalar_prefetch = 0 : i64, scratch_operands = 4 : i64, tpu.core_type = #tpu.core_type<tc>, window_params = [{transform_indices = @transform_0, window_bounds = array<i64: 1, 256, 128>}, {transform_indices = @transform_1, window_bounds = array<i64: 1, 256, 128>}, {pipeline_mode = #tpu.pipeline_mode<synchronous>, transform_indices = @transform_2, window_bounds = array<i64: 128, 128>}, {pipeline_mode = #tpu.pipeline_mode<synchronous>, transform_indices = @transform_3, window_bounds = array<i64: 128, 256>}, {pipeline_mode = #tpu.pipeline_mode<synchronous>, transform_indices = @transform_4, window_bounds = array<i64: 128, 128>}, {transform_indices = @transform_5, window_bounds = array<i64: 1, 256, 128>}]} {
    %c0_i32 = arith.constant 0 : i32
    %0 = arith.cmpi eq, %arg2, %c0_i32 : i32
    %1 = arith.extui %0 : i1 to i32
    %c0_i32_0 = arith.constant 0 : i32
    %2 = arith.cmpi ne, %1, %c0_i32_0 : i32
    scf.if %2 {
      %c0_25 = arith.constant 0 : index
      %c0_26 = arith.constant 0 : index
      %c0_27 = arith.constant 0 : index
      %40 = vector.load %arg3[%c0_25, %c0_26, %c0_27] : memref<1x256x128xf32, #tpu.memory_space<vmem>>, vector<1x256x128xf32>
      %41 = vector.shape_cast %40 : vector<1x256x128xf32> to vector<256x128xf32>
      %42 = arith.truncf %41 : vector<256x128xf32> to vector<256x128xbf16>
      %c0_28 = arith.constant 0 : index
      %c0_29 = arith.constant 0 : index
      %43 = vector.load %arg5[%c0_28, %c0_29] : memref<128x128xbf16, #tpu.memory_space<vmem>>, vector<128x128xbf16>
      %cst_30 = arith.constant dense<0.000000e+00> : vector<256x128xf32>
      %44 = tpu.matmul %42, %43, %cst_30 {dimension_numbers = #tpu.dot_dimension_numbers<[1], [0], [0], [1], [0, 0, 1, 1], [], []>} : vector<256x128xbf16>, vector<128x128xbf16>, vector<256x128xf32> -> vector<256x128xf32>
      %45 = arith.truncf %44 : vector<256x128xf32> to vector<256x128xbf16>
      %c0_31 = arith.constant 0 : index
      %c0_32 = arith.constant 0 : index
      %46 = vector.load %arg9[%c0_31, %c0_32] : memref<256x128xbf16, #tpu.memory_space<vmem>>, vector<256x128xbf16>
      tpu.vector_store %arg9[%c0_31, %c0_32], %45 {strides = array<i32>} : memref<256x128xbf16, #tpu.memory_space<vmem>>, vector<256x128xbf16>,
      %cst_33 = arith.constant 0.000000e+00 : f32
      %47 = vector.broadcast %cst_33 : f32 to vector<256x128xf32>
      %c0_34 = arith.constant 0 : index
      %c0_35 = arith.constant 0 : index
      %48 = vector.load %arg12[%c0_34, %c0_35] : memref<256x128xf32, #tpu.memory_space<vmem>>, vector<256x128xf32>
      tpu.vector_store %arg12[%c0_34, %c0_35], %47 {strides = array<i32>} : memref<256x128xf32, #tpu.memory_space<vmem>>, vector<256x128xf32>,
      %cst_36 = arith.constant 0xFF800000 : f32
      %49 = vector.broadcast %cst_36 : f32 to vector<256x1xf32>
      %c0_37 = arith.constant 0 : index
      %c0_38 = arith.constant 0 : index
      %50 = vector.load %arg10[%c0_37, %c0_38] : memref<256x1xf32, #tpu.memory_space<vmem>>, vector<256x1xf32>
      tpu.vector_store %arg10[%c0_37, %c0_38], %49 {strides = array<i32>} : memref<256x1xf32, #tpu.memory_space<vmem>>, vector<256x1xf32>,
      %cst_39 = arith.constant 0.000000e+00 : f32
      %51 = vector.broadcast %cst_39 : f32 to vector<256x1xf32>
      %c0_40 = arith.constant 0 : index
      %c0_41 = arith.constant 0 : index
      %52 = vector.load %arg11[%c0_40, %c0_41] : memref<256x1xf32, #tpu.memory_space<vmem>>, vector<256x1xf32>
      tpu.vector_store %arg11[%c0_40, %c0_41], %51 {strides = array<i32>} : memref<256x1xf32, #tpu.memory_space<vmem>>, vector<256x1xf32>,
    } else {
    }
    %c0 = arith.constant 0 : index
    %c0_1 = arith.constant 0 : index
    %c0_2 = arith.constant 0 : index
    %3 = vector.load %arg4[%c0, %c0_1, %c0_2] : memref<1x256x128xf32, #tpu.memory_space<vmem>>, vector<1x256x128xf32>
    %4 = vector.shape_cast %3 : vector<1x256x128xf32> to vector<256x128xf32>
    %5 = arith.truncf %4 : vector<256x128xf32> to vector<256x128xbf16>
    %c0_3 = arith.constant 0 : index
    %c0_4 = arith.constant 0 : index
    %6 = vector.load %arg6[%c0_3, %c0_4] : memref<128x256xbf16, #tpu.memory_space<vmem>>, vector<128x256xbf16>
    %cst = arith.constant dense<0.000000e+00> : vector<256x256xf32>
    %7 = tpu.matmul %5, %6, %cst {dimension_numbers = #tpu.dot_dimension_numbers<[1], [0], [0], [1], [0, 0, 1, 1], [], []>} : vector<256x128xbf16>, vector<128x256xbf16>, vector<256x256xf32> -> vector<256x256xf32>
    %8 = vector.extract_strided_slice %7 {offsets = [0, 0], sizes = [256, 128], strides = [1, 1]} : vector<256x256xf32> to vector<256x128xf32>
    %9 = arith.truncf %8 : vector<256x128xf32> to vector<256x128xbf16>
    %10 = vector.extract_strided_slice %7 {offsets = [0, 128], sizes = [256, 128], strides = [1, 1]} : vector<256x256xf32> to vector<256x128xf32>
    %11 = arith.truncf %10 : vector<256x128xf32> to vector<256x128xbf16>
    %c0_5 = arith.constant 0 : index
    %c0_6 = arith.constant 0 : index
    %12 = vector.load %arg9[%c0_5, %c0_6] : memref<256x128xbf16, #tpu.memory_space<vmem>>, vector<256x128xbf16>
    %cst_7 = arith.constant dense<0.000000e+00> : vector<256x256xf32>
    %13 = tpu.matmul %12, %9, %cst_7 {dimension_numbers = #tpu.dot_dimension_numbers<[1], [1], [0], [0], [0, 0, 1, 0], [], []>} : vector<256x128xbf16>, vector<256x128xbf16>, vector<256x256xf32> -> vector<256x256xf32>
    %c0_8 = arith.constant 0 : index
    %c0_9 = arith.constant 0 : index
    %14 = vector.load %arg10[%c0_8, %c0_9] : memref<256x1xf32, #tpu.memory_space<vmem>>, vector<256x1xf32>
    %cst_10 = arith.constant dense<0xFF800000> : vector<256xf32>
    %15 = vector.multi_reduction <maximumf>, %13, %cst_10 [1] : vector<256x256xf32> to vector<256xf32>
    %16 = vector.shape_cast %15 : vector<256xf32> to vector<256x1xf32>
    %17 = arith.maximumf %14, %16 : vector<256x1xf32>
    %18 = arith.subf %14, %17 : vector<256x1xf32>
    %19 = math.exp %18 : vector<256x1xf32>
    %20 = vector.broadcast %17 : vector<256x1xf32> to vector<256x256xf32>
    %21 = arith.subf %13, %20 : vector<256x256xf32>
    %22 = math.exp %21 : vector<256x256xf32>
    %c0_11 = arith.constant 0 : index
    %c0_12 = arith.constant 0 : index
    %23 = vector.load %arg11[%c0_11, %c0_12] : memref<256x1xf32, #tpu.memory_space<vmem>>, vector<256x1xf32>
    %24 = arith.mulf %19, %23 : vector<256x1xf32>
    %cst_13 = arith.constant dense<0.000000e+00> : vector<256xf32>
    %25 = vector.multi_reduction <add>, %22, %cst_13 [1] : vector<256x256xf32> to vector<256xf32>
    %26 = vector.shape_cast %25 : vector<256xf32> to vector<256x1xf32>
    %27 = arith.addf %24, %26 : vector<256x1xf32>
    %c0_14 = arith.constant 0 : index
    %c0_15 = arith.constant 0 : index
    %28 = vector.load %arg11[%c0_14, %c0_15] : memref<256x1xf32, #tpu.memory_space<vmem>>, vector<256x1xf32>
    tpu.vector_store %arg11[%c0_14, %c0_15], %27 {strides = array<i32>} : memref<256x1xf32, #tpu.memory_space<vmem>>, vector<256x1xf32>,
    %c0_16 = arith.constant 0 : index
    %c0_17 = arith.constant 0 : index
    %29 = vector.load %arg12[%c0_16, %c0_17] : memref<256x128xf32, #tpu.memory_space<vmem>>, vector<256x128xf32>
    %30 = vector.broadcast %19 : vector<256x1xf32> to vector<256x128xf32>
    %31 = arith.mulf %30, %29 : vector<256x128xf32>
    %32 = arith.truncf %22 : vector<256x256xf32> to vector<256x256xbf16>
    %cst_18 = arith.constant dense<0.000000e+00> : vector<256x128xf32>
    %33 = tpu.matmul %32, %11, %cst_18 {dimension_numbers = #tpu.dot_dimension_numbers<[1], [0], [0], [1], [0, 0, 1, 1], [], []>} : vector<256x256xbf16>, vector<256x128xbf16>, vector<256x128xf32> -> vector<256x128xf32>
    %34 = arith.addf %31, %33 : vector<256x128xf32>
    %c0_19 = arith.constant 0 : index
    %c0_20 = arith.constant 0 : index
    %35 = vector.load %arg12[%c0_19, %c0_20] : memref<256x128xf32, #tpu.memory_space<vmem>>, vector<256x128xf32>
    tpu.vector_store %arg12[%c0_19, %c0_20], %34 {strides = array<i32>} : memref<256x128xf32, #tpu.memory_space<vmem>>, vector<256x128xf32>,
    %c0_21 = arith.constant 0 : index
    %c0_22 = arith.constant 0 : index
    %36 = vector.load %arg10[%c0_21, %c0_22] : memref<256x1xf32, #tpu.memory_space<vmem>>, vector<256x1xf32>
    tpu.vector_store %arg10[%c0_21, %c0_22], %17 {strides = array<i32>} : memref<256x1xf32, #tpu.memory_space<vmem>>, vector<256x1xf32>,
    %c0_i32_23 = arith.constant 0 : i32
    %37 = arith.cmpi eq, %arg2, %c0_i32_23 : i32
    %38 = arith.extui %37 : i1 to i32
    %c0_i32_24 = arith.constant 0 : i32
    %39 = arith.cmpi ne, %38, %c0_i32_24 : i32
    scf.if %39 {
      %c0_25 = arith.constant 0 : index
      %c0_26 = arith.constant 0 : index
      %40 = vector.load %arg12[%c0_25, %c0_26] : memref<256x128xf32, #tpu.memory_space<vmem>>, vector<256x128xf32>
      %c0_27 = arith.constant 0 : index
      %c0_28 = arith.constant 0 : index
      %41 = vector.load %arg11[%c0_27, %c0_28] : memref<256x1xf32, #tpu.memory_space<vmem>>, vector<256x1xf32>
      %42 = tpu.reciprocal %41 {approx = true} : vector<256x1xf32> -> vector<256x1xf32>
      %43 = vector.broadcast %42 : vector<256x1xf32> to vector<256x128xf32>
      %44 = arith.mulf %40, %43 : vector<256x128xf32>
      %c0_29 = arith.constant 0 : index
      %c0_30 = arith.constant 0 : index
      %c0_31 = arith.constant 0 : index
      %45 = vector.load %arg3[%c0_29, %c0_30, %c0_31] : memref<1x256x128xf32, #tpu.memory_space<vmem>>, vector<1x256x128xf32>
      %46 = vector.shape_cast %45 : vector<1x256x128xf32> to vector<256x128xf32>
      %47 = arith.truncf %44 : vector<256x128xf32> to vector<256x128xbf16>
      %c0_32 = arith.constant 0 : index
      %c0_33 = arith.constant 0 : index
      %48 = vector.load %arg7[%c0_32, %c0_33] : memref<128x128xbf16, #tpu.memory_space<vmem>>, vector<128x128xbf16>
      %cst_34 = arith.constant dense<0.000000e+00> : vector<256x128xf32>
      %49 = tpu.matmul %47, %48, %cst_34 {dimension_numbers = #tpu.dot_dimension_numbers<[1], [0], [0], [1], [0, 0, 1, 1], [], []>} : vector<256x128xbf16>, vector<128x128xbf16>, vector<256x128xf32> -> vector<256x128xf32>
      %50 = arith.addf %46, %49 : vector<256x128xf32>
      %c0_35 = arith.constant 0 : index
      %c0_36 = arith.constant 0 : index
      %c0_37 = arith.constant 0 : index
      %51 = vector.load %arg8[%c0_35, %c0_36, %c0_37] : memref<1x256x128xf32, #tpu.memory_space<vmem>>, vector<1x256x128xf32>
      %52 = vector.shape_cast %51 : vector<1x256x128xf32> to vector<256x128xf32>
      %53 = vector.shape_cast %50 : vector<256x128xf32> to vector<1x256x128xf32>
      tpu.vector_store %arg8[%c0_35, %c0_36, %c0_37], %53 {strides = array<i32>} : memref<1x256x128xf32, #tpu.memory_space<vmem>>, vector<1x256x128xf32>,
    } else {
    }
    return
  }
  func.func @transform_0(%arg0: i32, %arg1: i32, %arg2: i32) -> (i32, i32, i32) {
    %c0_i32 = arith.constant 0 : i32
    %c0_i32_0 = arith.constant 0 : i32
    return %arg0, %arg1, %c0_i32 : i32, i32, i32
  }
  func.func @transform_1(%arg0: i32, %arg1: i32, %arg2: i32) -> (i32, i32, i32) {
    %c0_i32 = arith.constant 0 : i32
    %c0_i32_0 = arith.constant 0 : i32
    return %arg0, %arg2, %c0_i32 : i32, i32, i32
  }
  func.func @transform_2(%arg0: i32, %arg1: i32, %arg2: i32) -> (i32, i32) {
    %c0_i32 = arith.constant 0 : i32
    %c0_i32_0 = arith.constant 0 : i32
    %c0_i32_1 = arith.constant 0 : i32
    return %c0_i32, %c0_i32_0 : i32, i32
  }
  func.func @transform_3(%arg0: i32, %arg1: i32, %arg2: i32) -> (i32, i32) {
    %c0_i32 = arith.constant 0 : i32
    %c0_i32_0 = arith.constant 0 : i32
    %c0_i32_1 = arith.constant 0 : i32
    return %c0_i32, %c0_i32_0 : i32, i32
  }
  func.func @transform_4(%arg0: i32, %arg1: i32, %arg2: i32) -> (i32, i32) {
    %c0_i32 = arith.constant 0 : i32
    %c0_i32_0 = arith.constant 0 : i32
    %c0_i32_1 = arith.constant 0 : i32
    return %c0_i32, %c0_i32_0 : i32, i32
  }
  func.func @transform_5(%arg0: i32, %arg1: i32, %arg2: i32) -> (i32, i32, i32) {
    %c0_i32 = arith.constant 0 : i32
    %c0_i32_0 = arith.constant 0 : i32
    return %arg0, %arg1, %c0_i32 : i32, i32, i32
  }
}

</mosaic_0001>

<llo_original>
// kernel: tpu_custom_call.1
$region0: #{tpu_custom_call.1}
  #allocation0 [shape = 'u32[]', space=smem, size = 0x4, offset = 0x4, fixed_abs, tag = 'smem constant byte address 0x4 - core index']
  #allocation1 [shape = 'u32[144,128]{1,0:T(1,128)}', space=vmem, size = 0x12000, scoped, tag = 'internal scratch']
  #allocation2 [shape = 'bf16[256,128]{1,0:T(16,128)(2,1)}', space=vmem, size = 0x10000, scoped, tag = 'scratch operand']
  #allocation3 [shape = 'f32[256,1]{1,0:T(8,128)}', space=vmem, size = 0x20000, scoped, tag = 'scratch operand']
  #allocation4 [shape = 'f32[256,1]{1,0:T(8,128)}', space=vmem, size = 0x20000, scoped, tag = 'scratch operand']
  #allocation5 [shape = 'f32[256,128]{1,0:T(8,128)}', space=vmem, size = 0x20000, scoped, tag = 'scratch operand']
  %s0 = inlined_call_operand.hbm [shape: f32[2,256,128], index: 0, kind: input, shape index: {}]
  %s1 = inlined_call_operand.hbm [shape: f32[2,256,128], index: 1, kind: input, shape index: {}]
  %s2 = inlined_call_operand.hbm [shape: bf16[128,128], index: 2, kind: input, shape index: {}]
  %s3 = inlined_call_operand.hbm [shape: bf16[128,256], index: 3, kind: input, shape index: {}]
  %s4 = inlined_call_operand.hbm [shape: bf16[128,128], index: 4, kind: input, shape index: {}]
  %s5 = inlined_call_operand.hbm [shape: f32[2,256,128], index: 5, kind: output, shape index: {}]
  %s6 = sld [smem:[#allocation0]]
  $region81: #{tpu_custom_call.1} parent=0
    _
  %s8 = ssub.s32 1, %s6
  %s9 = scalar_select 0, %s8, %s6
  $region1: #{tpu_custom_call.1} parent=0
    #allocation6 [shape = 'u8[262144]{0}', space=vmem, size = 0x40000, scoped, tag = 'input window, operand 0']
    #allocation7 [shape = 's32[2]{0}', space=sflag, size = 0x8, scoped, tag = 'scoped memory for tpu_custom_call.1']
    #allocation8 [shape = 's32[2]{0}', space=sflag, size = 0x8, scoped, tag = 'scoped memory for tpu_custom_call.1']
    #allocation9 [shape = 'u8[262144]{0}', space=vmem, size = 0x40000, scoped, tag = 'input window, operand 1']
    #allocation10 [shape = 's32[2]{0}', space=sflag, size = 0x8, scoped, tag = 'scoped memory for tpu_custom_call.1']
    #allocation11 [shape = 'u8[32768]{0}', space=vmem, size = 0x8000, scoped, tag = 'input window, operand 2, single buffered']
    #allocation12 [shape = 'u8[65536]{0}', space=vmem, size = 0x10000, scoped, tag = 'input window, operand 3, single buffered']
    #allocation13 [shape = 's32[1]{0}', space=sflag, size = 0x4, scoped, tag = 'scoped memory for tpu_custom_call.1']
    #allocation14 [shape = 'u8[32768]{0}', space=vmem, size = 0x8000, scoped, tag = 'input window, operand 4, single buffered']
    #allocation15 [shape = 'u8[262144]{0}', space=vmem, size = 0x40000, scoped, tag = 'output window, operand 0']
    %10 = vsyncpa [#allocation7], 0
    %s11 = scalar_lea.sflag [#allocation7], 1
    %12 = vsyncpa %s11, 0
    %13 = vsyncpa [#allocation10], 0
    %s14 = scalar_lea.sflag [#allocation10], 1
    %15 = vsyncpa %s14, 0
    %16 = vsyncpa [#allocation13], 0
    %17 = vsyncpa [#allocation8], 0
    %s18 = scalar_lea.sflag [#allocation8], 1
    %19 = vsyncpa %s18, 0
    loop: start=0, step=1, limit=4
    $region2: #{tpu_custom_call.1} parent=1 // loop_pre_header
      _
    $region3: #{tpu_custom_call.1} parent=1 // loop_header
      %s21 = sphi 0, %s25
      %p22 = scmp.ge.s32.totalorder %s21, 4
      %s28 = sphi 0, %s47
      %s29 = sphi 0, %s43
      %s30 = sphi 0, %s39
      %s31 = sphi 0, %s28
      %s32 = sphi 0, %s29
      %s33 = sphi 0, %s30
      %s34 = sphi 0, %s31
      %s35 = sphi 0, %s32
      %s36 = sphi 0, %s33
      %s52 = sphi 0, %s54
      %s55 = sphi 0, %s52
      %s56 = sphi 0, %s55
      %s72 = sphi 0, %s56
      %s80 = sphi 0, %s82
      %s83 = sphi 0, %s80
      %s84 = sphi 0, %s83
      %s100 = sphi 0, %s84
      %s104 = sphi 0, %s104
      %s106 = sphi 0, %s104
      %s107 = sphi 0, %s106
      %s121 = sphi 0, %s107
      %s125 = sphi 0, %s125
      %s127 = sphi 0, %s125
      %s128 = sphi 0, %s127
      %s142 = sphi 0, %s128
      %s146 = sphi 0, %s146
      %s148 = sphi 0, %s146
      %s149 = sphi 0, %s148
      %s163 = sphi 0, %s149
      %s171 = sphi 0, %s173
      %s174 = sphi 0, %s171
      %s175 = sphi 0, %s174
      %s191 = sphi 0, %s175
    $region4: #{tpu_custom_call.1} parent=1 // loop_header_branch
      %24 = sbr.rel (%p22) target = $region8
    $region5: #{tpu_custom_call.1} parent=1 // loop_body
      %s26 = ssub.s32 %s21, 1
      %s27 = ssub.s32 %s21, 2
      %s37 = sadd.s32 1, %s30
      %p38 = scmp.ge.s32.totalorder %s37, 1
      %s39 = scalar_select %p38, 0, %s37
      %s40 = sadd.s32 1, %s29
      %s41 = scalar_select %p38, %s40, %s29
      %p42 = scmp.ge.s32.totalorder %s41, 1
      %s43 = scalar_select %p42, 0, %s41
      %s44 = sadd.s32 1, %s28
      %s45 = scalar_select %p42, %s44, %s28
      %p46 = scmp.ge.s32.totalorder %s45, 2
      %s47 = scalar_select %p46, 0, %s45
      %s48 = ssub.s32 %s28, %s47
      %s49 = ssub.s32 %s29, %s43
      %s50 = sor.u32 %s48, %s49
      %p51 = scmp.eq.s32.totalorder %s50, 0
      %s53 = sadd.s32 %s52, 1
      %s54 = scalar_select %p51, %s52, %s53
      %p57 = pneg %p51
      %p58 = scmp.eq.s32.totalorder %s21, 1
      %p59 = por %p57, %p58
      %p60 = scmp.ne.s32.totalorder %s52, %s55
      %p61 = scmp.eq.s32.totalorder %s21, 0
      %p62 = por %p60, %p61
      %p63 = scmp.ne.s32.totalorder %s52, %s55
      %p64 = scmp.eq.s32.totalorder %s26, 1
      %p65 = por %p63, %p64
      %p66 = scmp.ne.s32.totalorder %s55, %s56
      %p67 = scmp.eq.s32.totalorder %s26, 0
      %p68 = por %p66, %p67
      %p69 = scmp.ne.s32.totalorder %s55, %s56
      %p70 = scmp.eq.s32.totalorder %s27, 1
      %p71 = por %p69, %p70
      %p73 = scmp.ne.s32.totalorder %s56, %s72
      %p74 = scmp.eq.s32.totalorder %s27, 0
      %p75 = por %p73, %p74
      %s76 = ssub.s32 %s28, %s47
      %s77 = ssub.s32 %s30, %s39
      %s78 = sor.u32 %s76, %s77
      %p79 = scmp.eq.s32.totalorder %s78, 0
      %s81 = sadd.s32 %s80, 1
      %s82 = scalar_select %p79, %s80, %s81
      %p85 = pneg %p79
      %p86 = scmp.eq.s32.totalorder %s21, 1
      %p87 = por %p85, %p86
      %p88 = scmp.ne.s32.totalorder %s80, %s83
      %p89 = scmp.eq.s32.totalorder %s21, 0
      %p90 = por %p88, %p89
      %p91 = scmp.ne.s32.totalorder %s80, %s83
      %p92 = scmp.eq.s32.totalorder %s26, 1
      %p93 = por %p91, %p92
      %p94 = scmp.ne.s32.totalorder %s83, %s84
      %p95 = scmp.eq.s32.totalorder %s26, 0
      %p96 = por %p94, %p95
      %p97 = scmp.ne.s32.totalorder %s83, %s84
      %p98 = scmp.eq.s32.totalorder %s27, 1
      %p99 = por %p97, %p98
      %p101 = scmp.ne.s32.totalorder %s84, %s100
      %p102 = scmp.eq.s32.totalorder %s27, 0
      %p103 = por %p101, %p102
      %s105 = sadd.s32 %s104, 1
      %p108 = scmp.eq.s32.totalorder %s21, 1
      %p109 = scmp.ne.s32.totalorder %s104, %s106
      %p110 = scmp.eq.s32.totalorder %s21, 0
      %p111 = por %p109, %p110
      %p112 = scmp.ne.s32.totalorder %s104, %s106
      %p113 = scmp.eq.s32.totalorder %s26, 1
      %p114 = por %p112, %p113
      %p115 = scmp.ne.s32.totalorder %s106, %s107
      %p116 = scmp.eq.s32.totalorder %s26, 0
      %p117 = por %p115, %p116
      %p118 = scmp.ne.s32.totalorder %s106, %s107
      %p119 = scmp.eq.s32.totalorder %s27, 1
      %p120 = por %p118, %p119
      %p122 = scmp.ne.s32.totalorder %s107, %s121
      %p123 = scmp.eq.s32.totalorder %s27, 0
      %p124 = por %p122, %p123
      %s126 = sadd.s32 %s125, 1
      %p129 = scmp.eq.s32.totalorder %s21, 1
      %p130 = scmp.ne.s32.totalorder %s125, %s127
      %p131 = scmp.eq.s32.totalorder %s21, 0
      %p132 = por %p130, %p131
      %p133 = scmp.ne.s32.totalorder %s125, %s127
      %p134 = scmp.eq.s32.totalorder %s26, 1
      %p135 = por %p133, %p134
      %p136 = scmp.ne.s32.totalorder %s127, %s128
      %p137 = scmp.eq.s32.totalorder %s26, 0
      %p138 = por %p136, %p137
      %p139 = scmp.ne.s32.totalorder %s127, %s128
      %p140 = scmp.eq.s32.totalorder %s27, 1
      %p141 = por %p139, %p140
      %p143 = scmp.ne.s32.totalorder %s128, %s142
      %p144 = scmp.eq.s32.totalorder %s27, 0
      %p145 = por %p143, %p144
      %s147 = sadd.s32 %s146, 1
      %p150 = scmp.eq.s32.totalorder %s21, 1
      %p151 = scmp.ne.s32.totalorder %s146, %s148
      %p152 = scmp.eq.s32.totalorder %s21, 0
      %p153 = por %p151, %p152
      %p154 = scmp.ne.s32.totalorder %s146, %s148
      %p155 = scmp.eq.s32.totalorder %s26, 1
      %p156 = por %p154, %p155
      %p157 = scmp.ne.s32.totalorder %s148, %s149
      %p158 = scmp.eq.s32.totalorder %s26, 0
      %p159 = por %p157, %p158
      %p160 = scmp.ne.s32.totalorder %s148, %s149
      %p161 = scmp.eq.s32.totalorder %s27, 1
      %p162 = por %p160, %p161
      %p164 = scmp.ne.s32.totalorder %s149, %s163
      %p165 = scmp.eq.s32.totalorder %s27, 0
      %p166 = por %p164, %p165
      %s167 = ssub.s32 %s28, %s47
      %s168 = ssub.s32 %s29, %s43
      %s169 = sor.u32 %s167, %s168
      %p170 = scmp.eq.s32.totalorder %s169, 0
      %s172 = sadd.s32 %s171, 1
      %s173 = scalar_select %p170, %s171, %s172
      %p176 = pneg %p170
      %p177 = scmp.eq.s32.totalorder %s21, 1
      %p178 = por %p176, %p177
      %p179 = scmp.ne.s32.totalorder %s171, %s174
      %p180 = scmp.eq.s32.totalorder %s21, 0
      %p181 = por %p179, %p180
      %p182 = scmp.ne.s32.totalorder %s171, %s174
      %p183 = scmp.eq.s32.totalorder %s26, 1
      %p184 = por %p182, %p183
      %p185 = scmp.ne.s32.totalorder %s174, %s175
      %p186 = scmp.eq.s32.totalorder %s26, 0
      %p187 = por %p185, %p186
      %p188 = scmp.ne.s32.totalorder %s174, %s175
      %p189 = scmp.eq.s32.totalorder %s27, 1
      %p190 = por %p188, %p189
      %p192 = scmp.ne.s32.totalorder %s175, %s191
      %p193 = scmp.eq.s32.totalorder %s27, 0
      %p194 = por %p192, %p193
      %p195 = scmp.le.s32.totalorder 1, %s21
      %p196 = scmp.lt.s32.totalorder %s21, 3
      %p197 = pnand %p195, %p196
      %p198 = pneg %p197
      // Predicated region
      $region9: #{tpu_custom_call.1} parent=5 // pred_check
        _
      $region10: #{tpu_custom_call.1} parent=5 // pred_check_branch
        %200 = sbr.rel (%p197) target = $region12
      $region11: #{tpu_custom_call.1} parent=5 // pred_region
        %s201 = ssub.s32 %s21, 1
        // Predicated region
        $region13: #{tpu_custom_call.1} parent=11 // pred_check
          %p202 = pneg %p117
        $region14: #{tpu_custom_call.1} parent=11 // pred_check_branch
          %204 = sbr.rel (%p202) target = $region16
        $region15: #{tpu_custom_call.1} parent=11 // pred_region
          %s206 = ssub.s32 1024, 1024
          %207 = vsyncadd [#allocation10], %s206
          %s208 = sshll.u32 [#allocation11], 4
          %s209 = int_to_ptr.vmem [resolvable:$true] %s208
          %214 = dma.hbm_to_vmem [thread:$0]  %s2, 1024, %s209, [#allocation10], 64, 64, 4
        $region16: #{tpu_custom_call.1} parent=11 // pred_fallthru
          _
        // Predicated region
        $region17: #{tpu_custom_call.1} parent=11 // pred_check
          %p215 = pneg %p138
        $region18: #{tpu_custom_call.1} parent=11 // pred_check_branch
          %217 = sbr.rel (%p215) target = $region20
        $region19: #{tpu_custom_call.1} parent=11 // pred_region
          %s219 = ssub.s32 2048, 2048
          %220 = vsyncadd [#allocation13], %s219
          %s221 = sshll.u32 [#allocation12], 4
          %s222 = int_to_ptr.vmem [resolvable:$true] %s221
          %227 = dma.hbm_to_vmem [thread:$0]  %s3, 2048, %s222, [#allocation13], 128, 128, 8
        $region20: #{tpu_custom_call.1} parent=11 // pred_fallthru
          _
        // Predicated region
        $region21: #{tpu_custom_call.1} parent=11 // pred_check
          %p228 = pneg %p159
        $region22: #{tpu_custom_call.1} parent=11 // pred_check_branch
          %230 = sbr.rel (%p228) target = $region24
        $region23: #{tpu_custom_call.1} parent=11 // pred_region
          %s232 = ssub.s32 1024, 1024
          %233 = vsyncadd [#allocation13], %s232
          %s234 = sshll.u32 [#allocation14], 4
          %s235 = int_to_ptr.vmem [resolvable:$true] %s234
          %240 = dma.hbm_to_vmem [thread:$0]  %s4, 1024, %s235, [#allocation13], 64, 64, 4
        $region24: #{tpu_custom_call.1} parent=11 // pred_fallthru
          _
      $region12: #{tpu_custom_call.1} parent=5 // pred_fallthru
        _
      %p241 = scmp.lt.s32.totalorder %s21, 2
      // Predicated region
      $region25: #{tpu_custom_call.1} parent=5 // pred_check
        %p242 = pneg %p241
      $region26: #{tpu_custom_call.1} parent=5 // pred_check_branch
        %244 = sbr.rel (%p242) target = $region28
      $region27: #{tpu_custom_call.1} parent=5 // pred_region
        // Predicated region
        $region29: #{tpu_custom_call.1} parent=27 // pred_check
          %p245 = pneg %p62
        $region30: #{tpu_custom_call.1} parent=27 // pred_check_branch
          %247 = sbr.rel (%p245) target = $region32
        $region31: #{tpu_custom_call.1} parent=27 // pred_region
          %s248 = sand.u32 %s52, 1
          %s249 = scalar_lea.sflag [#allocation7], %s248
          %s250 = sand.u32 %s52, 1
          %s251 = smul.addr %s250, 256
          %s252 = scalar_lea.vmem [#allocation6], %s251
          %s253 = smul.u32 32, %s29
          %s255 = ssub.s32 4096, 4096
          %256 = vsyncadd %s249, %s255
          %s257 = smul.addr %s28, 32
          %s258 = sadd.s32 %s253, %s257
          %s259 = smul.addr %s258, 128
          %s260 = scalar_lea.hbm %s0, %s259
          %s261 = sshll.u32 %s252, 4
          %s262 = int_to_ptr.vmem [resolvable:$true] %s261
          %267 = dma.hbm_to_vmem [thread:$0]  %s260, 4096, %s262, %s249, 128, 128, 8
        $region32: #{tpu_custom_call.1} parent=27 // pred_fallthru
          _
        // Predicated region
        $region33: #{tpu_custom_call.1} parent=27 // pred_check
          %p268 = pneg %p90
        $region34: #{tpu_custom_call.1} parent=27 // pred_check_branch
          %270 = sbr.rel (%p268) target = $region36
        $region35: #{tpu_custom_call.1} parent=27 // pred_region
          %s271 = sand.u32 %s21, 1
          %s272 = scalar_lea.sflag [#allocation10], %s271
          %s273 = sand.u32 %s80, 1
          %s274 = smul.addr %s273, 256
          %s275 = scalar_lea.vmem [#allocation9], %s274
          %s276 = smul.u32 32, %s30
          %s278 = ssub.s32 4096, 4096
          %279 = vsyncadd %s272, %s278
          %s280 = smul.addr %s28, 32
          %s281 = sadd.s32 %s276, %s280
          %s282 = smul.addr %s281, 128
          %s283 = scalar_lea.hbm %s1, %s282
          %s284 = sshll.u32 %s275, 4
          %s285 = int_to_ptr.vmem [resolvable:$true] %s284
          %290 = dma.hbm_to_vmem [thread:$0]  %s283, 4096, %s285, %s272, 128, 128, 8
        $region36: #{tpu_custom_call.1} parent=27 // pred_fallthru
          _
      $region28: #{tpu_custom_call.1} parent=5 // pred_fallthru
        _
      %p291 = scmp.le.s32.totalorder 1, %s21
      %p292 = scmp.lt.s32.totalorder %s21, 3
      %p293 = pnand %p291, %p292
      %p294 = pneg %p293
      // Predicated region
      $region37: #{tpu_custom_call.1} parent=5 // pred_check
        _
      $region38: #{tpu_custom_call.1} parent=5 // pred_check_branch
        %296 = sbr.rel (%p293) target = $region40
      $region39: #{tpu_custom_call.1} parent=5 // pred_region
        %s297 = ssub.s32 %s21, 1
        %s298 = sand.u32 %s55, 1
        %s299 = scalar_lea.sflag [#allocation7], %s298
        %s300 = sand.u32 %s55, 1
        %s301 = smul.addr %s300, 256
        %s302 = scalar_lea.vmem [#allocation6], %s301
        // Predicated region
        $region41: #{tpu_custom_call.1} parent=39 // pred_check
          %p303 = pneg %p68
        $region42: #{tpu_custom_call.1} parent=39 // pred_check_branch
          %305 = sbr.rel (%p303) target = $region44
        $region43: #{tpu_custom_call.1} parent=39 // pred_region
          %306 = dma.done %s299, 4096
        $region44: #{tpu_custom_call.1} parent=39 // pred_fallthru
          _
        %s307 = sand.u32 %s26, 1
        %s308 = scalar_lea.sflag [#allocation10], %s307
        %s309 = sand.u32 %s83, 1
        %s310 = smul.addr %s309, 256
        %s311 = scalar_lea.vmem [#allocation9], %s310
        // Predicated region
        $region45: #{tpu_custom_call.1} parent=39 // pred_check
          %p312 = pneg %p96
        $region46: #{tpu_custom_call.1} parent=39 // pred_check_branch
          %314 = sbr.rel (%p312) target = $region48
        $region47: #{tpu_custom_call.1} parent=39 // pred_region
          %315 = dma.done %s308, 4096
        $region48: #{tpu_custom_call.1} parent=39 // pred_fallthru
          _
        // Predicated region
        $region49: #{tpu_custom_call.1} parent=39 // pred_check
          %p316 = pneg %p117
        $region50: #{tpu_custom_call.1} parent=39 // pred_check_branch
          %318 = sbr.rel (%p316) target = $region52
        $region51: #{tpu_custom_call.1} parent=39 // pred_region
          %319 = dma.done [#allocation10], 1024
        $region52: #{tpu_custom_call.1} parent=39 // pred_fallthru
          _
        // Predicated region
        $region53: #{tpu_custom_call.1} parent=39 // pred_check
          %p320 = pneg %p138
        $region54: #{tpu_custom_call.1} parent=39 // pred_check_branch
          %322 = sbr.rel (%p320) target = $region56
        $region55: #{tpu_custom_call.1} parent=39 // pred_region
          %323 = dma.done [#allocation13], 2048
        $region56: #{tpu_custom_call.1} parent=39 // pred_fallthru
          _
        // Predicated region
        $region57: #{tpu_custom_call.1} parent=39 // pred_check
          %p324 = pneg %p159
        $region58: #{tpu_custom_call.1} parent=39 // pred_check_branch
          %326 = sbr.rel (%p324) target = $region60
        $region59: #{tpu_custom_call.1} parent=39 // pred_region
          %327 = dma.done [#allocation13], 1024
        $region60: #{tpu_custom_call.1} parent=39 // pred_fallthru
          _
        %s328 = sand.u32 %s55, 1
        %s329 = scalar_lea.sflag [#allocation7], %s328
        %s330 = sand.u32 %s55, 1
        %s331 = smul.addr %s330, 256
        %s332 = scalar_lea.vmem [#allocation6], %s331
        %p333 = pneg %p68
        %p334 = pneg %p65
        %s335 = sand.u32 %s26, 1
        %s336 = scalar_lea.sflag [#allocation10], %s335
        %s337 = sand.u32 %s83, 1
        %s338 = smul.addr %s337, 256
        %s339 = scalar_lea.vmem [#allocation9], %s338
        %p340 = pneg %p96
        %p341 = pneg %p93
        %p342 = pneg %p117
        %p343 = pneg %p114
        %p344 = pneg %p138
        %p345 = pneg %p135
        %p346 = pneg %p159
        %p347 = pneg %p156
        %p348 = pneg %p187
        %p349 = pneg %p184
        %s350 = sand.u32 %s174, 1
        %s351 = scalar_lea.sflag [#allocation8], %s350
        %s352 = sand.u32 %s174, 1
        %s353 = smul.addr %s352, 256
        %s354 = scalar_lea.vmem [#allocation15], %s353
        %s355 = smul.u32 32, %s32
        %s356 = smul.u32 32, %s33
        %s357 = smul.u32 32, %s32
        %p359 = scmp.eq.s32.totalorder %s33, 0
        // Predicated region
        $region61: #{tpu_custom_call.1} parent=39 // pred_check
          %p360 = pneg %p359
        $region62: #{tpu_custom_call.1} parent=39 // pred_check_branch
          %362 = sbr.rel (%p360) target = $region64
        $region63: #{tpu_custom_call.1} parent=39 // pred_region
          %v363 = vld [vmem:[%s302] sm:$0xff]
          %v364 = vld [vmem:[%s302 + $0x8] sm:$0xff]
          %v365 = vld [vmem:[%s302 + $0x10] sm:$0xff]
          %v366 = vld [vmem:[%s302 + $0x18] sm:$0xff]
          %v367 = vld [vmem:[%s302 + $0x20] sm:$0xff]
          %v368 = vld [vmem:[%s302 + $0x28] sm:$0xff]
          %v369 = vld [vmem:[%s302 + $0x30] sm:$0xff]
          %v370 = vld [vmem:[%s302 + $0x38] sm:$0xff]
          %v371 = vld [vmem:[%s302 + $0x40] sm:$0xff]
          %v372 = vld [vmem:[%s302 + $0x48] sm:$0xff]
          %v373 = vld [vmem:[%s302 + $0x50] sm:$0xff]
          %v374 = vld [vmem:[%s302 + $0x58] sm:$0xff]
          %v375 = vld [vmem:[%s302 + $0x60] sm:$0xff]
          %v376 = vld [vmem:[%s302 + $0x68] sm:$0xff]
          %v377 = vld [vmem:[%s302 + $0x70] sm:$0xff]
          %v378 = vld [vmem:[%s302 + $0x78] sm:$0xff]
          %v379 = vld [vmem:[%s302 + $0x80] sm:$0xff]
          %v380 = vld [vmem:[%s302 + $0x88] sm:$0xff]
          %v381 = vld [vmem:[%s302 + $0x90] sm:$0xff]
          %v382 = vld [vmem:[%s302 + $0x98] sm:$0xff]
          %v383 = vld [vmem:[%s302 + $0xa0] sm:$0xff]
          %v384 = vld [vmem:[%s302 + $0xa8] sm:$0xff]
          %v385 = vld [vmem:[%s302 + $0xb0] sm:$0xff]
          %v386 = vld [vmem:[%s302 + $0xb8] sm:$0xff]
          %v387 = vld [vmem:[%s302 + $0xc0] sm:$0xff]
          %v388 = vld [vmem:[%s302 + $0xc8] sm:$0xff]
          %v389 = vld [vmem:[%s302 + $0xd0] sm:$0xff]
          %v390 = vld [vmem:[%s302 + $0xd8] sm:$0xff]
          %v391 = vld [vmem:[%s302 + $0xe0] sm:$0xff]
          %v392 = vld [vmem:[%s302 + $0xe8] sm:$0xff]
          %v393 = vld [vmem:[%s302 + $0xf0] sm:$0xff]
          %v394 = vld [vmem:[%s302 + $0xf8] sm:$0xff]
          %v395 = vpack.c.bf16 %v364, %v363
          %v396 = vpack.c.bf16 %v366, %v365
          %v397 = vpack.c.bf16 %v368, %v367
          %v398 = vpack.c.bf16 %v370, %v369
          %v399 = vpack.c.bf16 %v372, %v371
          %v400 = vpack.c.bf16 %v374, %v373
          %v401 = vpack.c.bf16 %v376, %v375
          %v402 = vpack.c.bf16 %v378, %v377
          %v403 = vpack.c.bf16 %v380, %v379
          %v404 = vpack.c.bf16 %v382, %v381
          %v405 = vpack.c.bf16 %v384, %v383
          %v406 = vpack.c.bf16 %v386, %v385
          %v407 = vpack.c.bf16 %v388, %v387
          %v408 = vpack.c.bf16 %v390, %v389
          %v409 = vpack.c.bf16 %v392, %v391
          %v410 = vpack.c.bf16 %v394, %v393
          %v411 = vld [vmem:[#allocation11] sm:$0xf]
          %v412 = vld [vmem:[#allocation11 + $0x4] sm:$0xf]
          %v413 = vld [vmem:[#allocation11 + $0x8] sm:$0xf]
          %v414 = vld [vmem:[#allocation11 + $0xc] sm:$0xf]
          %v415 = vld [vmem:[#allocation11 + $0x10] sm:$0xf]
          %v416 = vld [vmem:[#allocation11 + $0x14] sm:$0xf]
          %v417 = vld [vmem:[#allocation11 + $0x18] sm:$0xf]
          %v418 = vld [vmem:[#allocation11 + $0x1c] sm:$0xf]
          %v419 = vld [vmem:[#allocation11 + $0x20] sm:$0xf]
          %v420 = vld [vmem:[#allocation11 + $0x24] sm:$0xf]
          %v421 = vld [vmem:[#allocation11 + $0x28] sm:$0xf]
          %v422 = vld [vmem:[#allocation11 + $0x2c] sm:$0xf]
          %v423 = vld [vmem:[#allocation11 + $0x30] sm:$0xf]
          %v424 = vld [vmem:[#allocation11 + $0x34] sm:$0xf]
          %v425 = vld [vmem:[#allocation11 + $0x38] sm:$0xf]
          %v426 = vld [vmem:[#allocation11 + $0x3c] sm:$0xf]
          %v443 = vunpack.c.l.b16 %v411
          %v444 = vunpack.c.l.b16 %v412
          %v445 = vunpack.c.l.b16 %v413
          %v446 = vunpack.c.l.b16 %v414
          %v447 = vunpack.c.l.b16 %v415
          %v448 = vunpack.c.l.b16 %v416
          %v449 = vunpack.c.l.b16 %v417
          %v450 = vunpack.c.l.b16 %v418
          %v451 = vunpack.c.l.b16 %v419
          %v452 = vunpack.c.l.b16 %v420
          %v453 = vunpack.c.l.b16 %v421
          %v454 = vunpack.c.l.b16 %v422
          %v455 = vunpack.c.l.b16 %v423
          %v456 = vunpack.c.l.b16 %v424
          %v457 = vunpack.c.l.b16 %v425
          %v458 = vunpack.c.l.b16 %v426
          %v459 = vpack.c.b16 %v444, %v443
          %v460 = vpack.c.b16 %v446, %v445
          %v461 = vpack.c.b16 %v448, %v447
          %v462 = vpack.c.b16 %v450, %v449
          %v463 = vpack.c.b16 %v452, %v451
          %v464 = vpack.c.b16 %v454, %v453
          %v465 = vpack.c.b16 %v456, %v455
          %v466 = vpack.c.b16 %v458, %v457
          %475 = vmatprep.subr.bf16.mxu0 0
          %476 = vmatpush1.bf16.msra.mxu0 %v459
          %477 = vmatprep.subr.bf16.mxu0 0
          %478 = vmatpush1.bf16.msra.mxu0 %v460
          %479 = vmatprep.subr.bf16.mxu0 0
          %480 = vmatpush1.bf16.msra.mxu0 %v461
          %481 = vmatprep.subr.bf16.mxu0 0
          %482 = vmatpush1.bf16.msra.mxu0 %v462
          %483 = vmatprep.subr.bf16.mxu0 0
          %484 = vmatpush1.bf16.msra.mxu0 %v463
          %485 = vmatprep.subr.bf16.mxu0 0
          %486 = vmatpush1.bf16.msra.mxu0 %v464
          %487 = vmatprep.subr.bf16.mxu0 0
          %488 = vmatpush1.bf16.msra.mxu0 %v465
          %489 = vmatprep.subr.bf16.mxu0 0
          %490 = vmatpush1.bf16.msra.mxu0 %v466
          %491 = vmatprep.subr.bf16.mxu0 0
          %492 = vmatpush1.bf16.msra.mxu0 0
          %493 = vmatprep.subr.bf16.mxu0 0
          %494 = vmatpush1.bf16.msra.mxu0 0
          %495 = vmatprep.subr.bf16.mxu0 0
          %496 = vmatpush1.bf16.msra.mxu0 0
          %497 = vmatprep.subr.bf16.mxu0 0
          %498 = vmatpush1.bf16.msra.mxu0 0
          %499 = vmatprep.subr.bf16.mxu0 0
          %500 = vmatpush1.bf16.msra.mxu0 0
          %501 = vmatprep.subr.bf16.mxu0 0
          %502 = vmatpush1.bf16.msra.mxu0 0
          %503 = vmatprep.subr.bf16.mxu0 0
          %504 = vmatpush1.bf16.msra.mxu0 0
          %505 = vmatprep.subr.bf16.mxu0 0
          %506 = vmatpush1.bf16.msra.mxu0 0
          %507 = vmatprep.mubr.bf16.mxu0 0
          %508 = vmatmul.mubr.bf16.gmra.mrb[0].mxu0 %v395
          %v509 = vpop.f32.mrb[0].mxu0
          %v510 = vadd.f32 0.0, %v509
          %v511 = vpop.f32.mrb[0].mxu0
          %v512 = vpop.f32.mrb[0].mxu0
          %v513 = vadd.f32 0.0, %v512
          %v514 = vpop.f32.mrb[0].mxu0
          %515 = vmatprep.mubr.bf16.mxu0 0
          %516 = vmatmul.mubr.bf16.gmra.mrb[0].mxu0 %v396
          %v517 = vpop.f32.mrb[0].mxu0
          %v518 = vadd.f32 0.0, %v517
          %v519 = vpop.f32.mrb[0].mxu0
          %v520 = vpop.f32.mrb[0].mxu0
          %v521 = vadd.f32 0.0, %v520
          %v522 = vpop.f32.mrb[0].mxu0
          %523 = vmatprep.mubr.bf16.mxu0 0
          %524 = vmatmul.mubr.bf16.gmra.mrb[0].mxu0 %v397
          %v525 = vpop.f32.mrb[0].mxu0
          %v526 = vadd.f32 0.0, %v525
          %v527 = vpop.f32.mrb[0].mxu0
          %v528 = vpop.f32.mrb[0].mxu0
          %v529 = vadd.f32 0.0, %v528
          %v530 = vpop.f32.mrb[0].mxu0
          %531 = vmatprep.mubr.bf16.mxu0 0
          %532 = vmatmul.mubr.bf16.gmra.mrb[0].mxu0 %v398
          %v533 = vpop.f32.mrb[0].mxu0
          %v534 = vadd.f32 0.0, %v533
          %v535 = vpop.f32.mrb[0].mxu0
          %v536 = vpop.f32.mrb[0].mxu0
          %v537 = vadd.f32 0.0, %v536
          %v538 = vpop.f32.mrb[0].mxu0
          %539 = vmatprep.mubr.bf16.mxu0 0
          %540 = vmatmul.mubr.bf16.gmra.mrb[0].mxu0 %v399
          %v541 = vpop.f32.mrb[0].mxu0
          %v542 = vadd.f32 0.0, %v541
          %v543 = vpop.f32.mrb[0].mxu0
          %v544 = vpop.f32.mrb[0].mxu0
          %v545 = vadd.f32 0.0, %v544
          %v546 = vpop.f32.mrb[0].mxu0
          %547 = vmatprep.mubr.bf16.mxu0 0
          %548 = vmatmul.mubr.bf16.gmra.mrb[0].mxu0 %v400
          %v549 = vpop.f32.mrb[0].mxu0
          %v550 = vadd.f32 0.0, %v549
          %v551 = vpop.f32.mrb[0].mxu0
          %v552 = vpop.f32.mrb[0].mxu0
          %v553 = vadd.f32 0.0, %v552
          %v554 = vpop.f32.mrb[0].mxu0
          %555 = vmatprep.mubr.bf16.mxu0 0
          %556 = vmatmul.mubr.bf16.gmra.mrb[0].mxu0 %v401
          %v557 = vpop.f32.mrb[0].mxu0
          %v558 = vadd.f32 0.0, %v557
          %v559 = vpop.f32.mrb[0].mxu0
          %v560 = vpop.f32.mrb[0].mxu0
          %v561 = vadd.f32 0.0, %v560
          %v562 = vpop.f32.mrb[0].mxu0
          %563 = vmatprep.mubr.bf16.mxu0 0
          %564 = vmatmul.mubr.bf16.gmra.mrb[0].mxu0 %v402
          %v565 = vpop.f32.mrb[0].mxu0
          %v566 = vadd.f32 0.0, %v565
          %v567 = vpop.f32.mrb[0].mxu0
          %v568 = vpop.f32.mrb[0].mxu0
          %v569 = vadd.f32 0.0, %v568
          %v570 = vpop.f32.mrb[0].mxu0
          %571 = vmatprep.mubr.bf16.mxu0 0
          %572 = vmatmul.mubr.bf16.gmra.mrb[0].mxu0 %v403
          %v573 = vpop.f32.mrb[0].mxu0
          %v574 = vadd.f32 0.0, %v573
          %v575 = vpop.f32.mrb[0].mxu0
          %v576 = vpop.f32.mrb[0].mxu0
          %v577 = vadd.f32 0.0, %v576
          %v578 = vpop.f32.mrb[0].mxu0
          %579 = vmatprep.mubr.bf16.mxu0 0
          %580 = vmatmul.mubr.bf16.gmra.mrb[0].mxu0 %v404
          %v581 = vpop.f32.mrb[0].mxu0
          %v582 = vadd.f32 0.0, %v581
          %v583 = vpop.f32.mrb[0].mxu0
          %v584 = vpop.f32.mrb[0].mxu0
          %v585 = vadd.f32 0.0, %v584
          %v586 = vpop.f32.mrb[0].mxu0
          %587 = vmatprep.mubr.bf16.mxu0 0
          %588 = vmatmul.mubr.bf16.gmra.mrb[0].mxu0 %v405
          %v589 = vpop.f32.mrb[0].mxu0
          %v590 = vadd.f32 0.0, %v589
          %v591 = vpop.f32.mrb[0].mxu0
          %v592 = vpop.f32.mrb[0].mxu0
          %v593 = vadd.f32 0.0, %v592
          %v594 = vpop.f32.mrb[0].mxu0
          %595 = vmatprep.mubr.bf16.mxu0 0
          %596 = vmatmul.mubr.bf16.gmra.mrb[0].mxu0 %v406
          %v597 = vpop.f32.mrb[0].mxu0
          %v598 = vadd.f32 0.0, %v597
          %v599 = vpop.f32.mrb[0].mxu0
          %v600 = vpop.f32.mrb[0].mxu0
          %v601 = vadd.f32 0.0, %v600
          %v602 = vpop.f32.mrb[0].mxu0
          %603 = vmatprep.mubr.bf16.mxu0 0
          %604 = vmatmul.mubr.bf16.gmra.mrb[0].mxu0 %v407
          %v605 = vpop.f32.mrb[0].mxu0
          %v606 = vadd.f32 0.0, %v605
          %v607 = vpop.f32.mrb[0].mxu0
          %v608 = vpop.f32.mrb[0].mxu0
          %v609 = vadd.f32 0.0, %v608
          %v610 = vpop.f32.mrb[0].mxu0
          %611 = vmatprep.mubr.bf16.mxu0 0
          %612 = vmatmul.mubr.bf16.gmra.mrb[0].mxu0 %v408
          %v613 = vpop.f32.mrb[0].mxu0
          %v614 = vadd.f32 0.0, %v613
          %v615 = vpop.f32.mrb[0].mxu0
          %v616 = vpop.f32.mrb[0].mxu0
          %v617 = vadd.f32 0.0, %v616
          %v618 = vpop.f32.mrb[0].mxu0
          %619 = vmatprep.mubr.bf16.mxu0 0
          %620 = vmatmul.mubr.bf16.gmra.mrb[0].mxu0 %v409
          %v621 = vpop.f32.mrb[0].mxu0
          %v622 = vadd.f32 0.0, %v621
          %v623 = vpop.f32.mrb[0].mxu0
          %v624 = vpop.f32.mrb[0].mxu0
          %v625 = vadd.f32 0.0, %v624
          %v626 = vpop.f32.mrb[0].mxu0
          %627 = vmatprep.mubr.bf16.mxu0 0
          %628 = vmatmul.mubr.bf16.gmra.mrb[0].mxu0 %v410
          %v629 = vpop.f32.mrb[0].mxu0
          %v630 = vadd.f32 0.0, %v629
          %v631 = vpop.f32.mrb[0].mxu0
          %v632 = vpop.f32.mrb[0].mxu0
          %v633 = vadd.f32 0.0, %v632
          %v634 = vpop.f32.mrb[0].mxu0
          %635 = vdwg.mxu0
          %v636 = vpack.c.bf16 %v513, %v510
          %v637 = vpack.c.bf16 %v521, %v518
          %v638 = vpack.c.bf16 %v529, %v526
          %v639 = vpack.c.bf16 %v537, %v534
          %v640 = vpack.c.bf16 %v545, %v542
          %v641 = vpack.c.bf16 %v553, %v550
          %v642 = vpack.c.bf16 %v561, %v558
          %v643 = vpack.c.bf16 %v569, %v566
          %v644 = vpack.c.bf16 %v577, %v574
          %v645 = vpack.c.bf16 %v585, %v582
          %v646 = vpack.c.bf16 %v593, %v590
          %v647 = vpack.c.bf16 %v601, %v598
          %v648 = vpack.c.bf16 %v609, %v606
          %v649 = vpack.c.bf16 %v617, %v614
          %v650 = vpack.c.bf16 %v625, %v622
          %v651 = vpack.c.bf16 %v633, %v630
          %652 = vst [vmem:[#allocation2] sm:$0xff] %v636
          %653 = vst [vmem:[#allocation2 + $0x8] sm:$0xff] %v637
          %654 = vst [vmem:[#allocation2 + $0x10] sm:$0xff] %v638
          %655 = vst [vmem:[#allocation2 + $0x18] sm:$0xff] %v639
          %656 = vst [vmem:[#allocation2 + $0x20] sm:$0xff] %v640
          %657 = vst [vmem:[#allocation2 + $0x28] sm:$0xff] %v641
          %658 = vst [vmem:[#allocation2 + $0x30] sm:$0xff] %v642
          %659 = vst [vmem:[#allocation2 + $0x38] sm:$0xff] %v643
          %660 = vst [vmem:[#allocation2 + $0x40] sm:$0xff] %v644
          %661 = vst [vmem:[#allocation2 + $0x48] sm:$0xff] %v645
          %662 = vst [vmem:[#allocation2 + $0x50] sm:$0xff] %v646
          %663 = vst [vmem:[#allocation2 + $0x58] sm:$0xff] %v647
          %664 = vst [vmem:[#allocation2 + $0x60] sm:$0xff] %v648
          %665 = vst [vmem:[#allocation2 + $0x68] sm:$0xff] %v649
          %666 = vst [vmem:[#allocation2 + $0x70] sm:$0xff] %v650
          %667 = vst [vmem:[#allocation2 + $0x78] sm:$0xff] %v651
          %668 = vst [vmem:[#allocation5] sm:$0xff] 0.0
          %669 = vst [vmem:[#allocation5 + $0x8] sm:$0xff] 0.0
          %670 = vst [vmem:[#allocation5 + $0x10] sm:$0xff] 0.0
          %671 = vst [vmem:[#allocation5 + $0x18] sm:$0xff] 0.0
          %672 = vst [vmem:[#allocation5 + $0x20] sm:$0xff] 0.0
          %673 = vst [vmem:[#allocation5 + $0x28] sm:$0xff] 0.0
          %674 = vst [vmem:[#allocation5 + $0x30] sm:$0xff] 0.0
          %675 = vst [vmem:[#allocation5 + $0x38] sm:$0xff] 0.0
          %676 = vst [vmem:[#allocation5 + $0x40] sm:$0xff] 0.0
          %677 = vst [vmem:[#allocation5 + $0x48] sm:$0xff] 0.0
          %678 = vst [vmem:[#allocation5 + $0x50] sm:$0xff] 0.0
          %679 = vst [vmem:[#allocation5 + $0x58] sm:$0xff] 0.0
          %680 = vst [vmem:[#allocation5 + $0x60] sm:$0xff] 0.0
          %681 = vst [vmem:[#allocation5 + $0x68] sm:$0xff] 0.0
          %682 = vst [vmem:[#allocation5 + $0x70] sm:$0xff] 0.0
          %683 = vst [vmem:[#allocation5 + $0x78] sm:$0xff] 0.0
          %684 = vst [vmem:[#allocation5 + $0x80] sm:$0xff] 0.0
          %685 = vst [vmem:[#allocation5 + $0x88] sm:$0xff] 0.0
          %686 = vst [vmem:[#allocation5 + $0x90] sm:$0xff] 0.0
          %687 = vst [vmem:[#allocation5 + $0x98] sm:$0xff] 0.0
          %688 = vst [vmem:[#allocation5 + $0xa0] sm:$0xff] 0.0
          %689 = vst [vmem:[#allocation5 + $0xa8] sm:$0xff] 0.0
          %690 = vst [vmem:[#allocation5 + $0xb0] sm:$0xff] 0.0
          %691 = vst [vmem:[#allocation5 + $0xb8] sm:$0xff] 0.0
          %692 = vst [vmem:[#allocation5 + $0xc0] sm:$0xff] 0.0
          %693 = vst [vmem:[#allocation5 + $0xc8] sm:$0xff] 0.0
          %694 = vst [vmem:[#allocation5 + $0xd0] sm:$0xff] 0.0
          %695 = vst [vmem:[#allocation5 + $0xd8] sm:$0xff] 0.0
          %696 = vst [vmem:[#allocation5 + $0xe0] sm:$0xff] 0.0
          %697 = vst [vmem:[#allocation5 + $0xe8] sm:$0xff] 0.0
          %698 = vst [vmem:[#allocation5 + $0xf0] sm:$0xff] 0.0
          %699 = vst [vmem:[#allocation5 + $0xf8] sm:$0xff] 0.0
          %vm700 = vcmask 7168
          %701 = vst.msk [vmem:[#allocation3] sm:$0xff] %vm700, -inf
          %702 = vst.msk [vmem:[#allocation3 + $0x8] sm:$0xff] %vm700, -inf
          %703 = vst.msk [vmem:[#allocation3 + $0x10] sm:$0xff] %vm700, -inf
          %704 = vst.msk [vmem:[#allocation3 + $0x18] sm:$0xff] %vm700, -inf
          %705 = vst.msk [vmem:[#allocation3 + $0x20] sm:$0xff] %vm700, -inf
          %706 = vst.msk [vmem:[#allocation3 + $0x28] sm:$0xff] %vm700, -inf
          %707 = vst.msk [vmem:[#allocation3 + $0x30] sm:$0xff] %vm700, -inf
          %708 = vst.msk [vmem:[#allocation3 + $0x38] sm:$0xff] %vm700, -inf
          %709 = vst.msk [vmem:[#allocation3 + $0x40] sm:$0xff] %vm700, -inf
          %710 = vst.msk [vmem:[#allocation3 + $0x48] sm:$0xff] %vm700, -inf
          %711 = vst.msk [vmem:[#allocation3 + $0x50] sm:$0xff] %vm700, -inf
          %712 = vst.msk [vmem:[#allocation3 + $0x58] sm:$0xff] %vm700, -inf
          %713 = vst.msk [vmem:[#allocation3 + $0x60] sm:$0xff] %vm700, -inf
          %714 = vst.msk [vmem:[#allocation3 + $0x68] sm:$0xff] %vm700, -inf
          %715 = vst.msk [vmem:[#allocation3 + $0x70] sm:$0xff] %vm700, -inf
          %716 = vst.msk [vmem:[#allocation3 + $0x78] sm:$0xff] %vm700, -inf
          %717 = vst.msk [vmem:[#allocation3 + $0x80] sm:$0xff] %vm700, -inf
          %718 = vst.msk [vmem:[#allocation3 + $0x88] sm:$0xff] %vm700, -inf
          %719 = vst.msk [vmem:[#allocation3 + $0x90] sm:$0xff] %vm700, -inf
          %720 = vst.msk [vmem:[#allocation3 + $0x98] sm:$0xff] %vm700, -inf
          %721 = vst.msk [vmem:[#allocation3 + $0xa0] sm:$0xff] %vm700, -inf
          %722 = vst.msk [vmem:[#allocation3 + $0xa8] sm:$0xff] %vm700, -inf
          %723 = vst.msk [vmem:[#allocation3 + $0xb0] sm:$0xff] %vm700, -inf
          %724 = vst.msk [vmem:[#allocation3 + $0xb8] sm:$0xff] %vm700, -inf
          %725 = vst.msk [vmem:[#allocation3 + $0xc0] sm:$0xff] %vm700, -inf
          %726 = vst.msk [vmem:[#allocation3 + $0xc8] sm:$0xff] %vm700, -inf
          %727 = vst.msk [vmem:[#allocation3 + $0xd0] sm:$0xff] %vm700, -inf
          %728 = vst.msk [vmem:[#allocation3 + $0xd8] sm:$0xff] %vm700, -inf
          %729 = vst.msk [vmem:[#allocation3 + $0xe0] sm:$0xff] %vm700, -inf
          %730 = vst.msk [vmem:[#allocation3 + $0xe8] sm:$0xff] %vm700, -inf
          %731 = vst.msk [vmem:[#allocation3 + $0xf0] sm:$0xff] %vm700, -inf
          %732 = vst.msk [vmem:[#allocation3 + $0xf8] sm:$0xff] %vm700, -inf
          %733 = vst.msk [vmem:[#allocation4] sm:$0xff] %vm700, 0.0
          %734 = vst.msk [vmem:[#allocation4 + $0x8] sm:$0xff] %vm700, 0.0
          %735 = vst.msk [vmem:[#allocation4 + $0x10] sm:$0xff] %vm700, 0.0
          %736 = vst.msk [vmem:[#allocation4 + $0x18] sm:$0xff] %vm700, 0.0
          %737 = vst.msk [vmem:[#allocation4 + $0x20] sm:$0xff] %vm700, 0.0
          %738 = vst.msk [vmem:[#allocation4 + $0x28] sm:$0xff] %vm700, 0.0
          %739 = vst.msk [vmem:[#allocation4 + $0x30] sm:$0xff] %vm700, 0.0
          %740 = vst.msk [vmem:[#allocation4 + $0x38] sm:$0xff] %vm700, 0.0
          %741 = vst.msk [vmem:[#allocation4 + $0x40] sm:$0xff] %vm700, 0.0
          %742 = vst.msk [vmem:[#allocation4 + $0x48] sm:$0xff] %vm700, 0.0
          %743 = vst.msk [vmem:[#allocation4 + $0x50] sm:$0xff] %vm700, 0.0
          %744 = vst.msk [vmem:[#allocation4 + $0x58] sm:$0xff] %vm700, 0.0
          %745 = vst.msk [vmem:[#allocation4 + $0x60] sm:$0xff] %vm700, 0.0
          %746 = vst.msk [vmem:[#allocation4 + $0x68] sm:$0xff] %vm700, 0.0
          %747 = vst.msk [vmem:[#allocation4 + $0x70] sm:$0xff] %vm700, 0.0
          %748 = vst.msk [vmem:[#allocation4 + $0x78] sm:$0xff] %vm700, 0.0
          %749 = vst.msk [vmem:[#allocation4 + $0x80] sm:$0xff] %vm700, 0.0
          %750 = vst.msk [vmem:[#allocation4 + $0x88] sm:$0xff] %vm700, 0.0
          %751 = vst.msk [vmem:[#allocation4 + $0x90] sm:$0xff] %vm700, 0.0
          %752 = vst.msk [vmem:[#allocation4 + $0x98] sm:$0xff] %vm700, 0.0
          %753 = vst.msk [vmem:[#allocation4 + $0xa0] sm:$0xff] %vm700, 0.0
          %754 = vst.msk [vmem:[#allocation4 + $0xa8] sm:$0xff] %vm700, 0.0
          %755 = vst.msk [vmem:[#allocation4 + $0xb0] sm:$0xff] %vm700, 0.0
          %756 = vst.msk [vmem:[#allocation4 + $0xb8] sm:$0xff] %vm700, 0.0
          %757 = vst.msk [vmem:[#allocation4 + $0xc0] sm:$0xff] %vm700, 0.0
          %758 = vst.msk [vmem:[#allocation4 + $0xc8] sm:$0xff] %vm700, 0.0
          %759 = vst.msk [vmem:[#allocation4 + $0xd0] sm:$0xff] %vm700, 0.0
          %760 = vst.msk [vmem:[#allocation4 + $0xd8] sm:$0xff] %vm700, 0.0
          %761 = vst.msk [vmem:[#allocation4 + $0xe0] sm:$0xff] %vm700, 0.0
          %762 = vst.msk [vmem:[#allocation4 + $0xe8] sm:$0xff] %vm700, 0.0
          %763 = vst.msk [vmem:[#allocation4 + $0xf0] sm:$0xff] %vm700, 0.0
          %764 = vst.msk [vmem:[#allocation4 + $0xf8] sm:$0xff] %vm700, 0.0
        $region64: #{tpu_custom_call.1} parent=39 // pred_fallthru
          _
        %v765 = vld [vmem:[%s311] sm:$0xff]
        %v766 = vld [vmem:[%s311 + $0x8] sm:$0xff]
        %v767 = vld [vmem:[%s311 + $0x10] sm:$0xff]
        %v768 = vld [vmem:[%s311 + $0x18] sm:$0xff]
        %v769 = vld [vmem:[%s311 + $0x20] sm:$0xff]
        %v770 = vld [vmem:[%s311 + $0x28] sm:$0xff]
        %v771 = vld [vmem:[%s311 + $0x30] sm:$0xff]
        %v772 = vld [vmem:[%s311 + $0x38] sm:$0xff]
        %v773 = vld [vmem:[%s311 + $0x40] sm:$0xff]
        %v774 = vld [vmem:[%s311 + $0x48] sm:$0xff]
        %v775 = vld [vmem:[%s311 + $0x50] sm:$0xff]
        %v776 = vld [vmem:[%s311 + $0x58] sm:$0xff]
        %v777 = vld [vmem:[%s311 + $0x60] sm:$0xff]
        %v778 = vld [vmem:[%s311 + $0x68] sm:$0xff]
        %v779 = vld [vmem:[%s311 + $0x70] sm:$0xff]
        %v780 = vld [vmem:[%s311 + $0x78] sm:$0xff]
        %v781 = vld [vmem:[%s311 + $0x80] sm:$0xff]
        %v782 = vld [vmem:[%s311 + $0x88] sm:$0xff]
        %v783 = vld [vmem:[%s311 + $0x90] sm:$0xff]
        %v784 = vld [vmem:[%s311 + $0x98] sm:$0xff]
        %v785 = vld [vmem:[%s311 + $0xa0] sm:$0xff]
        %v786 = vld [vmem:[%s311 + $0xa8] sm:$0xff]
        %v787 = vld [vmem:[%s311 + $0xb0] sm:$0xff]
        %v788 = vld [vmem:[%s311 + $0xb8] sm:$0xff]
        %v789 = vld [vmem:[%s311 + $0xc0] sm:$0xff]
        %v790 = vld [vmem:[%s311 + $0xc8] sm:$0xff]
        %v791 = vld [vmem:[%s311 + $0xd0] sm:$0xff]
        %v792 = vld [vmem:[%s311 + $0xd8] sm:$0xff]
        %v793 = vld [vmem:[%s311 + $0xe0] sm:$0xff]
        %v794 = vld [vmem:[%s311 + $0xe8] sm:$0xff]
        %v795 = vld [vmem:[%s311 + $0xf0] sm:$0xff]
        %v796 = vld [vmem:[%s311 + $0xf8] sm:$0xff]
        %v797 = vpack.c.bf16 %v766, %v765
        %v798 = vpack.c.bf16 %v768, %v767
        %v799 = vpack.c.bf16 %v770, %v769
        %v800 = vpack.c.bf16 %v772, %v771
        %v801 = vpack.c.bf16 %v774, %v773
        %v802 = vpack.c.bf16 %v776, %v775
        %v803 = vpack.c.bf16 %v778, %v777
        %v804 = vpack.c.bf16 %v780, %v779
        %v805 = vpack.c.bf16 %v782, %v781
        %v806 = vpack.c.bf16 %v784, %v783
        %v807 = vpack.c.bf16 %v786, %v785
        %v808 = vpack.c.bf16 %v788, %v787
        %v809 = vpack.c.bf16 %v790, %v789
        %v810 = vpack.c.bf16 %v792, %v791
        %v811 = vpack.c.bf16 %v794, %v793
        %v812 = vpack.c.bf16 %v796, %v795
        %v813 = vld [vmem:[#allocation12] sm:$0xff]
        %v814 = vld [vmem:[#allocation12 + $0x8] sm:$0xff]
        %v815 = vld [vmem:[#allocation12 + $0x10] sm:$0xff]
        %v816 = vld [vmem:[#allocation12 + $0x18] sm:$0xff]
        %v817 = vld [vmem:[#allocation12 + $0x20] sm:$0xff]
        %v818 = vld [vmem:[#allocation12 + $0x28] sm:$0xff]
        %v819 = vld [vmem:[#allocation12 + $0x30] sm:$0xff]
        %v820 = vld [vmem:[#allocation12 + $0x38] sm:$0xff]
        %v821 = vld [vmem:[#allocation12 + $0x40] sm:$0xff]
        %v822 = vld [vmem:[#allocation12 + $0x48] sm:$0xff]
        %v823 = vld [vmem:[#allocation12 + $0x50] sm:$0xff]
        %v824 = vld [vmem:[#allocation12 + $0x58] sm:$0xff]
        %v825 = vld [vmem:[#allocation12 + $0x60] sm:$0xff]
        %v826 = vld [vmem:[#allocation12 + $0x68] sm:$0xff]
        %v827 = vld [vmem:[#allocation12 + $0x70] sm:$0xff]
        %v828 = vld [vmem:[#allocation12 + $0x78] sm:$0xff]
        %v845 = vunpack.c.l.b16 %v813
        %v846 = vunpack.c.h.b16 %v813
        %v847 = vunpack.c.l.b16 %v814
        %v848 = vunpack.c.h.b16 %v814
        %v849 = vunpack.c.l.b16 %v815
        %v850 = vunpack.c.h.b16 %v815
        %v851 = vunpack.c.l.b16 %v816
        %v852 = vunpack.c.h.b16 %v816
        %v853 = vunpack.c.l.b16 %v817
        %v854 = vunpack.c.h.b16 %v817
        %v855 = vunpack.c.l.b16 %v818
        %v856 = vunpack.c.h.b16 %v818
        %v857 = vunpack.c.l.b16 %v819
        %v858 = vunpack.c.h.b16 %v819
        %v859 = vunpack.c.l.b16 %v820
        %v860 = vunpack.c.h.b16 %v820
        %v861 = vunpack.c.l.b16 %v821
        %v862 = vunpack.c.h.b16 %v821
        %v863 = vunpack.c.l.b16 %v822
        %v864 = vunpack.c.h.b16 %v822
        %v865 = vunpack.c.l.b16 %v823
        %v866 = vunpack.c.h.b16 %v823
        %v867 = vunpack.c.l.b16 %v824
        %v868 = vunpack.c.h.b16 %v824
        %v869 = vunpack.c.l.b16 %v825
        %v870 = vunpack.c.h.b16 %v825
        %v871 = vunpack.c.l.b16 %v826
        %v872 = vunpack.c.h.b16 %v826
        %v873 = vunpack.c.l.b16 %v827
        %v874 = vunpack.c.h.b16 %v827
        %v875 = vunpack.c.l.b16 %v828
        %v876 = vunpack.c.h.b16 %v828
        %v877 = vpack.c.b16 %v847, %v845
        %v878 = vpack.c.b16 %v848, %v846
        %v879 = vpack.c.b16 %v851, %v849
        %v880 = vpack.c.b16 %v852, %v850
        %v881 = vpack.c.b16 %v855, %v853
        %v882 = vpack.c.b16 %v856, %v854
        %v883 = vpack.c.b16 %v859, %v857
        %v884 = vpack.c.b16 %v860, %v858
        %v885 = vpack.c.b16 %v863, %v861
        %v886 = vpack.c.b16 %v864, %v862
        %v887 = vpack.c.b16 %v867, %v865
        %v888 = vpack.c.b16 %v868, %v866
        %v889 = vpack.c.b16 %v871, %v869
        %v890 = vpack.c.b16 %v872, %v870
        %v891 = vpack.c.b16 %v875, %v873
        %v892 = vpack.c.b16 %v876, %v874
        %909 = vmatprep.subr.bf16.mxu0 %v878
        %910 = vmatpush1.bf16.msra.mxu0 %v877
        %911 = vmatprep.subr.bf16.mxu0 %v880
        %912 = vmatpush1.bf16.msra.mxu0 %v879
        %913 = vmatprep.subr.bf16.mxu0 %v882
        %914 = vmatpush1.bf16.msra.mxu0 %v881
        %915 = vmatprep.subr.bf16.mxu0 %v884
        %916 = vmatpush1.bf16.msra.mxu0 %v883
        %917 = vmatprep.subr.bf16.mxu0 %v886
        %918 = vmatpush1.bf16.msra.mxu0 %v885
        %919 = vmatprep.subr.bf16.mxu0 %v888
        %920 = vmatpush1.bf16.msra.mxu0 %v887
        %921 = vmatprep.subr.bf16.mxu0 %v890
        %922 = vmatpush1.bf16.msra.mxu0 %v889
        %923 = vmatprep.subr.bf16.mxu0 %v892
        %924 = vmatpush1.bf16.msra.mxu0 %v891
        %925 = vmatprep.subr.bf16.mxu0 0
        %926 = vmatpush1.bf16.msra.mxu0 0
        %927 = vmatprep.subr.bf16.mxu0 0
        %928 = vmatpush1.bf16.msra.mxu0 0
        %929 = vmatprep.subr.bf16.mxu0 0
        %930 = vmatpush1.bf16.msra.mxu0 0
        %931 = vmatprep.subr.bf16.mxu0 0
        %932 = vmatpush1.bf16.msra.mxu0 0
        %933 = vmatprep.subr.bf16.mxu0 0
        %934 = vmatpush1.bf16.msra.mxu0 0
        %935 = vmatprep.subr.bf16.mxu0 0
        %936 = vmatpush1.bf16.msra.mxu0 0
        %937 = vmatprep.subr.bf16.mxu0 0
        %938 = vmatpush1.bf16.msra.mxu0 0
        %939 = vmatprep.subr.bf16.mxu0 0
        %940 = vmatpush1.bf16.msra.mxu0 0
        %941 = vmatprep.mubr.bf16.mxu0 0
        %942 = vmatmul.mubr.bf16.gmra.mrb[0].mxu0 %v797
        %v943 = vpop.f32.mrb[0].mxu0
        %v944 = vadd.f32 0.0, %v943
        %v945 = vpop.f32.mrb[0].mxu0
        %v946 = vadd.f32 0.0, %v945
        %v947 = vpop.f32.mrb[0].mxu0
        %v948 = vadd.f32 0.0, %v947
        %v949 = vpop.f32.mrb[0].mxu0
        %v950 = vadd.f32 0.0, %v949
        %951 = vmatprep.mubr.bf16.mxu0 0
        %952 = vmatmul.mubr.bf16.gmra.mrb[0].mxu0 %v798
        %v953 = vpop.f32.mrb[0].mxu0
        %v954 = vadd.f32 0.0, %v953
        %v955 = vpop.f32.mrb[0].mxu0
        %v956 = vadd.f32 0.0, %v955
        %v957 = vpop.f32.mrb[0].mxu0
        %v958 = vadd.f32 0.0, %v957
        %v959 = vpop.f32.mrb[0].mxu0
        %v960 = vadd.f32 0.0, %v959
        %961 = vmatprep.mubr.bf16.mxu0 0
        %962 = vmatmul.mubr.bf16.gmra.mrb[0].mxu0 %v799
        %v963 = vpop.f32.mrb[0].mxu0
        %v964 = vadd.f32 0.0, %v963
        %v965 = vpop.f32.mrb[0].mxu0
        %v966 = vadd.f32 0.0, %v965
        %v967 = vpop.f32.mrb[0].mxu0
        %v968 = vadd.f32 0.0, %v967
        %v969 = vpop.f32.mrb[0].mxu0
        %v970 = vadd.f32 0.0, %v969
        %971 = vmatprep.mubr.bf16.mxu0 0
        %972 = vmatmul.mubr.bf16.gmra.mrb[0].mxu0 %v800
        %v973 = vpop.f32.mrb[0].mxu0
        %v974 = vadd.f32 0.0, %v973
        %v975 = vpop.f32.mrb[0].mxu0
        %v976 = vadd.f32 0.0, %v975
        %v977 = vpop.f32.mrb[0].mxu0
        %v978 = vadd.f32 0.0, %v977
        %v979 = vpop.f32.mrb[0].mxu0
        %v980 = vadd.f32 0.0, %v979
        %981 = vmatprep.mubr.bf16.mxu0 0
        %982 = vmatmul.mubr.bf16.gmra.mrb[0].mxu0 %v801
        %v983 = vpop.f32.mrb[0].mxu0
        %v984 = vadd.f32 0.0, %v983
        %v985 = vpop.f32.mrb[0].mxu0
        %v986 = vadd.f32 0.0, %v985
        %v987 = vpop.f32.mrb[0].mxu0
        %v988 = vadd.f32 0.0, %v987
        %v989 = vpop.f32.mrb[0].mxu0
        %v990 = vadd.f32 0.0, %v989
        %991 = vmatprep.mubr.bf16.mxu0 0
        %992 = vmatmul.mubr.bf16.gmra.mrb[0].mxu0 %v802
        %v993 = vpop.f32.mrb[0].mxu0
        %v994 = vadd.f32 0.0, %v993
        %v995 = vpop.f32.mrb[0].mxu0
        %v996 = vadd.f32 0.0, %v995
        %v997 = vpop.f32.mrb[0].mxu0
        %v998 = vadd.f32 0.0, %v997
        %v999 = vpop.f32.mrb[0].mxu0
        %v1000 = vadd.f32 0.0, %v999
        %1001 = vmatprep.mubr.bf16.mxu0 0
        %1002 = vmatmul.mubr.bf16.gmra.mrb[0].mxu0 %v803
        %v1003 = vpop.f32.mrb[0].mxu0
        %v1004 = vadd.f32 0.0, %v1003
        %v1005 = vpop.f32.mrb[0].mxu0
        %v1006 = vadd.f32 0.0, %v1005
        %v1007 = vpop.f32.mrb[0].mxu0
        %v1008 = vadd.f32 0.0, %v1007
        %v1009 = vpop.f32.mrb[0].mxu0
        %v1010 = vadd.f32 0.0, %v1009
        %1011 = vmatprep.mubr.bf16.mxu0 0
        %1012 = vmatmul.mubr.bf16.gmra.mrb[0].mxu0 %v804
        %v1013 = vpop.f32.mrb[0].mxu0
        %v1014 = vadd.f32 0.0, %v1013
        %v1015 = vpop.f32.mrb[0].mxu0
        %v1016 = vadd.f32 0.0, %v1015
        %v1017 = vpop.f32.mrb[0].mxu0
        %v1018 = vadd.f32 0.0, %v1017
        %v1019 = vpop.f32.mrb[0].mxu0
        %v1020 = vadd.f32 0.0, %v1019
        %1021 = vmatprep.mubr.bf16.mxu0 0
        %1022 = vmatmul.mubr.bf16.gmra.mrb[0].mxu0 %v805
        %v1023 = vpop.f32.mrb[0].mxu0
        %v1024 = vadd.f32 0.0, %v1023
        %v1025 = vpop.f32.mrb[0].mxu0
        %v1026 = vadd.f32 0.0, %v1025
        %v1027 = vpop.f32.mrb[0].mxu0
        %v1028 = vadd.f32 0.0, %v1027
        %v1029 = vpop.f32.mrb[0].mxu0
        %v1030 = vadd.f32 0.0, %v1029
        %1031 = vmatprep.mubr.bf16.mxu0 0
        %1032 = vmatmul.mubr.bf16.gmra.mrb[0].mxu0 %v806
        %v1033 = vpop.f32.mrb[0].mxu0
        %v1034 = vadd.f32 0.0, %v1033
        %v1035 = vpop.f32.mrb[0].mxu0
        %v1036 = vadd.f32 0.0, %v1035
        %v1037 = vpop.f32.mrb[0].mxu0
        %v1038 = vadd.f32 0.0, %v1037
        %v1039 = vpop.f32.mrb[0].mxu0
        %v1040 = vadd.f32 0.0, %v1039
        %1041 = vmatprep.mubr.bf16.mxu0 0
        %1042 = vmatmul.mubr.bf16.gmra.mrb[0].mxu0 %v807
        %v1043 = vpop.f32.mrb[0].mxu0
        %v1044 = vadd.f32 0.0, %v1043
        %v1045 = vpop.f32.mrb[0].mxu0
        %v1046 = vadd.f32 0.0, %v1045
        %v1047 = vpop.f32.mrb[0].mxu0
        %v1048 = vadd.f32 0.0, %v1047
        %v1049 = vpop.f32.mrb[0].mxu0
        %v1050 = vadd.f32 0.0, %v1049
        %1051 = vmatprep.mubr.bf16.mxu0 0
        %1052 = vmatmul.mubr.bf16.gmra.mrb[0].mxu0 %v808
        %v1053 = vpop.f32.mrb[0].mxu0
        %v1054 = vadd.f32 0.0, %v1053
        %v1055 = vpop.f32.mrb[0].mxu0
        %v1056 = vadd.f32 0.0, %v1055
        %v1057 = vpop.f32.mrb[0].mxu0
        %v1058 = vadd.f32 0.0, %v1057
        %v1059 = vpop.f32.mrb[0].mxu0
        %v1060 = vadd.f32 0.0, %v1059
        %1061 = vmatprep.mubr.bf16.mxu0 0
        %1062 = vmatmul.mubr.bf16.gmra.mrb[0].mxu0 %v809
        %v1063 = vpop.f32.mrb[0].mxu0
        %v1064 = vadd.f32 0.0, %v1063
        %v1065 = vpop.f32.mrb[0].mxu0
        %v1066 = vadd.f32 0.0, %v1065
        %v1067 = vpop.f32.mrb[0].mxu0
        %v1068 = vadd.f32 0.0, %v1067
        %v1069 = vpop.f32.mrb[0].mxu0
        %v1070 = vadd.f32 0.0, %v1069
        %1071 = vmatprep.mubr.bf16.mxu0 0
        %1072 = vmatmul.mubr.bf16.gmra.mrb[0].mxu0 %v810
        %v1073 = vpop.f32.mrb[0].mxu0
        %v1074 = vadd.f32 0.0, %v1073
        %v1075 = vpop.f32.mrb[0].mxu0
        %v1076 = vadd.f32 0.0, %v1075
        %v1077 = vpop.f32.mrb[0].mxu0
        %v1078 = vadd.f32 0.0, %v1077
        %v1079 = vpop.f32.mrb[0].mxu0
        %v1080 = vadd.f32 0.0, %v1079
        %1081 = vmatprep.mubr.bf16.mxu0 0
        %1082 = vmatmul.mubr.bf16.gmra.mrb[0].mxu0 %v811
        %v1083 = vpop.f32.mrb[0].mxu0
        %v1084 = vadd.f32 0.0, %v1083
        %v1085 = vpop.f32.mrb[0].mxu0
        %v1086 = vadd.f32 0.0, %v1085
        %v1087 = vpop.f32.mrb[0].mxu0
        %v1088 = vadd.f32 0.0, %v1087
        %v1089 = vpop.f32.mrb[0].mxu0
        %v1090 = vadd.f32 0.0, %v1089
        %1091 = vmatprep.mubr.bf16.mxu0 0
        %1092 = vmatmul.mubr.bf16.gmra.mrb[0].mxu0 %v812
        %v1093 = vpop.f32.mrb[0].mxu0
        %v1094 = vadd.f32 0.0, %v1093
        %v1095 = vpop.f32.mrb[0].mxu0
        %v1096 = vadd.f32 0.0, %v1095
        %v1097 = vpop.f32.mrb[0].mxu0
        %v1098 = vadd.f32 0.0, %v1097
        %v1099 = vpop.f32.mrb[0].mxu0
        %v1100 = vadd.f32 0.0, %v1099
        %1101 = vdwg.mxu0
        %v1102 = vpack.c.bf16 %v948, %v944
        %v1103 = vpack.c.bf16 %v958, %v954
        %v1104 = vpack.c.bf16 %v968, %v964
        %v1105 = vpack.c.bf16 %v978, %v974
        %v1106 = vpack.c.bf16 %v988, %v984
        %v1107 = vpack.c.bf16 %v998, %v994
        %v1108 = vpack.c.bf16 %v1008, %v1004
        %v1109 = vpack.c.bf16 %v1018, %v1014
        %v1110 = vpack.c.bf16 %v1028, %v1024
        %v1111 = vpack.c.bf16 %v1038, %v1034
        %v1112 = vpack.c.bf16 %v1048, %v1044
        %v1113 = vpack.c.bf16 %v1058, %v1054
        %v1114 = vpack.c.bf16 %v1068, %v1064
        %v1115 = vpack.c.bf16 %v1078, %v1074
        %v1116 = vpack.c.bf16 %v1088, %v1084
        %v1117 = vpack.c.bf16 %v1098, %v1094
        %v1118 = vpack.c.bf16 %v950, %v946
        %v1119 = vpack.c.bf16 %v960, %v956
        %v1120 = vpack.c.bf16 %v970, %v966
        %v1121 = vpack.c.bf16 %v980, %v976
        %v1122 = vpack.c.bf16 %v990, %v986
        %v1123 = vpack.c.bf16 %v1000, %v996
        %v1124 = vpack.c.bf16 %v1010, %v1006
        %v1125 = vpack.c.bf16 %v1020, %v1016
        %v1126 = vpack.c.bf16 %v1030, %v1026
        %v1127 = vpack.c.bf16 %v1040, %v1036
        %v1128 = vpack.c.bf16 %v1050, %v1046
        %v1129 = vpack.c.bf16 %v1060, %v1056
        %v1130 = vpack.c.bf16 %v1070, %v1066
        %v1131 = vpack.c.bf16 %v1080, %v1076
        %v1132 = vpack.c.bf16 %v1090, %v1086
        %v1133 = vpack.c.bf16 %v1100, %v1096
        %v1134 = vld [vmem:[#allocation2] sm:$0xff]
        %v1135 = vld [vmem:[#allocation2 + $0x8] sm:$0xff]
        %v1136 = vld [vmem:[#allocation2 + $0x10] sm:$0xff]
        %v1137 = vld [vmem:[#allocation2 + $0x18] sm:$0xff]
        %v1138 = vld [vmem:[#allocation2 + $0x20] sm:$0xff]
        %v1139 = vld [vmem:[#allocation2 + $0x28] sm:$0xff]
        %v1140 = vld [vmem:[#allocation2 + $0x30] sm:$0xff]
        %v1141 = vld [vmem:[#allocation2 + $0x38] sm:$0xff]
        %v1142 = vld [vmem:[#allocation2 + $0x40] sm:$0xff]
        %v1143 = vld [vmem:[#allocation2 + $0x48] sm:$0xff]
        %v1144 = vld [vmem:[#allocation2 + $0x50] sm:$0xff]
        %v1145 = vld [vmem:[#allocation2 + $0x58] sm:$0xff]
        %v1146 = vld [vmem:[#allocation2 + $0x60] sm:$0xff]
        %v1147 = vld [vmem:[#allocation2 + $0x68] sm:$0xff]
        %v1148 = vld [vmem:[#allocation2 + $0x70] sm:$0xff]
        %v1149 = vld [vmem:[#allocation2 + $0x78] sm:$0xff]
        %1150 = vmatprep.subr.bf16.mxu0 0
        %1151 = vmatpush1.bf16.xpose.msra.mxu0 %v1102
        %1152 = vmatprep.subr.bf16.mxu0 0
        %1153 = vmatpush1.bf16.xpose.msra.mxu0 %v1103
        %1154 = vmatprep.subr.bf16.mxu0 0
        %1155 = vmatpush1.bf16.xpose.msra.mxu0 %v1104
        %1156 = vmatprep.subr.bf16.mxu0 0
        %1157 = vmatpush1.bf16.xpose.msra.mxu0 %v1105
        %1158 = vmatprep.subr.bf16.mxu0 0
        %1159 = vmatpush1.bf16.xpose.msra.mxu0 %v1106
        %1160 = vmatprep.subr.bf16.mxu0 0
        %1161 = vmatpush1.bf16.xpose.msra.mxu0 %v1107
        %1162 = vmatprep.subr.bf16.mxu0 0
        %1163 = vmatpush1.bf16.xpose.msra.mxu0 %v1108
        %1164 = vmatprep.subr.bf16.mxu0 0
        %1165 = vmatpush1.bf16.xpose.msra.mxu0 %v1109
        %1166 = vmatprep.subr.bf16.mxu0 0
        %1167 = vmatpush1.bf16.xpose.msra.mxu0 %v1110
        %1168 = vmatprep.subr.bf16.mxu0 0
        %1169 = vmatpush1.bf16.xpose.msra.mxu0 %v1111
        %1170 = vmatprep.subr.bf16.mxu0 0
        %1171 = vmatpush1.bf16.xpose.msra.mxu0 %v1112
        %1172 = vmatprep.subr.bf16.mxu0 0
        %1173 = vmatpush1.bf16.xpose.msra.mxu0 %v1113
        %1174 = vmatprep.subr.bf16.mxu0 0
        %1175 = vmatpush1.bf16.xpose.msra.mxu0 %v1114
        %1176 = vmatprep.subr.bf16.mxu0 0
        %1177 = vmatpush1.bf16.xpose.msra.mxu0 %v1115
        %1178 = vmatprep.subr.bf16.mxu0 0
        %1179 = vmatpush1.bf16.xpose.msra.mxu0 %v1116
        %1180 = vmatprep.subr.bf16.mxu0 0
        %1181 = vmatpush1.bf16.xpose.msra.mxu0 %v1117
        %1182 = vmatprep.mubr.bf16.mxu0 0
        %1183 = vmatmul.mubr.bf16.gmra.mrb[0].mxu0 %v1134
        %v1184 = vpop.f32.mrb[0].mxu0
        %v1185 = vadd.f32 0.0, %v1184
        %v1186 = vpop.f32.mrb[0].mxu0
        %v1187 = vadd.f32 0.0, %v1186
        %v1188 = vpop.f32.mrb[0].mxu0
        %v1189 = vadd.f32 0.0, %v1188
        %v1190 = vpop.f32.mrb[0].mxu0
        %v1191 = vadd.f32 0.0, %v1190
        %1192 = vmatprep.mubr.bf16.mxu0 0
        %1193 = vmatmul.mubr.bf16.gmra.mrb[0].mxu0 %v1135
        %v1194 = vpop.f32.mrb[0].mxu0
        %v1195 = vadd.f32 0.0, %v1194
        %v1196 = vpop.f32.mrb[0].mxu0
        %v1197 = vadd.f32 0.0, %v1196
        %v1198 = vpop.f32.mrb[0].mxu0
        %v1199 = vadd.f32 0.0, %v1198
        %v1200 = vpop.f32.mrb[0].mxu0
        %v1201 = vadd.f32 0.0, %v1200
        %1202 = vmatprep.mubr.bf16.mxu0 0
        %1203 = vmatmul.mubr.bf16.gmra.mrb[0].mxu0 %v1136
        %v1204 = vpop.f32.mrb[0].mxu0
        %v1205 = vadd.f32 0.0, %v1204
        %v1206 = vpop.f32.mrb[0].mxu0
        %v1207 = vadd.f32 0.0, %v1206
        %v1208 = vpop.f32.mrb[0].mxu0
        %v1209 = vadd.f32 0.0, %v1208
        %v1210 = vpop.f32.mrb[0].mxu0
        %v1211 = vadd.f32 0.0, %v1210
        %1212 = vmatprep.mubr.bf16.mxu0 0
        %1213 = vmatmul.mubr.bf16.gmra.mrb[0].mxu0 %v1137
        %v1214 = vpop.f32.mrb[0].mxu0
        %v1215 = vadd.f32 0.0, %v1214
        %v1216 = vpop.f32.mrb[0].mxu0
        %v1217 = vadd.f32 0.0, %v1216
        %v1218 = vpop.f32.mrb[0].mxu0
        %v1219 = vadd.f32 0.0, %v1218
        %v1220 = vpop.f32.mrb[0].mxu0
        %v1221 = vadd.f32 0.0, %v1220
        %1222 = vmatprep.mubr.bf16.mxu0 0
        %1223 = vmatmul.mubr.bf16.gmra.mrb[0].mxu0 %v1138
        %v1224 = vpop.f32.mrb[0].mxu0
        %v1225 = vadd.f32 0.0, %v1224
        %v1226 = vpop.f32.mrb[0].mxu0
        %v1227 = vadd.f32 0.0, %v1226
        %v1228 = vpop.f32.mrb[0].mxu0
        %v1229 = vadd.f32 0.0, %v1228
        %v1230 = vpop.f32.mrb[0].mxu0
        %v1231 = vadd.f32 0.0, %v1230
        %1232 = vmatprep.mubr.bf16.mxu0 0
        %1233 = vmatmul.mubr.bf16.gmra.mrb[0].mxu0 %v1139
        %v1234 = vpop.f32.mrb[0].mxu0
        %v1235 = vadd.f32 0.0, %v1234
        %v1236 = vpop.f32.mrb[0].mxu0
        %v1237 = vadd.f32 0.0, %v1236
        %v1238 = vpop.f32.mrb[0].mxu0
        %v1239 = vadd.f32 0.0, %v1238
        %v1240 = vpop.f32.mrb[0].mxu0
        %v1241 = vadd.f32 0.0, %v1240
        %1242 = vmatprep.mubr.bf16.mxu0 0
        %1243 = vmatmul.mubr.bf16.gmra.mrb[0].mxu0 %v1140
        %v1244 = vpop.f32.mrb[0].mxu0
        %v1245 = vadd.f32 0.0, %v1244
        %v1246 = vpop.f32.mrb[0].mxu0
        %v1247 = vadd.f32 0.0, %v1246
        %v1248 = vpop.f32.mrb[0].mxu0
        %v1249 = vadd.f32 0.0, %v1248
        %v1250 = vpop.f32.mrb[0].mxu0
        %v1251 = vadd.f32 0.0, %v1250
        %1252 = vmatprep.mubr.bf16.mxu0 0
        %1253 = vmatmul.mubr.bf16.gmra.mrb[0].mxu0 %v1141
        %v1254 = vpop.f32.mrb[0].mxu0
        %v1255 = vadd.f32 0.0, %v1254
        %v1256 = vpop.f32.mrb[0].mxu0
        %v1257 = vadd.f32 0.0, %v1256
        %v1258 = vpop.f32.mrb[0].mxu0
        %v1259 = vadd.f32 0.0, %v1258
        %v1260 = vpop.f32.mrb[0].mxu0
        %v1261 = vadd.f32 0.0, %v1260
        %1262 = vmatprep.mubr.bf16.mxu0 0
        %1263 = vmatmul.mubr.bf16.gmra.mrb[0].mxu0 %v1142
        %v1264 = vpop.f32.mrb[0].mxu0
        %v1265 = vadd.f32 0.0, %v1264
        %v1266 = vpop.f32.mrb[0].mxu0
        %v1267 = vadd.f32 0.0, %v1266
        %v1268 = vpop.f32.mrb[0].mxu0
        %v1269 = vadd.f32 0.0, %v1268
        %v1270 = vpop.f32.mrb[0].mxu0
        %v1271 = vadd.f32 0.0, %v1270
        %1272 = vmatprep.mubr.bf16.mxu0 0
        %1273 = vmatmul.mubr.bf16.gmra.mrb[0].mxu0 %v1143
        %v1274 = vpop.f32.mrb[0].mxu0
        %v1275 = vadd.f32 0.0, %v1274
        %v1276 = vpop.f32.mrb[0].mxu0
        %v1277 = vadd.f32 0.0, %v1276
        %v1278 = vpop.f32.mrb[0].mxu0
        %v1279 = vadd.f32 0.0, %v1278
        %v1280 = vpop.f32.mrb[0].mxu0
        %v1281 = vadd.f32 0.0, %v1280
        %1282 = vmatprep.mubr.bf16.mxu0 0
        %1283 = vmatmul.mubr.bf16.gmra.mrb[0].mxu0 %v1144
        %v1284 = vpop.f32.mrb[0].mxu0
        %v1285 = vadd.f32 0.0, %v1284
        %v1286 = vpop.f32.mrb[0].mxu0
        %v1287 = vadd.f32 0.0, %v1286
        %v1288 = vpop.f32.mrb[0].mxu0
        %v1289 = vadd.f32 0.0, %v1288
        %v1290 = vpop.f32.mrb[0].mxu0
        %v1291 = vadd.f32 0.0, %v1290
        %1292 = vmatprep.mubr.bf16.mxu0 0
        %1293 = vmatmul.mubr.bf16.gmra.mrb[0].mxu0 %v1145
        %v1294 = vpop.f32.mrb[0].mxu0
        %v1295 = vadd.f32 0.0, %v1294
        %v1296 = vpop.f32.mrb[0].mxu0
        %v1297 = vadd.f32 0.0, %v1296
        %v1298 = vpop.f32.mrb[0].mxu0
        %v1299 = vadd.f32 0.0, %v1298
        %v1300 = vpop.f32.mrb[0].mxu0
        %v1301 = vadd.f32 0.0, %v1300
        %1302 = vmatprep.mubr.bf16.mxu0 0
        %1303 = vmatmul.mubr.bf16.gmra.mrb[0].mxu0 %v1146
        %v1304 = vpop.f32.mrb[0].mxu0
        %v1305 = vadd.f32 0.0, %v1304
        %v1306 = vpop.f32.mrb[0].mxu0
        %v1307 = vadd.f32 0.0, %v1306
        %v1308 = vpop.f32.mrb[0].mxu0
        %v1309 = vadd.f32 0.0, %v1308
        %v1310 = vpop.f32.mrb[0].mxu0
        %v1311 = vadd.f32 0.0, %v1310
        %1312 = vmatprep.mubr.bf16.mxu0 0
        %1313 = vmatmul.mubr.bf16.gmra.mrb[0].mxu0 %v1147
        %v1314 = vpop.f32.mrb[0].mxu0
        %v1315 = vadd.f32 0.0, %v1314
        %v1316 = vpop.f32.mrb[0].mxu0
        %v1317 = vadd.f32 0.0, %v1316
        %v1318 = vpop.f32.mrb[0].mxu0
        %v1319 = vadd.f32 0.0, %v1318
        %v1320 = vpop.f32.mrb[0].mxu0
        %v1321 = vadd.f32 0.0, %v1320
        %1322 = vmatprep.mubr.bf16.mxu0 0
        %1323 = vmatmul.mubr.bf16.gmra.mrb[0].mxu0 %v1148
        %v1324 = vpop.f32.mrb[0].mxu0
        %v1325 = vadd.f32 0.0, %v1324
        %v1326 = vpop.f32.mrb[0].mxu0
        %v1327 = vadd.f32 0.0, %v1326
        %v1328 = vpop.f32.mrb[0].mxu0
        %v1329 = vadd.f32 0.0, %v1328
        %v1330 = vpop.f32.mrb[0].mxu0
        %v1331 = vadd.f32 0.0, %v1330
        %1332 = vmatprep.mubr.bf16.mxu0 0
        %1333 = vmatmul.mubr.bf16.gmra.mrb[0].mxu0 %v1149
        %v1334 = vpop.f32.mrb[0].mxu0
        %v1335 = vadd.f32 0.0, %v1334
        %v1336 = vpop.f32.mrb[0].mxu0
        %v1337 = vadd.f32 0.0, %v1336
        %v1338 = vpop.f32.mrb[0].mxu0
        %v1339 = vadd.f32 0.0, %v1338
        %v1340 = vpop.f32.mrb[0].mxu0
        %v1341 = vadd.f32 0.0, %v1340
        %1342 = vdwg.mxu0
        %v1343 = vld [vmem:[#allocation3] sm:$0xff]
        %v1344 = vld [vmem:[#allocation3 + $0x8] sm:$0xff]
        %v1345 = vld [vmem:[#allocation3 + $0x10] sm:$0xff]
        %v1346 = vld [vmem:[#allocation3 + $0x18] sm:$0xff]
        %v1347 = vld [vmem:[#allocation3 + $0x20] sm:$0xff]
        %v1348 = vld [vmem:[#allocation3 + $0x28] sm:$0xff]
        %v1349 = vld [vmem:[#allocation3 + $0x30] sm:$0xff]
        %v1350 = vld [vmem:[#allocation3 + $0x38] sm:$0xff]
        %v1351 = vld [vmem:[#allocation3 + $0x40] sm:$0xff]
        %v1352 = vld [vmem:[#allocation3 + $0x48] sm:$0xff]
        %v1353 = vld [vmem:[#allocation3 + $0x50] sm:$0xff]
        %v1354 = vld [vmem:[#allocation3 + $0x58] sm:$0xff]
        %v1355 = vld [vmem:[#allocation3 + $0x60] sm:$0xff]
        %v1356 = vld [vmem:[#allocation3 + $0x68] sm:$0xff]
        %v1357 = vld [vmem:[#allocation3 + $0x70] sm:$0xff]
        %v1358 = vld [vmem:[#allocation3 + $0x78] sm:$0xff]
        %v1359 = vld [vmem:[#allocation3 + $0x80] sm:$0xff]
        %v1360 = vld [vmem:[#allocation3 + $0x88] sm:$0xff]
        %v1361 = vld [vmem:[#allocation3 + $0x90] sm:$0xff]
        %v1362 = vld [vmem:[#allocation3 + $0x98] sm:$0xff]
        %v1363 = vld [vmem:[#allocation3 + $0xa0] sm:$0xff]
        %v1364 = vld [vmem:[#allocation3 + $0xa8] sm:$0xff]
        %v1365 = vld [vmem:[#allocation3 + $0xb0] sm:$0xff]
        %v1366 = vld [vmem:[#allocation3 + $0xb8] sm:$0xff]
        %v1367 = vld [vmem:[#allocation3 + $0xc0] sm:$0xff]
        %v1368 = vld [vmem:[#allocation3 + $0xc8] sm:$0xff]
        %v1369 = vld [vmem:[#allocation3 + $0xd0] sm:$0xff]
        %v1370 = vld [vmem:[#allocation3 + $0xd8] sm:$0xff]
        %v1371 = vld [vmem:[#allocation3 + $0xe0] sm:$0xff]
        %v1372 = vld [vmem:[#allocation3 + $0xe8] sm:$0xff]
        %v1373 = vld [vmem:[#allocation3 + $0xf0] sm:$0xff]
        %v1374 = vld [vmem:[#allocation3 + $0xf8] sm:$0xff]
        %v1375 = vmax.f32 %v1185, %v1187
        %1376 = vmax.xlane.f32.xlu0 %v1375
        %v1377 = vpop.xlane.xlu0 %1376
        %v1378 = vmax.f32 %v1189, %v1191
        %1379 = vmax.xlane.f32.xlu0 %v1378
        %v1380 = vpop.xlane.xlu0 %1379
        %v1381 = vmax.f32 %v1195, %v1197
        %1382 = vmax.xlane.f32.xlu0 %v1381
        %v1383 = vpop.xlane.xlu0 %1382
        %v1384 = vmax.f32 %v1199, %v1201
        %1385 = vmax.xlane.f32.xlu0 %v1384
        %v1386 = vpop.xlane.xlu0 %1385
        %v1387 = vmax.f32 %v1205, %v1207
        %1388 = vmax.xlane.f32.xlu0 %v1387
        %v1389 = vpop.xlane.xlu0 %1388
        %v1390 = vmax.f32 %v1209, %v1211
        %1391 = vmax.xlane.f32.xlu0 %v1390
        %v1392 = vpop.xlane.xlu0 %1391
        %v1393 = vmax.f32 %v1215, %v1217
        %1394 = vmax.xlane.f32.xlu0 %v1393
        %v1395 = vpop.xlane.xlu0 %1394
        %v1396 = vmax.f32 %v1219, %v1221
        %1397 = vmax.xlane.f32.xlu0 %v1396
        %v1398 = vpop.xlane.xlu0 %1397
        %v1399 = vmax.f32 %v1225, %v1227
        %1400 = vmax.xlane.f32.xlu0 %v1399
        %v1401 = vpop.xlane.xlu0 %1400
        %v1402 = vmax.f32 %v1229, %v1231
        %1403 = vmax.xlane.f32.xlu0 %v1402
        %v1404 = vpop.xlane.xlu0 %1403
        %v1405 = vmax.f32 %v1235, %v1237
        %1406 = vmax.xlane.f32.xlu0 %v1405
        %v1407 = vpop.xlane.xlu0 %1406
        %v1408 = vmax.f32 %v1239, %v1241
        %1409 = vmax.xlane.f32.xlu0 %v1408
        %v1410 = vpop.xlane.xlu0 %1409
        %v1411 = vmax.f32 %v1245, %v1247
        %1412 = vmax.xlane.f32.xlu0 %v1411
        %v1413 = vpop.xlane.xlu0 %1412
        %v1414 = vmax.f32 %v1249, %v1251
        %1415 = vmax.xlane.f32.xlu0 %v1414
        %v1416 = vpop.xlane.xlu0 %1415
        %v1417 = vmax.f32 %v1255, %v1257
        %1418 = vmax.xlane.f32.xlu0 %v1417
        %v1419 = vpop.xlane.xlu0 %1418
        %v1420 = vmax.f32 %v1259, %v1261
        %1421 = vmax.xlane.f32.xlu0 %v1420
        %v1422 = vpop.xlane.xlu0 %1421
        %v1423 = vmax.f32 %v1265, %v1267
        %1424 = vmax.xlane.f32.xlu0 %v1423
        %v1425 = vpop.xlane.xlu0 %1424
        %v1426 = vmax.f32 %v1269, %v1271
        %1427 = vmax.xlane.f32.xlu0 %v1426
        %v1428 = vpop.xlane.xlu0 %1427
        %v1429 = vmax.f32 %v1275, %v1277
        %1430 = vmax.xlane.f32.xlu0 %v1429
        %v1431 = vpop.xlane.xlu0 %1430
        %v1432 = vmax.f32 %v1279, %v1281
        %1433 = vmax.xlane.f32.xlu0 %v1432
        %v1434 = vpop.xlane.xlu0 %1433
        %v1435 = vmax.f32 %v1285, %v1287
        %1436 = vmax.xlane.f32.xlu0 %v1435
        %v1437 = vpop.xlane.xlu0 %1436
        %v1438 = vmax.f32 %v1289, %v1291
        %1439 = vmax.xlane.f32.xlu0 %v1438
        %v1440 = vpop.xlane.xlu0 %1439
        %v1441 = vmax.f32 %v1295, %v1297
        %1442 = vmax.xlane.f32.xlu0 %v1441
        %v1443 = vpop.xlane.xlu0 %1442
        %v1444 = vmax.f32 %v1299, %v1301
        %1445 = vmax.xlane.f32.xlu0 %v1444
        %v1446 = vpop.xlane.xlu0 %1445
        %v1447 = vmax.f32 %v1305, %v1307
        %1448 = vmax.xlane.f32.xlu0 %v1447
        %v1449 = vpop.xlane.xlu0 %1448
        %v1450 = vmax.f32 %v1309, %v1311
        %1451 = vmax.xlane.f32.xlu0 %v1450
        %v1452 = vpop.xlane.xlu0 %1451
        %v1453 = vmax.f32 %v1315, %v1317
        %1454 = vmax.xlane.f32.xlu0 %v1453
        %v1455 = vpop.xlane.xlu0 %1454
        %v1456 = vmax.f32 %v1319, %v1321
        %1457 = vmax.xlane.f32.xlu0 %v1456
        %v1458 = vpop.xlane.xlu0 %1457
        %v1459 = vmax.f32 %v1325, %v1327
        %1460 = vmax.xlane.f32.xlu0 %v1459
        %v1461 = vpop.xlane.xlu0 %1460
        %v1462 = vmax.f32 %v1329, %v1331
        %1463 = vmax.xlane.f32.xlu0 %v1462
        %v1464 = vpop.xlane.xlu0 %1463
        %v1465 = vmax.f32 %v1335, %v1337
        %1466 = vmax.xlane.f32.xlu0 %v1465
        %v1467 = vpop.xlane.xlu0 %1466
        %v1468 = vmax.f32 %v1339, %v1341
        %1469 = vmax.xlane.f32.xlu0 %v1468
        %v1470 = vpop.xlane.xlu0 %1469
        %v1471 = vmax.f32 %v1343, %v1377
        %v1472 = vmax.f32 %v1344, %v1380
        %v1473 = vmax.f32 %v1345, %v1383
        %v1474 = vmax.f32 %v1346, %v1386
        %v1475 = vmax.f32 %v1347, %v1389
        %v1476 = vmax.f32 %v1348, %v1392
        %v1477 = vmax.f32 %v1349, %v1395
        %v1478 = vmax.f32 %v1350, %v1398
        %v1479 = vmax.f32 %v1351, %v1401
        %v1480 = vmax.f32 %v1352, %v1404
        %v1481 = vmax.f32 %v1353, %v1407
        %v1482 = vmax.f32 %v1354, %v1410
        %v1483 = vmax.f32 %v1355, %v1413
        %v1484 = vmax.f32 %v1356, %v1416
        %v1485 = vmax.f32 %v1357, %v1419
        %v1486 = vmax.f32 %v1358, %v1422
        %v1487 = vmax.f32 %v1359, %v1425
        %v1488 = vmax.f32 %v1360, %v1428
        %v1489 = vmax.f32 %v1361, %v1431
        %v1490 = vmax.f32 %v1362, %v1434
        %v1491 = vmax.f32 %v1363, %v1437
        %v1492 = vmax.f32 %v1364, %v1440
        %v1493 = vmax.f32 %v1365, %v1443
        %v1494 = vmax.f32 %v1366, %v1446
        %v1495 = vmax.f32 %v1367, %v1449
        %v1496 = vmax.f32 %v1368, %v1452
        %v1497 = vmax.f32 %v1369, %v1455
        %v1498 = vmax.f32 %v1370, %v1458
        %v1499 = vmax.f32 %v1371, %v1461
        %v1500 = vmax.f32 %v1372, %v1464
        %v1501 = vmax.f32 %v1373, %v1467
        %v1502 = vmax.f32 %v1374, %v1470
        %v1503 = vsub.f32 %v1343, %v1471
        %v1504 = vsub.f32 %v1344, %v1472
        %v1505 = vsub.f32 %v1345, %v1473
        %v1506 = vsub.f32 %v1346, %v1474
        %v1507 = vsub.f32 %v1347, %v1475
        %v1508 = vsub.f32 %v1348, %v1476
        %v1509 = vsub.f32 %v1349, %v1477
        %v1510 = vsub.f32 %v1350, %v1478
        %v1511 = vsub.f32 %v1351, %v1479
        %v1512 = vsub.f32 %v1352, %v1480
        %v1513 = vsub.f32 %v1353, %v1481
        %v1514 = vsub.f32 %v1354, %v1482
        %v1515 = vsub.f32 %v1355, %v1483
        %v1516 = vsub.f32 %v1356, %v1484
        %v1517 = vsub.f32 %v1357, %v1485
        %v1518 = vsub.f32 %v1358, %v1486
        %v1519 = vsub.f32 %v1359, %v1487
        %v1520 = vsub.f32 %v1360, %v1488
        %v1521 = vsub.f32 %v1361, %v1489
        %v1522 = vsub.f32 %v1362, %v1490
        %v1523 = vsub.f32 %v1363, %v1491
        %v1524 = vsub.f32 %v1364, %v1492
        %v1525 = vsub.f32 %v1365, %v1493
        %v1526 = vsub.f32 %v1366, %v1494
        %v1527 = vsub.f32 %v1367, %v1495
        %v1528 = vsub.f32 %v1368, %v1496
        %v1529 = vsub.f32 %v1369, %v1497
        %v1530 = vsub.f32 %v1370, %v1498
        %v1531 = vsub.f32 %v1371, %v1499
        %v1532 = vsub.f32 %v1372, %v1500
        %v1533 = vsub.f32 %v1373, %v1501
        %v1534 = vsub.f32 %v1374, %v1502
        %v1535 = vmul.f32 %v1503, 1.442695
        %v1536 = vpow.pop %v1535
        %v1537 = vmul.f32 %v1504, 1.442695
        %v1538 = vpow.pop %v1537
        %v1539 = vmul.f32 %v1505, 1.442695
        %v1540 = vpow.pop %v1539
        %v1541 = vmul.f32 %v1506, 1.442695
        %v1542 = vpow.pop %v1541
        %v1543 = vmul.f32 %v1507, 1.442695
        %v1544 = vpow.pop %v1543
        %v1545 = vmul.f32 %v1508, 1.442695
        %v1546 = vpow.pop %v1545
        %v1547 = vmul.f32 %v1509, 1.442695
        %v1548 = vpow.pop %v1547
        %v1549 = vmul.f32 %v1510, 1.442695
        %v1550 = vpow.pop %v1549
        %v1551 = vmul.f32 %v1511, 1.442695
        %v1552 = vpow.pop %v1551
        %v1553 = vmul.f32 %v1512, 1.442695
        %v1554 = vpow.pop %v1553
        %v1555 = vmul.f32 %v1513, 1.442695
        %v1556 = vpow.pop %v1555
        %v1557 = vmul.f32 %v1514, 1.442695
        %v1558 = vpow.pop %v1557
        %v1559 = vmul.f32 %v1515, 1.442695
        %v1560 = vpow.pop %v1559
        %v1561 = vmul.f32 %v1516, 1.442695
        %v1562 = vpow.pop %v1561
        %v1563 = vmul.f32 %v1517, 1.442695
        %v1564 = vpow.pop %v1563
        %v1565 = vmul.f32 %v1518, 1.442695
        %v1566 = vpow.pop %v1565
        %v1567 = vmul.f32 %v1519, 1.442695
        %v1568 = vpow.pop %v1567
        %v1569 = vmul.f32 %v1520, 1.442695
        %v1570 = vpow.pop %v1569
        %v1571 = vmul.f32 %v1521, 1.442695
        %v1572 = vpow.pop %v1571
        %v1573 = vmul.f32 %v1522, 1.442695
        %v1574 = vpow.pop %v1573
        %v1575 = vmul.f32 %v1523, 1.442695
        %v1576 = vpow.pop %v1575
        %v1577 = vmul.f32 %v1524, 1.442695
        %v1578 = vpow.pop %v1577
        %v1579 = vmul.f32 %v1525, 1.442695
        %v1580 = vpow.pop %v1579
        %v1581 = vmul.f32 %v1526, 1.442695
        %v1582 = vpow.pop %v1581
        %v1583 = vmul.f32 %v1527, 1.442695
        %v1584 = vpow.pop %v1583
        %v1585 = vmul.f32 %v1528, 1.442695
        %v1586 = vpow.pop %v1585
        %v1587 = vmul.f32 %v1529, 1.442695
        %v1588 = vpow.pop %v1587
        %v1589 = vmul.f32 %v1530, 1.442695
        %v1590 = vpow.pop %v1589
        %v1591 = vmul.f32 %v1531, 1.442695
        %v1592 = vpow.pop %v1591
        %v1593 = vmul.f32 %v1532, 1.442695
        %v1594 = vpow.pop %v1593
        %v1595 = vmul.f32 %v1533, 1.442695
        %v1596 = vpow.pop %v1595
        %v1597 = vmul.f32 %v1534, 1.442695
        %v1598 = vpow.pop %v1597
        %1600 = vset.pattern.permute.xlu0 0
        %1601 = vperm.xlu0 %1600, %v1471
        %v1602 = vpop.permute.xlu0 %1601
        %1605 = vset.pattern.permute.xlu0 0
        %1606 = vperm.xlu0 %1605, %v1472
        %v1607 = vpop.permute.xlu0 %1606
        %1610 = vset.pattern.permute.xlu0 0
        %1611 = vperm.xlu0 %1610, %v1473
        %v1612 = vpop.permute.xlu0 %1611
        %1615 = vset.pattern.permute.xlu0 0
        %1616 = vperm.xlu0 %1615, %v1474
        %v1617 = vpop.permute.xlu0 %1616
        %1620 = vset.pattern.permute.xlu0 0
        %1621 = vperm.xlu0 %1620, %v1475
        %v1622 = vpop.permute.xlu0 %1621
        %1625 = vset.pattern.permute.xlu0 0
        %1626 = vperm.xlu0 %1625, %v1476
        %v1627 = vpop.permute.xlu0 %1626
        %1630 = vset.pattern.permute.xlu0 0
        %1631 = vperm.xlu0 %1630, %v1477
        %v1632 = vpop.permute.xlu0 %1631
        %1635 = vset.pattern.permute.xlu0 0
        %1636 = vperm.xlu0 %1635, %v1478
        %v1637 = vpop.permute.xlu0 %1636
        %1640 = vset.pattern.permute.xlu0 0
        %1641 = vperm.xlu0 %1640, %v1479
        %v1642 = vpop.permute.xlu0 %1641
        %1645 = vset.pattern.permute.xlu0 0
        %1646 = vperm.xlu0 %1645, %v1480
        %v1647 = vpop.permute.xlu0 %1646
        %1650 = vset.pattern.permute.xlu0 0
        %1651 = vperm.xlu0 %1650, %v1481
        %v1652 = vpop.permute.xlu0 %1651
        %1655 = vset.pattern.permute.xlu0 0
        %1656 = vperm.xlu0 %1655, %v1482
        %v1657 = vpop.permute.xlu0 %1656
        %1660 = vset.pattern.permute.xlu0 0
        %1661 = vperm.xlu0 %1660, %v1483
        %v1662 = vpop.permute.xlu0 %1661
        %1665 = vset.pattern.permute.xlu0 0
        %1666 = vperm.xlu0 %1665, %v1484
        %v1667 = vpop.permute.xlu0 %1666
        %1670 = vset.pattern.permute.xlu0 0
        %1671 = vperm.xlu0 %1670, %v1485
        %v1672 = vpop.permute.xlu0 %1671
        %1675 = vset.pattern.permute.xlu0 0
        %1676 = vperm.xlu0 %1675, %v1486
        %v1677 = vpop.permute.xlu0 %1676
        %1680 = vset.pattern.permute.xlu0 0
        %1681 = vperm.xlu0 %1680, %v1487
        %v1682 = vpop.permute.xlu0 %1681
        %1685 = vset.pattern.permute.xlu0 0
        %1686 = vperm.xlu0 %1685, %v1488
        %v1687 = vpop.permute.xlu0 %1686
        %1690 = vset.pattern.permute.xlu0 0
        %1691 = vperm.xlu0 %1690, %v1489
        %v1692 = vpop.permute.xlu0 %1691
        %1695 = vset.pattern.permute.xlu0 0
        %1696 = vperm.xlu0 %1695, %v1490
        %v1697 = vpop.permute.xlu0 %1696
        %1700 = vset.pattern.permute.xlu0 0
        %1701 = vperm.xlu0 %1700, %v1491
        %v1702 = vpop.permute.xlu0 %1701
        %1705 = vset.pattern.permute.xlu0 0
        %1706 = vperm.xlu0 %1705, %v1492
        %v1707 = vpop.permute.xlu0 %1706
        %1710 = vset.pattern.permute.xlu0 0
        %1711 = vperm.xlu0 %1710, %v1493
        %v1712 = vpop.permute.xlu0 %1711
        %1715 = vset.pattern.permute.xlu0 0
        %1716 = vperm.xlu0 %1715, %v1494
        %v1717 = vpop.permute.xlu0 %1716
        %1720 = vset.pattern.permute.xlu0 0
        %1721 = vperm.xlu0 %1720, %v1495
        %v1722 = vpop.permute.xlu0 %1721
        %1725 = vset.pattern.permute.xlu0 0
        %1726 = vperm.xlu0 %1725, %v1496
        %v1727 = vpop.permute.xlu0 %1726
        %1730 = vset.pattern.permute.xlu0 0
        %1731 = vperm.xlu0 %1730, %v1497
        %v1732 = vpop.permute.xlu0 %1731
        %1735 = vset.pattern.permute.xlu0 0
        %1736 = vperm.xlu0 %1735, %v1498
        %v1737 = vpop.permute.xlu0 %1736
        %1740 = vset.pattern.permute.xlu0 0
        %1741 = vperm.xlu0 %1740, %v1499
        %v1742 = vpop.permute.xlu0 %1741
        %1745 = vset.pattern.permute.xlu0 0
        %1746 = vperm.xlu0 %1745, %v1500
        %v1747 = vpop.permute.xlu0 %1746
        %1750 = vset.pattern.permute.xlu0 0
        %1751 = vperm.xlu0 %1750, %v1501
        %v1752 = vpop.permute.xlu0 %1751
        %1755 = vset.pattern.permute.xlu0 0
        %1756 = vperm.xlu0 %1755, %v1502
        %v1757 = vpop.permute.xlu0 %1756
        %v1759 = vsub.f32 %v1185, %v1602
        %v1760 = vsub.f32 %v1187, %v1602
        %v1761 = vsub.f32 %v1189, %v1607
        %v1762 = vsub.f32 %v1191, %v1607
        %v1763 = vsub.f32 %v1195, %v1612
        %v1764 = vsub.f32 %v1197, %v1612
        %v1765 = vsub.f32 %v1199, %v1617
        %v1766 = vsub.f32 %v1201, %v1617
        %v1767 = vsub.f32 %v1205, %v1622
        %v1768 = vsub.f32 %v1207, %v1622
        %v1769 = vsub.f32 %v1209, %v1627
        %v1770 = vsub.f32 %v1211, %v1627
        %v1771 = vsub.f32 %v1215, %v1632
        %v1772 = vsub.f32 %v1217, %v1632
        %v1773 = vsub.f32 %v1219, %v1637
        %v1774 = vsub.f32 %v1221, %v1637
        %v1775 = vsub.f32 %v1225, %v1642
        %v1776 = vsub.f32 %v1227, %v1642
        %v1777 = vsub.f32 %v1229, %v1647
        %v1778 = vsub.f32 %v1231, %v1647
        %v1779 = vsub.f32 %v1235, %v1652
        %v1780 = vsub.f32 %v1237, %v1652
        %v1781 = vsub.f32 %v1239, %v1657
        %v1782 = vsub.f32 %v1241, %v1657
        %v1783 = vsub.f32 %v1245, %v1662
        %v1784 = vsub.f32 %v1247, %v1662
        %v1785 = vsub.f32 %v1249, %v1667
        %v1786 = vsub.f32 %v1251, %v1667
        %v1787 = vsub.f32 %v1255, %v1672
        %v1788 = vsub.f32 %v1257, %v1672
        %v1789 = vsub.f32 %v1259, %v1677
        %v1790 = vsub.f32 %v1261, %v1677
        %v1791 = vsub.f32 %v1265, %v1682
        %v1792 = vsub.f32 %v1267, %v1682
        %v1793 = vsub.f32 %v1269, %v1687
        %v1794 = vsub.f32 %v1271, %v1687
        %v1795 = vsub.f32 %v1275, %v1692
        %v1796 = vsub.f32 %v1277, %v1692
        %v1797 = vsub.f32 %v1279, %v1697
        %v1798 = vsub.f32 %v1281, %v1697
        %v1799 = vsub.f32 %v1285, %v1702
        %v1800 = vsub.f32 %v1287, %v1702
        %v1801 = vsub.f32 %v1289, %v1707
        %v1802 = vsub.f32 %v1291, %v1707
        %v1803 = vsub.f32 %v1295, %v1712
        %v1804 = vsub.f32 %v1297, %v1712
        %v1805 = vsub.f32 %v1299, %v1717
        %v1806 = vsub.f32 %v1301, %v1717
        %v1807 = vsub.f32 %v1305, %v1722
        %v1808 = vsub.f32 %v1307, %v1722
        %v1809 = vsub.f32 %v1309, %v1727
        %v1810 = vsub.f32 %v1311, %v1727
        %v1811 = vsub.f32 %v1315, %v1732
        %v1812 = vsub.f32 %v1317, %v1732
        %v1813 = vsub.f32 %v1319, %v1737
        %v1814 = vsub.f32 %v1321, %v1737
        %v1815 = vsub.f32 %v1325, %v1742
        %v1816 = vsub.f32 %v1327, %v1742
        %v1817 = vsub.f32 %v1329, %v1747
        %v1818 = vsub.f32 %v1331, %v1747
        %v1819 = vsub.f32 %v1335, %v1752
        %v1820 = vsub.f32 %v1337, %v1752
        %v1821 = vsub.f32 %v1339, %v1757
        %v1822 = vsub.f32 %v1341, %v1757
        %v1823 = vmul.f32 %v1759, 1.442695
        %v1824 = vpow.pop %v1823
        %v1825 = vmul.f32 %v1760, 1.442695
        %v1826 = vpow.pop %v1825
        %v1827 = vmul.f32 %v1761, 1.442695
        %v1828 = vpow.pop %v1827
        %v1829 = vmul.f32 %v1762, 1.442695
        %v1830 = vpow.pop %v1829
        %v1831 = vmul.f32 %v1763, 1.442695
        %v1832 = vpow.pop %v1831
        %v1833 = vmul.f32 %v1764, 1.442695
        %v1834 = vpow.pop %v1833
        %v1835 = vmul.f32 %v1765, 1.442695
        %v1836 = vpow.pop %v1835
        %v1837 = vmul.f32 %v1766, 1.442695
        %v1838 = vpow.pop %v1837
        %v1839 = vmul.f32 %v1767, 1.442695
        %v1840 = vpow.pop %v1839
        %v1841 = vmul.f32 %v1768, 1.442695
        %v1842 = vpow.pop %v1841
        %v1843 = vmul.f32 %v1769, 1.442695
        %v1844 = vpow.pop %v1843
        %v1845 = vmul.f32 %v1770, 1.442695
        %v1846 = vpow.pop %v1845
        %v1847 = vmul.f32 %v1771, 1.442695
        %v1848 = vpow.pop %v1847
        %v1849 = vmul.f32 %v1772, 1.442695
        %v1850 = vpow.pop %v1849
        %v1851 = vmul.f32 %v1773, 1.442695
        %v1852 = vpow.pop %v1851
        %v1853 = vmul.f32 %v1774, 1.442695
        %v1854 = vpow.pop %v1853
        %v1855 = vmul.f32 %v1775, 1.442695
        %v1856 = vpow.pop %v1855
        %v1857 = vmul.f32 %v1776, 1.442695
        %v1858 = vpow.pop %v1857
        %v1859 = vmul.f32 %v1777, 1.442695
        %v1860 = vpow.pop %v1859
        %v1861 = vmul.f32 %v1778, 1.442695
        %v1862 = vpow.pop %v1861
        %v1863 = vmul.f32 %v1779, 1.442695
        %v1864 = vpow.pop %v1863
        %v1865 = vmul.f32 %v1780, 1.442695
        %v1866 = vpow.pop %v1865
        %v1867 = vmul.f32 %v1781, 1.442695
        %v1868 = vpow.pop %v1867
        %v1869 = vmul.f32 %v1782, 1.442695
        %v1870 = vpow.pop %v1869
        %v1871 = vmul.f32 %v1783, 1.442695
        %v1872 = vpow.pop %v1871
        %v1873 = vmul.f32 %v1784, 1.442695
        %v1874 = vpow.pop %v1873
        %v1875 = vmul.f32 %v1785, 1.442695
        %v1876 = vpow.pop %v1875
        %v1877 = vmul.f32 %v1786, 1.442695
        %v1878 = vpow.pop %v1877
        %v1879 = vmul.f32 %v1787, 1.442695
        %v1880 = vpow.pop %v1879
        %v1881 = vmul.f32 %v1788, 1.442695
        %v1882 = vpow.pop %v1881
        %v1883 = vmul.f32 %v1789, 1.442695
        %v1884 = vpow.pop %v1883
        %v1885 = vmul.f32 %v1790, 1.442695
        %v1886 = vpow.pop %v1885
        %v1887 = vmul.f32 %v1791, 1.442695
        %v1888 = vpow.pop %v1887
        %v1889 = vmul.f32 %v1792, 1.442695
        %v1890 = vpow.pop %v1889
        %v1891 = vmul.f32 %v1793, 1.442695
        %v1892 = vpow.pop %v1891
        %v1893 = vmul.f32 %v1794, 1.442695
        %v1894 = vpow.pop %v1893
        %v1895 = vmul.f32 %v1795, 1.442695
        %v1896 = vpow.pop %v1895
        %v1897 = vmul.f32 %v1796, 1.442695
        %v1898 = vpow.pop %v1897
        %v1899 = vmul.f32 %v1797, 1.442695
        %v1900 = vpow.pop %v1899
        %v1901 = vmul.f32 %v1798, 1.442695
        %v1902 = vpow.pop %v1901
        %v1903 = vmul.f32 %v1799, 1.442695
        %v1904 = vpow.pop %v1903
        %v1905 = vmul.f32 %v1800, 1.442695
        %v1906 = vpow.pop %v1905
        %v1907 = vmul.f32 %v1801, 1.442695
        %v1908 = vpow.pop %v1907
        %v1909 = vmul.f32 %v1802, 1.442695
        %v1910 = vpow.pop %v1909
        %v1911 = vmul.f32 %v1803, 1.442695
        %v1912 = vpow.pop %v1911
        %v1913 = vmul.f32 %v1804, 1.442695
        %v1914 = vpow.pop %v1913
        %v1915 = vmul.f32 %v1805, 1.442695
        %v1916 = vpow.pop %v1915
        %v1917 = vmul.f32 %v1806, 1.442695
        %v1918 = vpow.pop %v1917
        %v1919 = vmul.f32 %v1807, 1.442695
        %v1920 = vpow.pop %v1919
        %v1921 = vmul.f32 %v1808, 1.442695
        %v1922 = vpow.pop %v1921
        %v1923 = vmul.f32 %v1809, 1.442695
        %v1924 = vpow.pop %v1923
        %v1925 = vmul.f32 %v1810, 1.442695
        %v1926 = vpow.pop %v1925
        %v1927 = vmul.f32 %v1811, 1.442695
        %v1928 = vpow.pop %v1927
        %v1929 = vmul.f32 %v1812, 1.442695
        %v1930 = vpow.pop %v1929
        %v1931 = vmul.f32 %v1813, 1.442695
        %v1932 = vpow.pop %v1931
        %v1933 = vmul.f32 %v1814, 1.442695
        %v1934 = vpow.pop %v1933
        %v1935 = vmul.f32 %v1815, 1.442695
        %v1936 = vpow.pop %v1935
        %v1937 = vmul.f32 %v1816, 1.442695
        %v1938 = vpow.pop %v1937
        %v1939 = vmul.f32 %v1817, 1.442695
        %v1940 = vpow.pop %v1939
        %v1941 = vmul.f32 %v1818, 1.442695
        %v1942 = vpow.pop %v1941
        %v1943 = vmul.f32 %v1819, 1.442695
        %v1944 = vpow.pop %v1943
        %v1945 = vmul.f32 %v1820, 1.442695
        %v1946 = vpow.pop %v1945
        %v1947 = vmul.f32 %v1821, 1.442695
        %v1948 = vpow.pop %v1947
        %v1949 = vmul.f32 %v1822, 1.442695
        %v1950 = vpow.pop %v1949
        %v1951 = vld [vmem:[#allocation4] sm:$0xff]
        %v1952 = vld [vmem:[#allocation4 + $0x8] sm:$0xff]
        %v1953 = vld [vmem:[#allocation4 + $0x10] sm:$0xff]
        %v1954 = vld [vmem:[#allocation4 + $0x18] sm:$0xff]
        %v1955 = vld [vmem:[#allocation4 + $0x20] sm:$0xff]
        %v1956 = vld [vmem:[#allocation4 + $0x28] sm:$0xff]
        %v1957 = vld [vmem:[#allocation4 + $0x30] sm:$0xff]
        %v1958 = vld [vmem:[#allocation4 + $0x38] sm:$0xff]
        %v1959 = vld [vmem:[#allocation4 + $0x40] sm:$0xff]
        %v1960 = vld [vmem:[#allocation4 + $0x48] sm:$0xff]
        %v1961 = vld [vmem:[#allocation4 + $0x50] sm:$0xff]
        %v1962 = vld [vmem:[#allocation4 + $0x58] sm:$0xff]
        %v1963 = vld [vmem:[#allocation4 + $0x60] sm:$0xff]
        %v1964 = vld [vmem:[#allocation4 + $0x68] sm:$0xff]
        %v1965 = vld [vmem:[#allocation4 + $0x70] sm:$0xff]
        %v1966 = vld [vmem:[#allocation4 + $0x78] sm:$0xff]
        %v1967 = vld [vmem:[#allocation4 + $0x80] sm:$0xff]
        %v1968 = vld [vmem:[#allocation4 + $0x88] sm:$0xff]
        %v1969 = vld [vmem:[#allocation4 + $0x90] sm:$0xff]
        %v1970 = vld [vmem:[#allocation4 + $0x98] sm:$0xff]
        %v1971 = vld [vmem:[#allocation4 + $0xa0] sm:$0xff]
        %v1972 = vld [vmem:[#allocation4 + $0xa8] sm:$0xff]
        %v1973 = vld [vmem:[#allocation4 + $0xb0] sm:$0xff]
        %v1974 = vld [vmem:[#allocation4 + $0xb8] sm:$0xff]
        %v1975 = vld [vmem:[#allocation4 + $0xc0] sm:$0xff]
        %v1976 = vld [vmem:[#allocation4 + $0xc8] sm:$0xff]
        %v1977 = vld [vmem:[#allocation4 + $0xd0] sm:$0xff]
        %v1978 = vld [vmem:[#allocation4 + $0xd8] sm:$0xff]
        %v1979 = vld [vmem:[#allocation4 + $0xe0] sm:$0xff]
        %v1980 = vld [vmem:[#allocation4 + $0xe8] sm:$0xff]
        %v1981 = vld [vmem:[#allocation4 + $0xf0] sm:$0xff]
        %v1982 = vld [vmem:[#allocation4 + $0xf8] sm:$0xff]
        %v1983 = vmul.f32 %v1536, %v1951
        %v1984 = vmul.f32 %v1538, %v1952
        %v1985 = vmul.f32 %v1540, %v1953
        %v1986 = vmul.f32 %v1542, %v1954
        %v1987 = vmul.f32 %v1544, %v1955
        %v1988 = vmul.f32 %v1546, %v1956
        %v1989 = vmul.f32 %v1548, %v1957
        %v1990 = vmul.f32 %v1550, %v1958
        %v1991 = vmul.f32 %v1552, %v1959
        %v1992 = vmul.f32 %v1554, %v1960
        %v1993 = vmul.f32 %v1556, %v1961
        %v1994 = vmul.f32 %v1558, %v1962
        %v1995 = vmul.f32 %v1560, %v1963
        %v1996 = vmul.f32 %v1562, %v1964
        %v1997 = vmul.f32 %v1564, %v1965
        %v1998 = vmul.f32 %v1566, %v1966
        %v1999 = vmul.f32 %v1568, %v1967
        %v2000 = vmul.f32 %v1570, %v1968
        %v2001 = vmul.f32 %v1572, %v1969
        %v2002 = vmul.f32 %v1574, %v1970
        %v2003 = vmul.f32 %v1576, %v1971
        %v2004 = vmul.f32 %v1578, %v1972
        %v2005 = vmul.f32 %v1580, %v1973
        %v2006 = vmul.f32 %v1582, %v1974
        %v2007 = vmul.f32 %v1584, %v1975
        %v2008 = vmul.f32 %v1586, %v1976
        %v2009 = vmul.f32 %v1588, %v1977
        %v2010 = vmul.f32 %v1590, %v1978
        %v2011 = vmul.f32 %v1592, %v1979
        %v2012 = vmul.f32 %v1594, %v1980
        %v2013 = vmul.f32 %v1596, %v1981
        %v2014 = vmul.f32 %v1598, %v1982
        %v2015 = vadd.f32 %v1824, %v1826
        %2016 = vadd.xlane.f32.xlu0 %v2015
        %v2017 = vpop.xlane.xlu0 %2016
        %v2018 = vadd.f32 %v1828, %v1830
        %2019 = vadd.xlane.f32.xlu0 %v2018
        %v2020 = vpop.xlane.xlu0 %2019
        %v2021 = vadd.f32 %v1832, %v1834
        %2022 = vadd.xlane.f32.xlu0 %v2021
        %v2023 = vpop.xlane.xlu0 %2022
        %v2024 = vadd.f32 %v1836, %v1838
        %2025 = vadd.xlane.f32.xlu0 %v2024
        %v2026 = vpop.xlane.xlu0 %2025
        %v2027 = vadd.f32 %v1840, %v1842
        %2028 = vadd.xlane.f32.xlu0 %v2027
        %v2029 = vpop.xlane.xlu0 %2028
        %v2030 = vadd.f32 %v1844, %v1846
        %2031 = vadd.xlane.f32.xlu0 %v2030
        %v2032 = vpop.xlane.xlu0 %2031
        %v2033 = vadd.f32 %v1848, %v1850
        %2034 = vadd.xlane.f32.xlu0 %v2033
        %v2035 = vpop.xlane.xlu0 %2034
        %v2036 = vadd.f32 %v1852, %v1854
        %2037 = vadd.xlane.f32.xlu0 %v2036
        %v2038 = vpop.xlane.xlu0 %2037
        %v2039 = vadd.f32 %v1856, %v1858
        %2040 = vadd.xlane.f32.xlu0 %v2039
        %v2041 = vpop.xlane.xlu0 %2040
        %v2042 = vadd.f32 %v1860, %v1862
        %2043 = vadd.xlane.f32.xlu0 %v2042
        %v2044 = vpop.xlane.xlu0 %2043
        %v2045 = vadd.f32 %v1864, %v1866
        %2046 = vadd.xlane.f32.xlu0 %v2045
        %v2047 = vpop.xlane.xlu0 %2046
        %v2048 = vadd.f32 %v1868, %v1870
        %2049 = vadd.xlane.f32.xlu0 %v2048
        %v2050 = vpop.xlane.xlu0 %2049
        %v2051 = vadd.f32 %v1872, %v1874
        %2052 = vadd.xlane.f32.xlu0 %v2051
        %v2053 = vpop.xlane.xlu0 %2052
        %v2054 = vadd.f32 %v1876, %v1878
        %2055 = vadd.xlane.f32.xlu0 %v2054
        %v2056 = vpop.xlane.xlu0 %2055
        %v2057 = vadd.f32 %v1880, %v1882
        %2058 = vadd.xlane.f32.xlu0 %v2057
        %v2059 = vpop.xlane.xlu0 %2058
        %v2060 = vadd.f32 %v1884, %v1886
        %2061 = vadd.xlane.f32.xlu0 %v2060
        %v2062 = vpop.xlane.xlu0 %2061
        %v2063 = vadd.f32 %v1888, %v1890
        %2064 = vadd.xlane.f32.xlu0 %v2063
        %v2065 = vpop.xlane.xlu0 %2064
        %v2066 = vadd.f32 %v1892, %v1894
        %2067 = vadd.xlane.f32.xlu0 %v2066
        %v2068 = vpop.xlane.xlu0 %2067
        %v2069 = vadd.f32 %v1896, %v1898
        %2070 = vadd.xlane.f32.xlu0 %v2069
        %v2071 = vpop.xlane.xlu0 %2070
        %v2072 = vadd.f32 %v1900, %v1902
        %2073 = vadd.xlane.f32.xlu0 %v2072
        %v2074 = vpop.xlane.xlu0 %2073
        %v2075 = vadd.f32 %v1904, %v1906
        %2076 = vadd.xlane.f32.xlu0 %v2075
        %v2077 = vpop.xlane.xlu0 %2076
        %v2078 = vadd.f32 %v1908, %v1910
        %2079 = vadd.xlane.f32.xlu0 %v2078
        %v2080 = vpop.xlane.xlu0 %2079
        %v2081 = vadd.f32 %v1912, %v1914
        %2082 = vadd.xlane.f32.xlu0 %v2081
        %v2083 = vpop.xlane.xlu0 %2082
        %v2084 = vadd.f32 %v1916, %v1918
        %2085 = vadd.xlane.f32.xlu0 %v2084
        %v2086 = vpop.xlane.xlu0 %2085
        %v2087 = vadd.f32 %v1920, %v1922
        %2088 = vadd.xlane.f32.xlu0 %v2087
        %v2089 = vpop.xlane.xlu0 %2088
        %v2090 = vadd.f32 %v1924, %v1926
        %2091 = vadd.xlane.f32.xlu0 %v2090
        %v2092 = vpop.xlane.xlu0 %2091
        %v2093 = vadd.f32 %v1928, %v1930
        %2094 = vadd.xlane.f32.xlu0 %v2093
        %v2095 = vpop.xlane.xlu0 %2094
        %v2096 = vadd.f32 %v1932, %v1934
        %2097 = vadd.xlane.f32.xlu0 %v2096
        %v2098 = vpop.xlane.xlu0 %2097
        %v2099 = vadd.f32 %v1936, %v1938
        %2100 = vadd.xlane.f32.xlu0 %v2099
        %v2101 = vpop.xlane.xlu0 %2100
        %v2102 = vadd.f32 %v1940, %v1942
        %2103 = vadd.xlane.f32.xlu0 %v2102
        %v2104 = vpop.xlane.xlu0 %2103
        %v2105 = vadd.f32 %v1944, %v1946
        %2106 = vadd.xlane.f32.xlu0 %v2105
        %v2107 = vpop.xlane.xlu0 %2106
        %v2108 = vadd.f32 %v1948, %v1950
        %2109 = vadd.xlane.f32.xlu0 %v2108
        %v2110 = vpop.xlane.xlu0 %2109
        %v2111 = vadd.f32 %v1983, %v2017
        %v2112 = vadd.f32 %v1984, %v2020
        %v2113 = vadd.f32 %v1985, %v2023
        %v2114 = vadd.f32 %v1986, %v2026
        %v2115 = vadd.f32 %v1987, %v2029
        %v2116 = vadd.f32 %v1988, %v2032
        %v2117 = vadd.f32 %v1989, %v2035
        %v2118 = vadd.f32 %v1990, %v2038
        %v2119 = vadd.f32 %v1991, %v2041
        %v2120 = vadd.f32 %v1992, %v2044
        %v2121 = vadd.f32 %v1993, %v2047
        %v2122 = vadd.f32 %v1994, %v2050
        %v2123 = vadd.f32 %v1995, %v2053
        %v2124 = vadd.f32 %v1996, %v2056
        %v2125 = vadd.f32 %v1997, %v2059
        %v2126 = vadd.f32 %v1998, %v2062
        %v2127 = vadd.f32 %v1999, %v2065
        %v2128 = vadd.f32 %v2000, %v2068
        %v2129 = vadd.f32 %v2001, %v2071
        %v2130 = vadd.f32 %v2002, %v2074
        %v2131 = vadd.f32 %v2003, %v2077
        %v2132 = vadd.f32 %v2004, %v2080
        %v2133 = vadd.f32 %v2005, %v2083
        %v2134 = vadd.f32 %v2006, %v2086
        %v2135 = vadd.f32 %v2007, %v2089
        %v2136 = vadd.f32 %v2008, %v2092
        %v2137 = vadd.f32 %v2009, %v2095
        %v2138 = vadd.f32 %v2010, %v2098
        %v2139 = vadd.f32 %v2011, %v2101
        %v2140 = vadd.f32 %v2012, %v2104
        %v2141 = vadd.f32 %v2013, %v2107
        %v2142 = vadd.f32 %v2014, %v2110
        %vm2143 = vcmask 7168
        %2144 = vst.msk [vmem:[#allocation4] sm:$0xff] %vm2143, %v2111
        %2145 = vst.msk [vmem:[#allocation4 + $0x8] sm:$0xff] %vm2143, %v2112
        %2146 = vst.msk [vmem:[#allocation4 + $0x10] sm:$0xff] %vm2143, %v2113
        %2147 = vst.msk [vmem:[#allocation4 + $0x18] sm:$0xff] %vm2143, %v2114
        %2148 = vst.msk [vmem:[#allocation4 + $0x20] sm:$0xff] %vm2143, %v2115
        %2149 = vst.msk [vmem:[#allocation4 + $0x28] sm:$0xff] %vm2143, %v2116
        %2150 = vst.msk [vmem:[#allocation4 + $0x30] sm:$0xff] %vm2143, %v2117
        %2151 = vst.msk [vmem:[#allocation4 + $0x38] sm:$0xff] %vm2143, %v2118
        %2152 = vst.msk [vmem:[#allocation4 + $0x40] sm:$0xff] %vm2143, %v2119
        %2153 = vst.msk [vmem:[#allocation4 + $0x48] sm:$0xff] %vm2143, %v2120
        %2154 = vst.msk [vmem:[#allocation4 + $0x50] sm:$0xff] %vm2143, %v2121
        %2155 = vst.msk [vmem:[#allocation4 + $0x58] sm:$0xff] %vm2143, %v2122
        %2156 = vst.msk [vmem:[#allocation4 + $0x60] sm:$0xff] %vm2143, %v2123
        %2157 = vst.msk [vmem:[#allocation4 + $0x68] sm:$0xff] %vm2143, %v2124
        %2158 = vst.msk [vmem:[#allocation4 + $0x70] sm:$0xff] %vm2143, %v2125
        %2159 = vst.msk [vmem:[#allocation4 + $0x78] sm:$0xff] %vm2143, %v2126
        %2160 = vst.msk [vmem:[#allocation4 + $0x80] sm:$0xff] %vm2143, %v2127
        %2161 = vst.msk [vmem:[#allocation4 + $0x88] sm:$0xff] %vm2143, %v2128
        %2162 = vst.msk [vmem:[#allocation4 + $0x90] sm:$0xff] %vm2143, %v2129
        %2163 = vst.msk [vmem:[#allocation4 + $0x98] sm:$0xff] %vm2143, %v2130
        %2164 = vst.msk [vmem:[#allocation4 + $0xa0] sm:$0xff] %vm2143, %v2131
        %2165 = vst.msk [vmem:[#allocation4 + $0xa8] sm:$0xff] %vm2143, %v2132
        %2166 = vst.msk [vmem:[#allocation4 + $0xb0] sm:$0xff] %vm2143, %v2133
        %2167 = vst.msk [vmem:[#allocation4 + $0xb8] sm:$0xff] %vm2143, %v2134
        %2168 = vst.msk [vmem:[#allocation4 + $0xc0] sm:$0xff] %vm2143, %v2135
        %2169 = vst.msk [vmem:[#allocation4 + $0xc8] sm:$0xff] %vm2143, %v2136
        %2170 = vst.msk [vmem:[#allocation4 + $0xd0] sm:$0xff] %vm2143, %v2137
        %2171 = vst.msk [vmem:[#allocation4 + $0xd8] sm:$0xff] %vm2143, %v2138
        %2172 = vst.msk [vmem:[#allocation4 + $0xe0] sm:$0xff] %vm2143, %v2139
        %2173 = vst.msk [vmem:[#allocation4 + $0xe8] sm:$0xff] %vm2143, %v2140
        %2174 = vst.msk [vmem:[#allocation4 + $0xf0] sm:$0xff] %vm2143, %v2141
        %2175 = vst.msk [vmem:[#allocation4 + $0xf8] sm:$0xff] %vm2143, %v2142
        %v2176 = vld [vmem:[#allocation5] sm:$0xff]
        %v2177 = vld [vmem:[#allocation5 + $0x8] sm:$0xff]
        %v2178 = vld [vmem:[#allocation5 + $0x10] sm:$0xff]
        %v2179 = vld [vmem:[#allocation5 + $0x18] sm:$0xff]
        %v2180 = vld [vmem:[#allocation5 + $0x20] sm:$0xff]
        %v2181 = vld [vmem:[#allocation5 + $0x28] sm:$0xff]
        %v2182 = vld [vmem:[#allocation5 + $0x30] sm:$0xff]
        %v2183 = vld [vmem:[#allocation5 + $0x38] sm:$0xff]
        %v2184 = vld [vmem:[#allocation5 + $0x40] sm:$0xff]
        %v2185 = vld [vmem:[#allocation5 + $0x48] sm:$0xff]
        %v2186 = vld [vmem:[#allocation5 + $0x50] sm:$0xff]
        %v2187 = vld [vmem:[#allocation5 + $0x58] sm:$0xff]
        %v2188 = vld [vmem:[#allocation5 + $0x60] sm:$0xff]
        %v2189 = vld [vmem:[#allocation5 + $0x68] sm:$0xff]
        %v2190 = vld [vmem:[#allocation5 + $0x70] sm:$0xff]
        %v2191 = vld [vmem:[#allocation5 + $0x78] sm:$0xff]
        %v2192 = vld [vmem:[#allocation5 + $0x80] sm:$0xff]
        %v2193 = vld [vmem:[#allocation5 + $0x88] sm:$0xff]
        %v2194 = vld [vmem:[#allocation5 + $0x90] sm:$0xff]
        %v2195 = vld [vmem:[#allocation5 + $0x98] sm:$0xff]
        %v2196 = vld [vmem:[#allocation5 + $0xa0] sm:$0xff]
        %v2197 = vld [vmem:[#allocation5 + $0xa8] sm:$0xff]
        %v2198 = vld [vmem:[#allocation5 + $0xb0] sm:$0xff]
        %v2199 = vld [vmem:[#allocation5 + $0xb8] sm:$0xff]
        %v2200 = vld [vmem:[#allocation5 + $0xc0] sm:$0xff]
        %v2201 = vld [vmem:[#allocation5 + $0xc8] sm:$0xff]
        %v2202 = vld [vmem:[#allocation5 + $0xd0] sm:$0xff]
        %v2203 = vld [vmem:[#allocation5 + $0xd8] sm:$0xff]
        %v2204 = vld [vmem:[#allocation5 + $0xe0] sm:$0xff]
        %v2205 = vld [vmem:[#allocation5 + $0xe8] sm:$0xff]
        %v2206 = vld [vmem:[#allocation5 + $0xf0] sm:$0xff]
        %v2207 = vld [vmem:[#allocation5 + $0xf8] sm:$0xff]
        %2209 = vset.pattern.permute.xlu0 0
        %2210 = vperm.xlu0 %2209, %v1536
        %v2211 = vpop.permute.xlu0 %2210
        %2214 = vset.pattern.permute.xlu0 0
        %2215 = vperm.xlu0 %2214, %v1538
        %v2216 = vpop.permute.xlu0 %2215
        %2219 = vset.pattern.permute.xlu0 0
        %2220 = vperm.xlu0 %2219, %v1540
        %v2221 = vpop.permute.xlu0 %2220
        %2224 = vset.pattern.permute.xlu0 0
        %2225 = vperm.xlu0 %2224, %v1542
        %v2226 = vpop.permute.xlu0 %2225
        %2229 = vset.pattern.permute.xlu0 0
        %2230 = vperm.xlu0 %2229, %v1544
        %v2231 = vpop.permute.xlu0 %2230
        %2234 = vset.pattern.permute.xlu0 0
        %2235 = vperm.xlu0 %2234, %v1546
        %v2236 = vpop.permute.xlu0 %2235
        %2239 = vset.pattern.permute.xlu0 0
        %2240 = vperm.xlu0 %2239, %v1548
        %v2241 = vpop.permute.xlu0 %2240
        %2244 = vset.pattern.permute.xlu0 0
        %2245 = vperm.xlu0 %2244, %v1550
        %v2246 = vpop.permute.xlu0 %2245
        %2249 = vset.pattern.permute.xlu0 0
        %2250 = vperm.xlu0 %2249, %v1552
        %v2251 = vpop.permute.xlu0 %2250
        %2254 = vset.pattern.permute.xlu0 0
        %2255 = vperm.xlu0 %2254, %v1554
        %v2256 = vpop.permute.xlu0 %2255
        %2259 = vset.pattern.permute.xlu0 0
        %2260 = vperm.xlu0 %2259, %v1556
        %v2261 = vpop.permute.xlu0 %2260
        %2264 = vset.pattern.permute.xlu0 0
        %2265 = vperm.xlu0 %2264, %v1558
        %v2266 = vpop.permute.xlu0 %2265
        %2269 = vset.pattern.permute.xlu0 0
        %2270 = vperm.xlu0 %2269, %v1560
        %v2271 = vpop.permute.xlu0 %2270
        %2274 = vset.pattern.permute.xlu0 0
        %2275 = vperm.xlu0 %2274, %v1562
        %v2276 = vpop.permute.xlu0 %2275
        %2279 = vset.pattern.permute.xlu0 0
        %2280 = vperm.xlu0 %2279, %v1564
        %v2281 = vpop.permute.xlu0 %2280
        %2284 = vset.pattern.permute.xlu0 0
        %2285 = vperm.xlu0 %2284, %v1566
        %v2286 = vpop.permute.xlu0 %2285
        %2289 = vset.pattern.permute.xlu0 0
        %2290 = vperm.xlu0 %2289, %v1568
        %v2291 = vpop.permute.xlu0 %2290
        %2294 = vset.pattern.permute.xlu0 0
        %2295 = vperm.xlu0 %2294, %v1570
        %v2296 = vpop.permute.xlu0 %2295
        %2299 = vset.pattern.permute.xlu0 0
        %2300 = vperm.xlu0 %2299, %v1572
        %v2301 = vpop.permute.xlu0 %2300
        %2304 = vset.pattern.permute.xlu0 0
        %2305 = vperm.xlu0 %2304, %v1574
        %v2306 = vpop.permute.xlu0 %2305
        %2309 = vset.pattern.permute.xlu0 0
        %2310 = vperm.xlu0 %2309, %v1576
        %v2311 = vpop.permute.xlu0 %2310
        %2314 = vset.pattern.permute.xlu0 0
        %2315 = vperm.xlu0 %2314, %v1578
        %v2316 = vpop.permute.xlu0 %2315
        %2319 = vset.pattern.permute.xlu0 0
        %2320 = vperm.xlu0 %2319, %v1580
        %v2321 = vpop.permute.xlu0 %2320
        %2324 = vset.pattern.permute.xlu0 0
        %2325 = vperm.xlu0 %2324, %v1582
        %v2326 = vpop.permute.xlu0 %2325
        %2329 = vset.pattern.permute.xlu0 0
        %2330 = vperm.xlu0 %2329, %v1584
        %v2331 = vpop.permute.xlu0 %2330
        %2334 = vset.pattern.permute.xlu0 0
        %2335 = vperm.xlu0 %2334, %v1586
        %v2336 = vpop.permute.xlu0 %2335
        %2339 = vset.pattern.permute.xlu0 0
        %2340 = vperm.xlu0 %2339, %v1588
        %v2341 = vpop.permute.xlu0 %2340
        %2344 = vset.pattern.permute.xlu0 0
        %2345 = vperm.xlu0 %2344, %v1590
        %v2346 = vpop.permute.xlu0 %2345
        %2349 = vset.pattern.permute.xlu0 0
        %2350 = vperm.xlu0 %2349, %v1592
        %v2351 = vpop.permute.xlu0 %2350
        %2354 = vset.pattern.permute.xlu0 0
        %2355 = vperm.xlu0 %2354, %v1594
        %v2356 = vpop.permute.xlu0 %2355
        %2359 = vset.pattern.permute.xlu0 0
        %2360 = vperm.xlu0 %2359, %v1596
        %v2361 = vpop.permute.xlu0 %2360
        %2364 = vset.pattern.permute.xlu0 0
        %2365 = vperm.xlu0 %2364, %v1598
        %v2366 = vpop.permute.xlu0 %2365
        %v2368 = vmul.f32 %v2211, %v2176
        %v2369 = vmul.f32 %v2216, %v2177
        %v2370 = vmul.f32 %v2221, %v2178
        %v2371 = vmul.f32 %v2226, %v2179
        %v2372 = vmul.f32 %v2231, %v2180
        %v2373 = vmul.f32 %v2236, %v2181
        %v2374 = vmul.f32 %v2241, %v2182
        %v2375 = vmul.f32 %v2246, %v2183
        %v2376 = vmul.f32 %v2251, %v2184
        %v2377 = vmul.f32 %v2256, %v2185
        %v2378 = vmul.f32 %v2261, %v2186
        %v2379 = vmul.f32 %v2266, %v2187
        %v2380 = vmul.f32 %v2271, %v2188
        %v2381 = vmul.f32 %v2276, %v2189
        %v2382 = vmul.f32 %v2281, %v2190
        %v2383 = vmul.f32 %v2286, %v2191
        %v2384 = vmul.f32 %v2291, %v2192
        %v2385 = vmul.f32 %v2296, %v2193
        %v2386 = vmul.f32 %v2301, %v2194
        %v2387 = vmul.f32 %v2306, %v2195
        %v2388 = vmul.f32 %v2311, %v2196
        %v2389 = vmul.f32 %v2316, %v2197
        %v2390 = vmul.f32 %v2321, %v2198
        %v2391 = vmul.f32 %v2326, %v2199
        %v2392 = vmul.f32 %v2331, %v2200
        %v2393 = vmul.f32 %v2336, %v2201
        %v2394 = vmul.f32 %v2341, %v2202
        %v2395 = vmul.f32 %v2346, %v2203
        %v2396 = vmul.f32 %v2351, %v2204
        %v2397 = vmul.f32 %v2356, %v2205
        %v2398 = vmul.f32 %v2361, %v2206
        %v2399 = vmul.f32 %v2366, %v2207
        %v2400 = vpack.c.bf16 %v1828, %v1824
        %v2401 = vpack.c.bf16 %v1830, %v1826
        %v2402 = vpack.c.bf16 %v1836, %v1832
        %v2403 = vpack.c.bf16 %v1838, %v1834
        %v2404 = vpack.c.bf16 %v1844, %v1840
        %v2405 = vpack.c.bf16 %v1846, %v1842
        %v2406 = vpack.c.bf16 %v1852, %v1848
        %v2407 = vpack.c.bf16 %v1854, %v1850
        %v2408 = vpack.c.bf16 %v1860, %v1856
        %v2409 = vpack.c.bf16 %v1862, %v1858
        %v2410 = vpack.c.bf16 %v1868, %v1864
        %v2411 = vpack.c.bf16 %v1870, %v1866
        %v2412 = vpack.c.bf16 %v1876, %v1872
        %v2413 = vpack.c.bf16 %v1878, %v1874
        %v2414 = vpack.c.bf16 %v1884, %v1880
        %v2415 = vpack.c.bf16 %v1886, %v1882
        %v2416 = vpack.c.bf16 %v1892, %v1888
        %v2417 = vpack.c.bf16 %v1894, %v1890
        %v2418 = vpack.c.bf16 %v1900, %v1896
        %v2419 = vpack.c.bf16 %v1902, %v1898
        %v2420 = vpack.c.bf16 %v1908, %v1904
        %v2421 = vpack.c.bf16 %v1910, %v1906
        %v2422 = vpack.c.bf16 %v1916, %v1912
        %v2423 = vpack.c.bf16 %v1918, %v1914
        %v2424 = vpack.c.bf16 %v1924, %v1920
        %v2425 = vpack.c.bf16 %v1926, %v1922
        %v2426 = vpack.c.bf16 %v1932, %v1928
        %v2427 = vpack.c.bf16 %v1934, %v1930
        %v2428 = vpack.c.bf16 %v1940, %v1936
        %v2429 = vpack.c.bf16 %v1942, %v1938
        %v2430 = vpack.c.bf16 %v1948, %v1944
        %v2431 = vpack.c.bf16 %v1950, %v1946
        %2432 = vmatprep.subr.bf16.mxu0 0
        %2433 = vmatpush1.bf16.msra.mxu0 %v1118
        %2434 = vmatprep.subr.bf16.mxu0 0
        %2435 = vmatpush1.bf16.msra.mxu0 %v1119
        %2436 = vmatprep.subr.bf16.mxu0 0
        %2437 = vmatpush1.bf16.msra.mxu0 %v1120
        %2438 = vmatprep.subr.bf16.mxu0 0
        %2439 = vmatpush1.bf16.msra.mxu0 %v1121
        %2440 = vmatprep.subr.bf16.mxu0 0
        %2441 = vmatpush1.bf16.msra.mxu0 %v1122
        %2442 = vmatprep.subr.bf16.mxu0 0
        %2443 = vmatpush1.bf16.msra.mxu0 %v1123
        %2444 = vmatprep.subr.bf16.mxu0 0
        %2445 = vmatpush1.bf16.msra.mxu0 %v1124
        %2446 = vmatprep.subr.bf16.mxu0 0
        %2447 = vmatpush1.bf16.msra.mxu0 %v1125
        %2448 = vmatprep.subr.bf16.mxu0 0
        %2449 = vmatpush1.bf16.msra.mxu0 %v1126
        %2450 = vmatprep.subr.bf16.mxu0 0
        %2451 = vmatpush1.bf16.msra.mxu0 %v1127
        %2452 = vmatprep.subr.bf16.mxu0 0
        %2453 = vmatpush1.bf16.msra.mxu0 %v1128
        %2454 = vmatprep.subr.bf16.mxu0 0
        %2455 = vmatpush1.bf16.msra.mxu0 %v1129
        %2456 = vmatprep.subr.bf16.mxu0 0
        %2457 = vmatpush1.bf16.msra.mxu0 %v1130
        %2458 = vmatprep.subr.bf16.mxu0 0
        %2459 = vmatpush1.bf16.msra.mxu0 %v1131
        %2460 = vmatprep.subr.bf16.mxu0 0
        %2461 = vmatpush1.bf16.msra.mxu0 %v1132
        %2462 = vmatprep.subr.bf16.mxu0 0
        %2463 = vmatpush1.bf16.msra.mxu0 %v1133
        %2464 = vmatprep.mubr.bf16.mxu0 %v2401
        %2465 = vmatmul.mubr.bf16.gmra.mrb[0].mxu0 %v2400
        %v2466 = vpop.f32.mrb[0].mxu0
        %v2467 = vadd.f32 0.0, %v2466
        %v2468 = vpop.f32.mrb[0].mxu0
        %v2469 = vpop.f32.mrb[0].mxu0
        %v2470 = vadd.f32 0.0, %v2469
        %v2471 = vpop.f32.mrb[0].mxu0
        %2472 = vmatprep.mubr.bf16.mxu0 %v2403
        %2473 = vmatmul.mubr.bf16.gmra.mrb[0].mxu0 %v2402
        %v2474 = vpop.f32.mrb[0].mxu0
        %v2475 = vadd.f32 0.0, %v2474
        %v2476 = vpop.f32.mrb[0].mxu0
        %v2477 = vpop.f32.mrb[0].mxu0
        %v2478 = vadd.f32 0.0, %v2477
        %v2479 = vpop.f32.mrb[0].mxu0
        %2480 = vmatprep.mubr.bf16.mxu0 %v2405
        %2481 = vmatmul.mubr.bf16.gmra.mrb[0].mxu0 %v2404
        %v2482 = vpop.f32.mrb[0].mxu0
        %v2483 = vadd.f32 0.0, %v2482
        %v2484 = vpop.f32.mrb[0].mxu0
        %v2485 = vpop.f32.mrb[0].mxu0
        %v2486 = vadd.f32 0.0, %v2485
        %v2487 = vpop.f32.mrb[0].mxu0
        %2488 = vmatprep.mubr.bf16.mxu0 %v2407
        %2489 = vmatmul.mubr.bf16.gmra.mrb[0].mxu0 %v2406
        %v2490 = vpop.f32.mrb[0].mxu0
        %v2491 = vadd.f32 0.0, %v2490
        %v2492 = vpop.f32.mrb[0].mxu0
        %v2493 = vpop.f32.mrb[0].mxu0
        %v2494 = vadd.f32 0.0, %v2493
        %v2495 = vpop.f32.mrb[0].mxu0
        %2496 = vmatprep.mubr.bf16.mxu0 %v2409
        %2497 = vmatmul.mubr.bf16.gmra.mrb[0].mxu0 %v2408
        %v2498 = vpop.f32.mrb[0].mxu0
        %v2499 = vadd.f32 0.0, %v2498
        %v2500 = vpop.f32.mrb[0].mxu0
        %v2501 = vpop.f32.mrb[0].mxu0
        %v2502 = vadd.f32 0.0, %v2501
        %v2503 = vpop.f32.mrb[0].mxu0
        %2504 = vmatprep.mubr.bf16.mxu0 %v2411
        %2505 = vmatmul.mubr.bf16.gmra.mrb[0].mxu0 %v2410
        %v2506 = vpop.f32.mrb[0].mxu0
        %v2507 = vadd.f32 0.0, %v2506
        %v2508 = vpop.f32.mrb[0].mxu0
        %v2509 = vpop.f32.mrb[0].mxu0
        %v2510 = vadd.f32 0.0, %v2509
        %v2511 = vpop.f32.mrb[0].mxu0
        %2512 = vmatprep.mubr.bf16.mxu0 %v2413
        %2513 = vmatmul.mubr.bf16.gmra.mrb[0].mxu0 %v2412
        %v2514 = vpop.f32.mrb[0].mxu0
        %v2515 = vadd.f32 0.0, %v2514
        %v2516 = vpop.f32.mrb[0].mxu0
        %v2517 = vpop.f32.mrb[0].mxu0
        %v2518 = vadd.f32 0.0, %v2517
        %v2519 = vpop.f32.mrb[0].mxu0
        %2520 = vmatprep.mubr.bf16.mxu0 %v2415
        %2521 = vmatmul.mubr.bf16.gmra.mrb[0].mxu0 %v2414
        %v2522 = vpop.f32.mrb[0].mxu0
        %v2523 = vadd.f32 0.0, %v2522
        %v2524 = vpop.f32.mrb[0].mxu0
        %v2525 = vpop.f32.mrb[0].mxu0
        %v2526 = vadd.f32 0.0, %v2525
        %v2527 = vpop.f32.mrb[0].mxu0
        %2528 = vmatprep.mubr.bf16.mxu0 %v2417
        %2529 = vmatmul.mubr.bf16.gmra.mrb[0].mxu0 %v2416
        %v2530 = vpop.f32.mrb[0].mxu0
        %v2531 = vadd.f32 0.0, %v2530
        %v2532 = vpop.f32.mrb[0].mxu0
        %v2533 = vpop.f32.mrb[0].mxu0
        %v2534 = vadd.f32 0.0, %v2533
        %v2535 = vpop.f32.mrb[0].mxu0
        %2536 = vmatprep.mubr.bf16.mxu0 %v2419
        %2537 = vmatmul.mubr.bf16.gmra.mrb[0].mxu0 %v2418
        %v2538 = vpop.f32.mrb[0].mxu0
        %v2539 = vadd.f32 0.0, %v2538
        %v2540 = vpop.f32.mrb[0].mxu0
        %v2541 = vpop.f32.mrb[0].mxu0
        %v2542 = vadd.f32 0.0, %v2541
        %v2543 = vpop.f32.mrb[0].mxu0
        %2544 = vmatprep.mubr.bf16.mxu0 %v2421
        %2545 = vmatmul.mubr.bf16.gmra.mrb[0].mxu0 %v2420
        %v2546 = vpop.f32.mrb[0].mxu0
        %v2547 = vadd.f32 0.0, %v2546
        %v2548 = vpop.f32.mrb[0].mxu0
        %v2549 = vpop.f32.mrb[0].mxu0
        %v2550 = vadd.f32 0.0, %v2549
        %v2551 = vpop.f32.mrb[0].mxu0
        %2552 = vmatprep.mubr.bf16.mxu0 %v2423
        %2553 = vmatmul.mubr.bf16.gmra.mrb[0].mxu0 %v2422
        %v2554 = vpop.f32.mrb[0].mxu0
        %v2555 = vadd.f32 0.0, %v2554
        %v2556 = vpop.f32.mrb[0].mxu0
        %v2557 = vpop.f32.mrb[0].mxu0
        %v2558 = vadd.f32 0.0, %v2557
        %v2559 = vpop.f32.mrb[0].mxu0
        %2560 = vmatprep.mubr.bf16.mxu0 %v2425
        %2561 = vmatmul.mubr.bf16.gmra.mrb[0].mxu0 %v2424
        %v2562 = vpop.f32.mrb[0].mxu0
        %v2563 = vadd.f32 0.0, %v2562
        %v2564 = vpop.f32.mrb[0].mxu0
        %v2565 = vpop.f32.mrb[0].mxu0
        %v2566 = vadd.f32 0.0, %v2565
        %v2567 = vpop.f32.mrb[0].mxu0
        %2568 = vmatprep.mubr.bf16.mxu0 %v2427
        %2569 = vmatmul.mubr.bf16.gmra.mrb[0].mxu0 %v2426
        %v2570 = vpop.f32.mrb[0].mxu0
        %v2571 = vadd.f32 0.0, %v2570
        %v2572 = vpop.f32.mrb[0].mxu0
        %v2573 = vpop.f32.mrb[0].mxu0
        %v2574 = vadd.f32 0.0, %v2573
        %v2575 = vpop.f32.mrb[0].mxu0
        %2576 = vmatprep.mubr.bf16.mxu0 %v2429
        %2577 = vmatmul.mubr.bf16.gmra.mrb[0].mxu0 %v2428
        %v2578 = vpop.f32.mrb[0].mxu0
        %v2579 = vadd.f32 0.0, %v2578
        %v2580 = vpop.f32.mrb[0].mxu0
        %v2581 = vpop.f32.mrb[0].mxu0
        %v2582 = vadd.f32 0.0, %v2581
        %v2583 = vpop.f32.mrb[0].mxu0
        %2584 = vmatprep.mubr.bf16.mxu0 %v2431
        %2585 = vmatmul.mubr.bf16.gmra.mrb[0].mxu0 %v2430
        %v2586 = vpop.f32.mrb[0].mxu0
        %v2587 = vadd.f32 0.0, %v2586
        %v2588 = vpop.f32.mrb[0].mxu0
        %v2589 = vpop.f32.mrb[0].mxu0
        %v2590 = vadd.f32 0.0, %v2589
        %v2591 = vpop.f32.mrb[0].mxu0
        %2592 = vdwg.mxu0
        %v2593 = vadd.f32 %v2368, %v2467
        %v2594 = vadd.f32 %v2369, %v2470
        %v2595 = vadd.f32 %v2370, %v2475
        %v2596 = vadd.f32 %v2371, %v2478
        %v2597 = vadd.f32 %v2372, %v2483
        %v2598 = vadd.f32 %v2373, %v2486
        %v2599 = vadd.f32 %v2374, %v2491
        %v2600 = vadd.f32 %v2375, %v2494
        %v2601 = vadd.f32 %v2376, %v2499
        %v2602 = vadd.f32 %v2377, %v2502
        %v2603 = vadd.f32 %v2378, %v2507
        %v2604 = vadd.f32 %v2379, %v2510
        %v2605 = vadd.f32 %v2380, %v2515
        %v2606 = vadd.f32 %v2381, %v2518
        %v2607 = vadd.f32 %v2382, %v2523
        %v2608 = vadd.f32 %v2383, %v2526
        %v2609 = vadd.f32 %v2384, %v2531
        %v2610 = vadd.f32 %v2385, %v2534
        %v2611 = vadd.f32 %v2386, %v2539
        %v2612 = vadd.f32 %v2387, %v2542
        %v2613 = vadd.f32 %v2388, %v2547
        %v2614 = vadd.f32 %v2389, %v2550
        %v2615 = vadd.f32 %v2390, %v2555
        %v2616 = vadd.f32 %v2391, %v2558
        %v2617 = vadd.f32 %v2392, %v2563
        %v2618 = vadd.f32 %v2393, %v2566
        %v2619 = vadd.f32 %v2394, %v2571
        %v2620 = vadd.f32 %v2395, %v2574
        %v2621 = vadd.f32 %v2396, %v2579
        %v2622 = vadd.f32 %v2397, %v2582
        %v2623 = vadd.f32 %v2398, %v2587
        %v2624 = vadd.f32 %v2399, %v2590
        %2625 = vst [vmem:[#allocation5] sm:$0xff] %v2593
        %2626 = vst [vmem:[#allocation5 + $0x8] sm:$0xff] %v2594
        %2627 = vst [vmem:[#allocation5 + $0x10] sm:$0xff] %v2595
        %2628 = vst [vmem:[#allocation5 + $0x18] sm:$0xff] %v2596
        %2629 = vst [vmem:[#allocation5 + $0x20] sm:$0xff] %v2597
        %2630 = vst [vmem:[#allocation5 + $0x28] sm:$0xff] %v2598
        %2631 = vst [vmem:[#allocation5 + $0x30] sm:$0xff] %v2599
        %2632 = vst [vmem:[#allocation5 + $0x38] sm:$0xff] %v2600
        %2633 = vst [vmem:[#allocation5 + $0x40] sm:$0xff] %v2601
        %2634 = vst [vmem:[#allocation5 + $0x48] sm:$0xff] %v2602
        %2635 = vst [vmem:[#allocation5 + $0x50] sm:$0xff] %v2603
        %2636 = vst [vmem:[#allocation5 + $0x58] sm:$0xff] %v2604
        %2637 = vst [vmem:[#allocation5 + $0x60] sm:$0xff] %v2605
        %2638 = vst [vmem:[#allocation5 + $0x68] sm:$0xff] %v2606
        %2639 = vst [vmem:[#allocation5 + $0x70] sm:$0xff] %v2607
        %2640 = vst [vmem:[#allocation5 + $0x78] sm:$0xff] %v2608
        %2641 = vst [vmem:[#allocation5 + $0x80] sm:$0xff] %v2609
        %2642 = vst [vmem:[#allocation5 + $0x88] sm:$0xff] %v2610
        %2643 = vst [vmem:[#allocation5 + $0x90] sm:$0xff] %v2611
        %2644 = vst [vmem:[#allocation5 + $0x98] sm:$0xff] %v2612
        %2645 = vst [vmem:[#allocation5 + $0xa0] sm:$0xff] %v2613
        %2646 = vst [vmem:[#allocation5 + $0xa8] sm:$0xff] %v2614
        %2647 = vst [vmem:[#allocation5 + $0xb0] sm:$0xff] %v2615
        %2648 = vst [vmem:[#allocation5 + $0xb8] sm:$0xff] %v2616
        %2649 = vst [vmem:[#allocation5 + $0xc0] sm:$0xff] %v2617
        %2650 = vst [vmem:[#allocation5 + $0xc8] sm:$0xff] %v2618
        %2651 = vst [vmem:[#allocation5 + $0xd0] sm:$0xff] %v2619
        %2652 = vst [vmem:[#allocation5 + $0xd8] sm:$0xff] %v2620
        %2653 = vst [vmem:[#allocation5 + $0xe0] sm:$0xff] %v2621
        %2654 = vst [vmem:[#allocation5 + $0xe8] sm:$0xff] %v2622
        %2655 = vst [vmem:[#allocation5 + $0xf0] sm:$0xff] %v2623
        %2656 = vst [vmem:[#allocation5 + $0xf8] sm:$0xff] %v2624
        %2657 = vst.msk [vmem:[#allocation3] sm:$0xff] %vm2143, %v1471
        %2658 = vst.msk [vmem:[#allocation3 + $0x8] sm:$0xff] %vm2143, %v1472
        %2659 = vst.msk [vmem:[#allocation3 + $0x10] sm:$0xff] %vm2143, %v1473
        %2660 = vst.msk [vmem:[#allocation3 + $0x18] sm:$0xff] %vm2143, %v1474
        %2661 = vst.msk [vmem:[#allocation3 + $0x20] sm:$0xff] %vm2143, %v1475
        %2662 = vst.msk [vmem:[#allocation3 + $0x28] sm:$0xff] %vm2143, %v1476
        %2663 = vst.msk [vmem:[#allocation3 + $0x30] sm:$0xff] %vm2143, %v1477
        %2664 = vst.msk [vmem:[#allocation3 + $0x38] sm:$0xff] %vm2143, %v1478
        %2665 = vst.msk [vmem:[#allocation3 + $0x40] sm:$0xff] %vm2143, %v1479
        %2666 = vst.msk [vmem:[#allocation3 + $0x48] sm:$0xff] %vm2143, %v1480
        %2667 = vst.msk [vmem:[#allocation3 + $0x50] sm:$0xff] %vm2143, %v1481
        %2668 = vst.msk [vmem:[#allocation3 + $0x58] sm:$0xff] %vm2143, %v1482
        %2669 = vst.msk [vmem:[#allocation3 + $0x60] sm:$0xff] %vm2143, %v1483
        %2670 = vst.msk [vmem:[#allocation3 + $0x68] sm:$0xff] %vm2143, %v1484
        %2671 = vst.msk [vmem:[#allocation3 + $0x70] sm:$0xff] %vm2143, %v1485
        %2672 = vst.msk [vmem:[#allocation3 + $0x78] sm:$0xff] %vm2143, %v1486
        %2673 = vst.msk [vmem:[#allocation3 + $0x80] sm:$0xff] %vm2143, %v1487
        %2674 = vst.msk [vmem:[#allocation3 + $0x88] sm:$0xff] %vm2143, %v1488
        %2675 = vst.msk [vmem:[#allocation3 + $0x90] sm:$0xff] %vm2143, %v1489
        %2676 = vst.msk [vmem:[#allocation3 + $0x98] sm:$0xff] %vm2143, %v1490
        %2677 = vst.msk [vmem:[#allocation3 + $0xa0] sm:$0xff] %vm2143, %v1491
        %2678 = vst.msk [vmem:[#allocation3 + $0xa8] sm:$0xff] %vm2143, %v1492
        %2679 = vst.msk [vmem:[#allocation3 + $0xb0] sm:$0xff] %vm2143, %v1493
        %2680 = vst.msk [vmem:[#allocation3 + $0xb8] sm:$0xff] %vm2143, %v1494
        %2681 = vst.msk [vmem:[#allocation3 + $0xc0] sm:$0xff] %vm2143, %v1495
        %2682 = vst.msk [vmem:[#allocation3 + $0xc8] sm:$0xff] %vm2143, %v1496
        %2683 = vst.msk [vmem:[#allocation3 + $0xd0] sm:$0xff] %vm2143, %v1497
        %2684 = vst.msk [vmem:[#allocation3 + $0xd8] sm:$0xff] %vm2143, %v1498
        %2685 = vst.msk [vmem:[#allocation3 + $0xe0] sm:$0xff] %vm2143, %v1499
        %2686 = vst.msk [vmem:[#allocation3 + $0xe8] sm:$0xff] %vm2143, %v1500
        %2687 = vst.msk [vmem:[#allocation3 + $0xf0] sm:$0xff] %vm2143, %v1501
        %2688 = vst.msk [vmem:[#allocation3 + $0xf8] sm:$0xff] %vm2143, %v1502
        // Predicated region
        $region65: #{tpu_custom_call.1} parent=39 // pred_check
          %p2689 = pneg %p359
        $region66: #{tpu_custom_call.1} parent=39 // pred_check_branch
          %2691 = sbr.rel (%p2689) target = $region68
        $region67: #{tpu_custom_call.1} parent=39 // pred_region
          %v2692 = vld [vmem:[#allocation5] sm:$0xff]
          %v2693 = vld [vmem:[#allocation5 + $0x8] sm:$0xff]
          %v2694 = vld [vmem:[#allocation5 + $0x10] sm:$0xff]
          %v2695 = vld [vmem:[#allocation5 + $0x18] sm:$0xff]
          %v2696 = vld [vmem:[#allocation5 + $0x20] sm:$0xff]
          %v2697 = vld [vmem:[#allocation5 + $0x28] sm:$0xff]
          %v2698 = vld [vmem:[#allocation5 + $0x30] sm:$0xff]
          %v2699 = vld [vmem:[#allocation5 + $0x38] sm:$0xff]
          %v2700 = vld [vmem:[#allocation5 + $0x40] sm:$0xff]
          %v2701 = vld [vmem:[#allocation5 + $0x48] sm:$0xff]
          %v2702 = vld [vmem:[#allocation5 + $0x50] sm:$0xff]
          %v2703 = vld [vmem:[#allocation5 + $0x58] sm:$0xff]
          %v2704 = vld [vmem:[#allocation5 + $0x60] sm:$0xff]
          %v2705 = vld [vmem:[#allocation5 + $0x68] sm:$0xff]
          %v2706 = vld [vmem:[#allocation5 + $0x70] sm:$0xff]
          %v2707 = vld [vmem:[#allocation5 + $0x78] sm:$0xff]
          %v2708 = vld [vmem:[#allocation5 + $0x80] sm:$0xff]
          %v2709 = vld [vmem:[#allocation5 + $0x88] sm:$0xff]
          %v2710 = vld [vmem:[#allocation5 + $0x90] sm:$0xff]
          %v2711 = vld [vmem:[#allocation5 + $0x98] sm:$0xff]
          %v2712 = vld [vmem:[#allocation5 + $0xa0] sm:$0xff]
          %v2713 = vld [vmem:[#allocation5 + $0xa8] sm:$0xff]
          %v2714 = vld [vmem:[#allocation5 + $0xb0] sm:$0xff]
          %v2715 = vld [vmem:[#allocation5 + $0xb8] sm:$0xff]
          %v2716 = vld [vmem:[#allocation5 + $0xc0] sm:$0xff]
          %v2717 = vld [vmem:[#allocation5 + $0xc8] sm:$0xff]
          %v2718 = vld [vmem:[#allocation5 + $0xd0] sm:$0xff]
          %v2719 = vld [vmem:[#allocation5 + $0xd8] sm:$0xff]
          %v2720 = vld [vmem:[#allocation5 + $0xe0] sm:$0xff]
          %v2721 = vld [vmem:[#allocation5 + $0xe8] sm:$0xff]
          %v2722 = vld [vmem:[#allocation5 + $0xf0] sm:$0xff]
          %v2723 = vld [vmem:[#allocation5 + $0xf8] sm:$0xff]
          %v2724 = vld [vmem:[#allocation4] sm:$0xff]
          %v2725 = vld [vmem:[#allocation4 + $0x8] sm:$0xff]
          %v2726 = vld [vmem:[#allocation4 + $0x10] sm:$0xff]
          %v2727 = vld [vmem:[#allocation4 + $0x18] sm:$0xff]
          %v2728 = vld [vmem:[#allocation4 + $0x20] sm:$0xff]
          %v2729 = vld [vmem:[#allocation4 + $0x28] sm:$0xff]
          %v2730 = vld [vmem:[#allocation4 + $0x30] sm:$0xff]
          %v2731 = vld [vmem:[#allocation4 + $0x38] sm:$0xff]
          %v2732 = vld [vmem:[#allocation4 + $0x40] sm:$0xff]
          %v2733 = vld [vmem:[#allocation4 + $0x48] sm:$0xff]
          %v2734 = vld [vmem:[#allocation4 + $0x50] sm:$0xff]
          %v2735 = vld [vmem:[#allocation4 + $0x58] sm:$0xff]
          %v2736 = vld [vmem:[#allocation4 + $0x60] sm:$0xff]
          %v2737 = vld [vmem:[#allocation4 + $0x68] sm:$0xff]
          %v2738 = vld [vmem:[#allocation4 + $0x70] sm:$0xff]
          %v2739 = vld [vmem:[#allocation4 + $0x78] sm:$0xff]
          %v2740 = vld [vmem:[#allocation4 + $0x80] sm:$0xff]
          %v2741 = vld [vmem:[#allocation4 + $0x88] sm:$0xff]
          %v2742 = vld [vmem:[#allocation4 + $0x90] sm:$0xff]
          %v2743 = vld [vmem:[#allocation4 + $0x98] sm:$0xff]
          %v2744 = vld [vmem:[#allocation4 + $0xa0] sm:$0xff]
          %v2745 = vld [vmem:[#allocation4 + $0xa8] sm:$0xff]
          %v2746 = vld [vmem:[#allocation4 + $0xb0] sm:$0xff]
          %v2747 = vld [vmem:[#allocation4 + $0xb8] sm:$0xff]
          %v2748 = vld [vmem:[#allocation4 + $0xc0] sm:$0xff]
          %v2749 = vld [vmem:[#allocation4 + $0xc8] sm:$0xff]
          %v2750 = vld [vmem:[#allocation4 + $0xd0] sm:$0xff]
          %v2751 = vld [vmem:[#allocation4 + $0xd8] sm:$0xff]
          %v2752 = vld [vmem:[#allocation4 + $0xe0] sm:$0xff]
          %v2753 = vld [vmem:[#allocation4 + $0xe8] sm:$0xff]
          %v2754 = vld [vmem:[#allocation4 + $0xf0] sm:$0xff]
          %v2755 = vld [vmem:[#allocation4 + $0xf8] sm:$0xff]
          %v2756 = vrcp.pop %v2724
          %v2757 = vrcp.pop %v2725
          %v2758 = vrcp.pop %v2726
          %v2759 = vrcp.pop %v2727
          %v2760 = vrcp.pop %v2728
          %v2761 = vrcp.pop %v2729
          %v2762 = vrcp.pop %v2730
          %v2763 = vrcp.pop %v2731
          %v2764 = vrcp.pop %v2732
          %v2765 = vrcp.pop %v2733
          %v2766 = vrcp.pop %v2734
          %v2767 = vrcp.pop %v2735
          %v2768 = vrcp.pop %v2736
          %v2769 = vrcp.pop %v2737
          %v2770 = vrcp.pop %v2738
          %v2771 = vrcp.pop %v2739
          %v2772 = vrcp.pop %v2740
          %v2773 = vrcp.pop %v2741
          %v2774 = vrcp.pop %v2742
          %v2775 = vrcp.pop %v2743
          %v2776 = vrcp.pop %v2744
          %v2777 = vrcp.pop %v2745
          %v2778 = vrcp.pop %v2746
          %v2779 = vrcp.pop %v2747
          %v2780 = vrcp.pop %v2748
          %v2781 = vrcp.pop %v2749
          %v2782 = vrcp.pop %v2750
          %v2783 = vrcp.pop %v2751
          %v2784 = vrcp.pop %v2752
          %v2785 = vrcp.pop %v2753
          %v2786 = vrcp.pop %v2754
          %v2787 = vrcp.pop %v2755
          %2789 = vset.pattern.permute.xlu0 0
          %2790 = vperm.xlu0 %2789, %v2756
          %v2791 = vpop.permute.xlu0 %2790
          %2794 = vset.pattern.permute.xlu0 0
          %2795 = vperm.xlu0 %2794, %v2757
          %v2796 = vpop.permute.xlu0 %2795
          %2799 = vset.pattern.permute.xlu0 0
          %2800 = vperm.xlu0 %2799, %v2758
          %v2801 = vpop.permute.xlu0 %2800
          %2804 = vset.pattern.permute.xlu0 0
          %2805 = vperm.xlu0 %2804, %v2759
          %v2806 = vpop.permute.xlu0 %2805
          %2809 = vset.pattern.permute.xlu0 0
          %2810 = vperm.xlu0 %2809, %v2760
          %v2811 = vpop.permute.xlu0 %2810
          %2814 = vset.pattern.permute.xlu0 0
          %2815 = vperm.xlu0 %2814, %v2761
          %v2816 = vpop.permute.xlu0 %2815
          %2819 = vset.pattern.permute.xlu0 0
          %2820 = vperm.xlu0 %2819, %v2762
          %v2821 = vpop.permute.xlu0 %2820
          %2824 = vset.pattern.permute.xlu0 0
          %2825 = vperm.xlu0 %2824, %v2763
          %v2826 = vpop.permute.xlu0 %2825
          %2829 = vset.pattern.permute.xlu0 0
          %2830 = vperm.xlu0 %2829, %v2764
          %v2831 = vpop.permute.xlu0 %2830
          %2834 = vset.pattern.permute.xlu0 0
          %2835 = vperm.xlu0 %2834, %v2765
          %v2836 = vpop.permute.xlu0 %2835
          %2839 = vset.pattern.permute.xlu0 0
          %2840 = vperm.xlu0 %2839, %v2766
          %v2841 = vpop.permute.xlu0 %2840
          %2844 = vset.pattern.permute.xlu0 0
          %2845 = vperm.xlu0 %2844, %v2767
          %v2846 = vpop.permute.xlu0 %2845
          %2849 = vset.pattern.permute.xlu0 0
          %2850 = vperm.xlu0 %2849, %v2768
          %v2851 = vpop.permute.xlu0 %2850
          %2854 = vset.pattern.permute.xlu0 0
          %2855 = vperm.xlu0 %2854, %v2769
          %v2856 = vpop.permute.xlu0 %2855
          %2859 = vset.pattern.permute.xlu0 0
          %2860 = vperm.xlu0 %2859, %v2770
          %v2861 = vpop.permute.xlu0 %2860
          %2864 = vset.pattern.permute.xlu0 0
          %2865 = vperm.xlu0 %2864, %v2771
          %v2866 = vpop.permute.xlu0 %2865
          %2869 = vset.pattern.permute.xlu0 0
          %2870 = vperm.xlu0 %2869, %v2772
          %v2871 = vpop.permute.xlu0 %2870
          %2874 = vset.pattern.permute.xlu0 0
          %2875 = vperm.xlu0 %2874, %v2773
          %v2876 = vpop.permute.xlu0 %2875
          %2879 = vset.pattern.permute.xlu0 0
          %2880 = vperm.xlu0 %2879, %v2774
          %v2881 = vpop.permute.xlu0 %2880
          %2884 = vset.pattern.permute.xlu0 0
          %2885 = vperm.xlu0 %2884, %v2775
          %v2886 = vpop.permute.xlu0 %2885
          %2889 = vset.pattern.permute.xlu0 0
          %2890 = vperm.xlu0 %2889, %v2776
          %v2891 = vpop.permute.xlu0 %2890
          %2894 = vset.pattern.permute.xlu0 0
          %2895 = vperm.xlu0 %2894, %v2777
          %v2896 = vpop.permute.xlu0 %2895
          %2899 = vset.pattern.permute.xlu0 0
          %2900 = vperm.xlu0 %2899, %v2778
          %v2901 = vpop.permute.xlu0 %2900
          %2904 = vset.pattern.permute.xlu0 0
          %2905 = vperm.xlu0 %2904, %v2779
          %v2906 = vpop.permute.xlu0 %2905
          %2909 = vset.pattern.permute.xlu0 0
          %2910 = vperm.xlu0 %2909, %v2780
          %v2911 = vpop.permute.xlu0 %2910
          %2914 = vset.pattern.permute.xlu0 0
          %2915 = vperm.xlu0 %2914, %v2781
          %v2916 = vpop.permute.xlu0 %2915
          %2919 = vset.pattern.permute.xlu0 0
          %2920 = vperm.xlu0 %2919, %v2782
          %v2921 = vpop.permute.xlu0 %2920
          %2924 = vset.pattern.permute.xlu0 0
          %2925 = vperm.xlu0 %2924, %v2783
          %v2926 = vpop.permute.xlu0 %2925
          %2929 = vset.pattern.permute.xlu0 0
          %2930 = vperm.xlu0 %2929, %v2784
          %v2931 = vpop.permute.xlu0 %2930
          %2934 = vset.pattern.permute.xlu0 0
          %2935 = vperm.xlu0 %2934, %v2785
          %v2936 = vpop.permute.xlu0 %2935
          %2939 = vset.pattern.permute.xlu0 0
          %2940 = vperm.xlu0 %2939, %v2786
          %v2941 = vpop.permute.xlu0 %2940
          %2944 = vset.pattern.permute.xlu0 0
          %2945 = vperm.xlu0 %2944, %v2787
          %v2946 = vpop.permute.xlu0 %2945
          %v2948 = vmul.f32 %v2692, %v2791
          %v2949 = vmul.f32 %v2693, %v2796
          %v2950 = vmul.f32 %v2694, %v2801
          %v2951 = vmul.f32 %v2695, %v2806
          %v2952 = vmul.f32 %v2696, %v2811
          %v2953 = vmul.f32 %v2697, %v2816
          %v2954 = vmul.f32 %v2698, %v2821
          %v2955 = vmul.f32 %v2699, %v2826
          %v2956 = vmul.f32 %v2700, %v2831
          %v2957 = vmul.f32 %v2701, %v2836
          %v2958 = vmul.f32 %v2702, %v2841
          %v2959 = vmul.f32 %v2703, %v2846
          %v2960 = vmul.f32 %v2704, %v2851
          %v2961 = vmul.f32 %v2705, %v2856
          %v2962 = vmul.f32 %v2706, %v2861
          %v2963 = vmul.f32 %v2707, %v2866
          %v2964 = vmul.f32 %v2708, %v2871
          %v2965 = vmul.f32 %v2709, %v2876
          %v2966 = vmul.f32 %v2710, %v2881
          %v2967 = vmul.f32 %v2711, %v2886
          %v2968 = vmul.f32 %v2712, %v2891
          %v2969 = vmul.f32 %v2713, %v2896
          %v2970 = vmul.f32 %v2714, %v2901
          %v2971 = vmul.f32 %v2715, %v2906
          %v2972 = vmul.f32 %v2716, %v2911
          %v2973 = vmul.f32 %v2717, %v2916
          %v2974 = vmul.f32 %v2718, %v2921
          %v2975 = vmul.f32 %v2719, %v2926
          %v2976 = vmul.f32 %v2720, %v2931
          %v2977 = vmul.f32 %v2721, %v2936
          %v2978 = vmul.f32 %v2722, %v2941
          %v2979 = vmul.f32 %v2723, %v2946
          %v2980 = vld [vmem:[%s302] sm:$0xff]
          %v2981 = vld [vmem:[%s302 + $0x8] sm:$0xff]
          %v2982 = vld [vmem:[%s302 + $0x10] sm:$0xff]
          %v2983 = vld [vmem:[%s302 + $0x18] sm:$0xff]
          %v2984 = vld [vmem:[%s302 + $0x20] sm:$0xff]
          %v2985 = vld [vmem:[%s302 + $0x28] sm:$0xff]
          %v2986 = vld [vmem:[%s302 + $0x30] sm:$0xff]
          %v2987 = vld [vmem:[%s302 + $0x38] sm:$0xff]
          %v2988 = vld [vmem:[%s302 + $0x40] sm:$0xff]
          %v2989 = vld [vmem:[%s302 + $0x48] sm:$0xff]
          %v2990 = vld [vmem:[%s302 + $0x50] sm:$0xff]
          %v2991 = vld [vmem:[%s302 + $0x58] sm:$0xff]
          %v2992 = vld [vmem:[%s302 + $0x60] sm:$0xff]
          %v2993 = vld [vmem:[%s302 + $0x68] sm:$0xff]
          %v2994 = vld [vmem:[%s302 + $0x70] sm:$0xff]
          %v2995 = vld [vmem:[%s302 + $0x78] sm:$0xff]
          %v2996 = vld [vmem:[%s302 + $0x80] sm:$0xff]
          %v2997 = vld [vmem:[%s302 + $0x88] sm:$0xff]
          %v2998 = vld [vmem:[%s302 + $0x90] sm:$0xff]
          %v2999 = vld [vmem:[%s302 + $0x98] sm:$0xff]
          %v3000 = vld [vmem:[%s302 + $0xa0] sm:$0xff]
          %v3001 = vld [vmem:[%s302 + $0xa8] sm:$0xff]
          %v3002 = vld [vmem:[%s302 + $0xb0] sm:$0xff]
          %v3003 = vld [vmem:[%s302 + $0xb8] sm:$0xff]
          %v3004 = vld [vmem:[%s302 + $0xc0] sm:$0xff]
          %v3005 = vld [vmem:[%s302 + $0xc8] sm:$0xff]
          %v3006 = vld [vmem:[%s302 + $0xd0] sm:$0xff]
          %v3007 = vld [vmem:[%s302 + $0xd8] sm:$0xff]
          %v3008 = vld [vmem:[%s302 + $0xe0] sm:$0xff]
          %v3009 = vld [vmem:[%s302 + $0xe8] sm:$0xff]
          %v3010 = vld [vmem:[%s302 + $0xf0] sm:$0xff]
          %v3011 = vld [vmem:[%s302 + $0xf8] sm:$0xff]
          %v3012 = vpack.c.bf16 %v2949, %v2948
          %v3013 = vpack.c.bf16 %v2951, %v2950
          %v3014 = vpack.c.bf16 %v2953, %v2952
          %v3015 = vpack.c.bf16 %v2955, %v2954
          %v3016 = vpack.c.bf16 %v2957, %v2956
          %v3017 = vpack.c.bf16 %v2959, %v2958
          %v3018 = vpack.c.bf16 %v2961, %v2960
          %v3019 = vpack.c.bf16 %v2963, %v2962
          %v3020 = vpack.c.bf16 %v2965, %v2964
          %v3021 = vpack.c.bf16 %v2967, %v2966
          %v3022 = vpack.c.bf16 %v2969, %v2968
          %v3023 = vpack.c.bf16 %v2971, %v2970
          %v3024 = vpack.c.bf16 %v2973, %v2972
          %v3025 = vpack.c.bf16 %v2975, %v2974
          %v3026 = vpack.c.bf16 %v2977, %v2976
          %v3027 = vpack.c.bf16 %v2979, %v2978
          %v3028 = vld [vmem:[#allocation14] sm:$0xf]
          %v3029 = vld [vmem:[#allocation14 + $0x4] sm:$0xf]
          %v3030 = vld [vmem:[#allocation14 + $0x8] sm:$0xf]
          %v3031 = vld [vmem:[#allocation14 + $0xc] sm:$0xf]
          %v3032 = vld [vmem:[#allocation14 + $0x10] sm:$0xf]
          %v3033 = vld [vmem:[#allocation14 + $0x14] sm:$0xf]
          %v3034 = vld [vmem:[#allocation14 + $0x18] sm:$0xf]
          %v3035 = vld [vmem:[#allocation14 + $0x1c] sm:$0xf]
          %v3036 = vld [vmem:[#allocation14 + $0x20] sm:$0xf]
          %v3037 = vld [vmem:[#allocation14 + $0x24] sm:$0xf]
          %v3038 = vld [vmem:[#allocation14 + $0x28] sm:$0xf]
          %v3039 = vld [vmem:[#allocation14 + $0x2c] sm:$0xf]
          %v3040 = vld [vmem:[#allocation14 + $0x30] sm:$0xf]
          %v3041 = vld [vmem:[#allocation14 + $0x34] sm:$0xf]
          %v3042 = vld [vmem:[#allocation14 + $0x38] sm:$0xf]
          %v3043 = vld [vmem:[#allocation14 + $0x3c] sm:$0xf]
          %v3060 = vunpack.c.l.b16 %v3028
          %v3061 = vunpack.c.l.b16 %v3029
          %v3062 = vunpack.c.l.b16 %v3030
          %v3063 = vunpack.c.l.b16 %v3031
          %v3064 = vunpack.c.l.b16 %v3032
          %v3065 = vunpack.c.l.b16 %v3033
          %v3066 = vunpack.c.l.b16 %v3034
          %v3067 = vunpack.c.l.b16 %v3035
          %v3068 = vunpack.c.l.b16 %v3036
          %v3069 = vunpack.c.l.b16 %v3037
          %v3070 = vunpack.c.l.b16 %v3038
          %v3071 = vunpack.c.l.b16 %v3039
          %v3072 = vunpack.c.l.b16 %v3040
          %v3073 = vunpack.c.l.b16 %v3041
          %v3074 = vunpack.c.l.b16 %v3042
          %v3075 = vunpack.c.l.b16 %v3043
          %v3076 = vpack.c.b16 %v3061, %v3060
          %v3077 = vpack.c.b16 %v3063, %v3062
          %v3078 = vpack.c.b16 %v3065, %v3064
          %v3079 = vpack.c.b16 %v3067, %v3066
          %v3080 = vpack.c.b16 %v3069, %v3068
          %v3081 = vpack.c.b16 %v3071, %v3070
          %v3082 = vpack.c.b16 %v3073, %v3072
          %v3083 = vpack.c.b16 %v3075, %v3074
          %3092 = vmatprep.subr.bf16.mxu0 0
          %3093 = vmatpush1.bf16.msra.mxu0 %v3076
          %3094 = vmatprep.subr.bf16.mxu0 0
          %3095 = vmatpush1.bf16.msra.mxu0 %v3077
          %3096 = vmatprep.subr.bf16.mxu0 0
          %3097 = vmatpush1.bf16.msra.mxu0 %v3078
          %3098 = vmatprep.subr.bf16.mxu0 0
          %3099 = vmatpush1.bf16.msra.mxu0 %v3079
          %3100 = vmatprep.subr.bf16.mxu0 0
          %3101 = vmatpush1.bf16.msra.mxu0 %v3080
          %3102 = vmatprep.subr.bf16.mxu0 0
          %3103 = vmatpush1.bf16.msra.mxu0 %v3081
          %3104 = vmatprep.subr.bf16.mxu0 0
          %3105 = vmatpush1.bf16.msra.mxu0 %v3082
          %3106 = vmatprep.subr.bf16.mxu0 0
          %3107 = vmatpush1.bf16.msra.mxu0 %v3083
          %3108 = vmatprep.subr.bf16.mxu0 0
          %3109 = vmatpush1.bf16.msra.mxu0 0
          %3110 = vmatprep.subr.bf16.mxu0 0
          %3111 = vmatpush1.bf16.msra.mxu0 0
          %3112 = vmatprep.subr.bf16.mxu0 0
          %3113 = vmatpush1.bf16.msra.mxu0 0
          %3114 = vmatprep.subr.bf16.mxu0 0
          %3115 = vmatpush1.bf16.msra.mxu0 0
          %3116 = vmatprep.subr.bf16.mxu0 0
          %3117 = vmatpush1.bf16.msra.mxu0 0
          %3118 = vmatprep.subr.bf16.mxu0 0
          %3119 = vmatpush1.bf16.msra.mxu0 0
          %3120 = vmatprep.subr.bf16.mxu0 0
          %3121 = vmatpush1.bf16.msra.mxu0 0
          %3122 = vmatprep.subr.bf16.mxu0 0
          %3123 = vmatpush1.bf16.msra.mxu0 0
          %3124 = vmatprep.mubr.bf16.mxu0 0
          %3125 = vmatmul.mubr.bf16.gmra.mrb[0].mxu0 %v3012
          %v3126 = vpop.f32.mrb[0].mxu0
          %v3127 = vadd.f32 0.0, %v3126
          %v3128 = vpop.f32.mrb[0].mxu0
          %v3129 = vpop.f32.mrb[0].mxu0
          %v3130 = vadd.f32 0.0, %v3129
          %v3131 = vpop.f32.mrb[0].mxu0
          %3132 = vmatprep.mubr.bf16.mxu0 0
          %3133 = vmatmul.mubr.bf16.gmra.mrb[0].mxu0 %v3013
          %v3134 = vpop.f32.mrb[0].mxu0
          %v3135 = vadd.f32 0.0, %v3134
          %v3136 = vpop.f32.mrb[0].mxu0
          %v3137 = vpop.f32.mrb[0].mxu0
          %v3138 = vadd.f32 0.0, %v3137
          %v3139 = vpop.f32.mrb[0].mxu0
          %3140 = vmatprep.mubr.bf16.mxu0 0
          %3141 = vmatmul.mubr.bf16.gmra.mrb[0].mxu0 %v3014
          %v3142 = vpop.f32.mrb[0].mxu0
          %v3143 = vadd.f32 0.0, %v3142
          %v3144 = vpop.f32.mrb[0].mxu0
          %v3145 = vpop.f32.mrb[0].mxu0
          %v3146 = vadd.f32 0.0, %v3145
          %v3147 = vpop.f32.mrb[0].mxu0
          %3148 = vmatprep.mubr.bf16.mxu0 0
          %3149 = vmatmul.mubr.bf16.gmra.mrb[0].mxu0 %v3015
          %v3150 = vpop.f32.mrb[0].mxu0
          %v3151 = vadd.f32 0.0, %v3150
          %v3152 = vpop.f32.mrb[0].mxu0
          %v3153 = vpop.f32.mrb[0].mxu0
          %v3154 = vadd.f32 0.0, %v3153
          %v3155 = vpop.f32.mrb[0].mxu0
          %3156 = vmatprep.mubr.bf16.mxu0 0
          %3157 = vmatmul.mubr.bf16.gmra.mrb[0].mxu0 %v3016
          %v3158 = vpop.f32.mrb[0].mxu0
          %v3159 = vadd.f32 0.0, %v3158
          %v3160 = vpop.f32.mrb[0].mxu0
          %v3161 = vpop.f32.mrb[0].mxu0
          %v3162 = vadd.f32 0.0, %v3161
          %v3163 = vpop.f32.mrb[0].mxu0
          %3164 = vmatprep.mubr.bf16.mxu0 0
          %3165 = vmatmul.mubr.bf16.gmra.mrb[0].mxu0 %v3017
          %v3166 = vpop.f32.mrb[0].mxu0
          %v3167 = vadd.f32 0.0, %v3166
          %v3168 = vpop.f32.mrb[0].mxu0
          %v3169 = vpop.f32.mrb[0].mxu0
          %v3170 = vadd.f32 0.0, %v3169
          %v3171 = vpop.f32.mrb[0].mxu0
          %3172 = vmatprep.mubr.bf16.mxu0 0
          %3173 = vmatmul.mubr.bf16.gmra.mrb[0].mxu0 %v3018
          %v3174 = vpop.f32.mrb[0].mxu0
          %v3175 = vadd.f32 0.0, %v3174
          %v3176 = vpop.f32.mrb[0].mxu0
          %v3177 = vpop.f32.mrb[0].mxu0
          %v3178 = vadd.f32 0.0, %v3177
          %v3179 = vpop.f32.mrb[0].mxu0
          %3180 = vmatprep.mubr.bf16.mxu0 0
          %3181 = vmatmul.mubr.bf16.gmra.mrb[0].mxu0 %v3019
          %v3182 = vpop.f32.mrb[0].mxu0
          %v3183 = vadd.f32 0.0, %v3182
          %v3184 = vpop.f32.mrb[0].mxu0
          %v3185 = vpop.f32.mrb[0].mxu0
          %v3186 = vadd.f32 0.0, %v3185
          %v3187 = vpop.f32.mrb[0].mxu0
          %3188 = vmatprep.mubr.bf16.mxu0 0
          %3189 = vmatmul.mubr.bf16.gmra.mrb[0].mxu0 %v3020
          %v3190 = vpop.f32.mrb[0].mxu0
          %v3191 = vadd.f32 0.0, %v3190
          %v3192 = vpop.f32.mrb[0].mxu0
          %v3193 = vpop.f32.mrb[0].mxu0
          %v3194 = vadd.f32 0.0, %v3193
          %v3195 = vpop.f32.mrb[0].mxu0
          %3196 = vmatprep.mubr.bf16.mxu0 0
          %3197 = vmatmul.mubr.bf16.gmra.mrb[0].mxu0 %v3021
          %v3198 = vpop.f32.mrb[0].mxu0
          %v3199 = vadd.f32 0.0, %v3198
          %v3200 = vpop.f32.mrb[0].mxu0
          %v3201 = vpop.f32.mrb[0].mxu0
          %v3202 = vadd.f32 0.0, %v3201
          %v3203 = vpop.f32.mrb[0].mxu0
          %3204 = vmatprep.mubr.bf16.mxu0 0
          %3205 = vmatmul.mubr.bf16.gmra.mrb[0].mxu0 %v3022
          %v3206 = vpop.f32.mrb[0].mxu0
          %v3207 = vadd.f32 0.0, %v3206
          %v3208 = vpop.f32.mrb[0].mxu0
          %v3209 = vpop.f32.mrb[0].mxu0
          %v3210 = vadd.f32 0.0, %v3209
          %v3211 = vpop.f32.mrb[0].mxu0
          %3212 = vmatprep.mubr.bf16.mxu0 0
          %3213 = vmatmul.mubr.bf16.gmra.mrb[0].mxu0 %v3023
          %v3214 = vpop.f32.mrb[0].mxu0
          %v3215 = vadd.f32 0.0, %v3214
          %v3216 = vpop.f32.mrb[0].mxu0
          %v3217 = vpop.f32.mrb[0].mxu0
          %v3218 = vadd.f32 0.0, %v3217
          %v3219 = vpop.f32.mrb[0].mxu0
          %3220 = vmatprep.mubr.bf16.mxu0 0
          %3221 = vmatmul.mubr.bf16.gmra.mrb[0].mxu0 %v3024
          %v3222 = vpop.f32.mrb[0].mxu0
          %v3223 = vadd.f32 0.0, %v3222
          %v3224 = vpop.f32.mrb[0].mxu0
          %v3225 = vpop.f32.mrb[0].mxu0
          %v3226 = vadd.f32 0.0, %v3225
          %v3227 = vpop.f32.mrb[0].mxu0
          %3228 = vmatprep.mubr.bf16.mxu0 0
          %3229 = vmatmul.mubr.bf16.gmra.mrb[0].mxu0 %v3025
          %v3230 = vpop.f32.mrb[0].mxu0
          %v3231 = vadd.f32 0.0, %v3230
          %v3232 = vpop.f32.mrb[0].mxu0
          %v3233 = vpop.f32.mrb[0].mxu0
          %v3234 = vadd.f32 0.0, %v3233
          %v3235 = vpop.f32.mrb[0].mxu0
          %3236 = vmatprep.mubr.bf16.mxu0 0
          %3237 = vmatmul.mubr.bf16.gmra.mrb[0].mxu0 %v3026
          %v3238 = vpop.f32.mrb[0].mxu0
          %v3239 = vadd.f32 0.0, %v3238
          %v3240 = vpop.f32.mrb[0].mxu0
          %v3241 = vpop.f32.mrb[0].mxu0
          %v3242 = vadd.f32 0.0, %v3241
          %v3243 = vpop.f32.mrb[0].mxu0
          %3244 = vmatprep.mubr.bf16.mxu0 0
          %3245 = vmatmul.mubr.bf16.gmra.mrb[0].mxu0 %v3027
          %v3246 = vpop.f32.mrb[0].mxu0
          %v3247 = vadd.f32 0.0, %v3246
          %v3248 = vpop.f32.mrb[0].mxu0
          %v3249 = vpop.f32.mrb[0].mxu0
          %v3250 = vadd.f32 0.0, %v3249
          %v3251 = vpop.f32.mrb[0].mxu0
          %3252 = vdwg.mxu0
          %v3253 = vadd.f32 %v2980, %v3127
          %v3254 = vadd.f32 %v2981, %v3130
          %v3255 = vadd.f32 %v2982, %v3135
          %v3256 = vadd.f32 %v2983, %v3138
          %v3257 = vadd.f32 %v2984, %v3143
          %v3258 = vadd.f32 %v2985, %v3146
          %v3259 = vadd.f32 %v2986, %v3151
          %v3260 = vadd.f32 %v2987, %v3154
          %v3261 = vadd.f32 %v2988, %v3159
          %v3262 = vadd.f32 %v2989, %v3162
          %v3263 = vadd.f32 %v2990, %v3167
          %v3264 = vadd.f32 %v2991, %v3170
          %v3265 = vadd.f32 %v2992, %v3175
          %v3266 = vadd.f32 %v2993, %v3178
          %v3267 = vadd.f32 %v2994, %v3183
          %v3268 = vadd.f32 %v2995, %v3186
          %v3269 = vadd.f32 %v2996, %v3191
          %v3270 = vadd.f32 %v2997, %v3194
          %v3271 = vadd.f32 %v2998, %v3199
          %v3272 = vadd.f32 %v2999, %v3202
          %v3273 = vadd.f32 %v3000, %v3207
          %v3274 = vadd.f32 %v3001, %v3210
          %v3275 = vadd.f32 %v3002, %v3215
          %v3276 = vadd.f32 %v3003, %v3218
          %v3277 = vadd.f32 %v3004, %v3223
          %v3278 = vadd.f32 %v3005, %v3226
          %v3279 = vadd.f32 %v3006, %v3231
          %v3280 = vadd.f32 %v3007, %v3234
          %v3281 = vadd.f32 %v3008, %v3239
          %v3282 = vadd.f32 %v3009, %v3242
          %v3283 = vadd.f32 %v3010, %v3247
          %v3284 = vadd.f32 %v3011, %v3250
          %3285 = vst [vmem:[%s354] sm:$0xff] %v3253
          %3286 = vst [vmem:[%s354 + $0x8] sm:$0xff] %v3254
          %3287 = vst [vmem:[%s354 + $0x10] sm:$0xff] %v3255
          %3288 = vst [vmem:[%s354 + $0x18] sm:$0xff] %v3256
          %3289 = vst [vmem:[%s354 + $0x20] sm:$0xff] %v3257
          %3290 = vst [vmem:[%s354 + $0x28] sm:$0xff] %v3258
          %3291 = vst [vmem:[%s354 + $0x30] sm:$0xff] %v3259
          %3292 = vst [vmem:[%s354 + $0x38] sm:$0xff] %v3260
          %3293 = vst [vmem:[%s354 + $0x40] sm:$0xff] %v3261
          %3294 = vst [vmem:[%s354 + $0x48] sm:$0xff] %v3262
          %3295 = vst [vmem:[%s354 + $0x50] sm:$0xff] %v3263
          %3296 = vst [vmem:[%s354 + $0x58] sm:$0xff] %v3264
          %3297 = vst [vmem:[%s354 + $0x60] sm:$0xff] %v3265
          %3298 = vst [vmem:[%s354 + $0x68] sm:$0xff] %v3266
          %3299 = vst [vmem:[%s354 + $0x70] sm:$0xff] %v3267
          %3300 = vst [vmem:[%s354 + $0x78] sm:$0xff] %v3268
          %3301 = vst [vmem:[%s354 + $0x80] sm:$0xff] %v3269
          %3302 = vst [vmem:[%s354 + $0x88] sm:$0xff] %v3270
          %3303 = vst [vmem:[%s354 + $0x90] sm:$0xff] %v3271
          %3304 = vst [vmem:[%s354 + $0x98] sm:$0xff] %v3272
          %3305 = vst [vmem:[%s354 + $0xa0] sm:$0xff] %v3273
          %3306 = vst [vmem:[%s354 + $0xa8] sm:$0xff] %v3274
          %3307 = vst [vmem:[%s354 + $0xb0] sm:$0xff] %v3275
          %3308 = vst [vmem:[%s354 + $0xb8] sm:$0xff] %v3276
          %3309 = vst [vmem:[%s354 + $0xc0] sm:$0xff] %v3277
          %3310 = vst [vmem:[%s354 + $0xc8] sm:$0xff] %v3278
          %3311 = vst [vmem:[%s354 + $0xd0] sm:$0xff] %v3279
          %3312 = vst [vmem:[%s354 + $0xd8] sm:$0xff] %v3280
          %3313 = vst [vmem:[%s354 + $0xe0] sm:$0xff] %v3281
          %3314 = vst [vmem:[%s354 + $0xe8] sm:$0xff] %v3282
          %3315 = vst [vmem:[%s354 + $0xf0] sm:$0xff] %v3283
          %3316 = vst [vmem:[%s354 + $0xf8] sm:$0xff] %v3284
        $region68: #{tpu_custom_call.1} parent=39 // pred_fallthru
          _
        %s3317 = sand.u32 %s174, 1
        %s3318 = scalar_lea.sflag [#allocation8], %s3317
        %s3319 = sand.u32 %s174, 1
        %s3320 = smul.addr %s3319, 256
        %s3321 = scalar_lea.vmem [#allocation15], %s3320
        // Predicated region
        $region69: #{tpu_custom_call.1} parent=39 // pred_check
          %p3322 = pneg %p184
        $region70: #{tpu_custom_call.1} parent=39 // pred_check_branch
          %3324 = sbr.rel (%p3322) target = $region72
        $region71: #{tpu_custom_call.1} parent=39 // pred_region
          %s3325 = smul.u32 32, %s32
          %s3327 = ssub.s32 4096, 4096
          %3328 = vsyncadd %s3318, %s3327
          %s3329 = smul.addr %s31, 32
          %s3330 = sadd.s32 %s3325, %s3329
          %s3331 = smul.addr %s3330, 128
          %s3332 = scalar_lea.hbm %s5, %s3331
          %s3333 = sshll.u32 %s3321, 4
          %s3334 = int_to_ptr.vmem [resolvable:$true] %s3333
          %3339 = dma.vmem_to_hbm [thread:$0]  %s3334, 4096, %s3332, %s3318, 128, 128, 8
        $region72: #{tpu_custom_call.1} parent=39 // pred_fallthru
          _
      $region40: #{tpu_custom_call.1} parent=5 // pred_fallthru
        _
      %p3340 = scmp.le.s32.totalorder 2, %s21
      // Predicated region
      $region73: #{tpu_custom_call.1} parent=5 // pred_check
        %p3341 = pneg %p3340
      $region74: #{tpu_custom_call.1} parent=5 // pred_check_branch
        %3343 = sbr.rel (%p3341) target = $region76
      $region75: #{tpu_custom_call.1} parent=5 // pred_region
        %s3344 = ssub.s32 %s21, 2
        // Predicated region
        $region77: #{tpu_custom_call.1} parent=75 // pred_check
          %p3345 = pneg %p190
        $region78: #{tpu_custom_call.1} parent=75 // pred_check_branch
          %3347 = sbr.rel (%p3345) target = $region80
        $region79: #{tpu_custom_call.1} parent=75 // pred_region
          %s3348 = sand.u32 %s175, 1
          %s3349 = scalar_lea.sflag [#allocation8], %s3348
          %s3350 = sand.u32 %s175, 1
          %s3351 = smul.addr %s3350, 256
          %s3352 = scalar_lea.vmem [#allocation15], %s3351
          %3353 = dma.done %s3349, 4096
        $region80: #{tpu_custom_call.1} parent=75 // pred_fallthru
          _
      $region76: #{tpu_custom_call.1} parent=5 // pred_fallthru
        _
    $region6: #{tpu_custom_call.1} parent=1 // loop_footer
      %s25 = sadd.s32 1, %s21
    $region7: #{tpu_custom_call.1} parent=1 // loop_footer_branch
      %20 = sbr.rel target = $region3
    $region8: #{tpu_custom_call.1} parent=1 // loop_exit
      _
    %3354 = vsyncpa [#allocation7], 1
    %s3355 = scalar_lea.sflag [#allocation7], 1
    %3356 = vsyncpa %s3355, 1
    %3357 = vsyncpa [#allocation10], 1
    %s3358 = scalar_lea.sflag [#allocation10], 1
    %3359 = vsyncpa %s3358, 1
    %3360 = vsyncpa [#allocation13], 1
    %3361 = vsyncpa [#allocation8], 1
    %s3362 = scalar_lea.sflag [#allocation8], 1
    %3363 = vsyncpa %s3362, 1

</llo_original>
